<compile_context>
chip_gen: v6e
topology: v6e:2x2x1
jax: 0.10.0
libtpu: 0.0.40
codegen_flags: <defaults>
</compile_context>

<pallas_src>
import numpy as np
import jax
import jax.numpy as jnp
from jax.experimental import pallas as pl
from jax.experimental.pallas import tpu as pltpu

# ----------------------------- model config ---------------------------------
N_BATCH = 2
IN_CH = 4
SPATIAL = 16
CFG = [8, "M", 16, "M", 32, 32, "M"]          # documented; geometry below
HIDDEN = 32
CLASS_NUM = 10
FLAT_HW = 2 * 2                                # spatial size after last pool
FLAT_DIM = 32 * FLAT_HW                        # 128 (stands in for 25088)

CDT = jnp.bfloat16                             # MXU operand dtype (f32 accum)

# (Cin, Cout, H, W) of each conv layer.
CONV_GEOM = [(IN_CH, 8, 16, 16), (8, 16, 8, 8), (16, 32, 4, 4), (32, 32, 4, 4)]


def _geom(h, w):
    hp, wp = h + 2, w + 2                      # spatially padded extent
    return hp, wp, N_BATCH * hp * wp, wp + 1   # (Hp, Wp, Mpad, lane halo)


HP1, WP1, MP1, HA1 = _geom(16, 16)             # 18, 18, 648, 19
HP2, WP2, MP2, HA2 = _geom(8, 8)               # 10, 10, 200, 11
HP3, WP3, MP3, HA3 = _geom(4, 4)               # 6,  6,  72,  7


# ------------------------- packed parameter slabs ---------------------------
def _offsets(shapes):
    offs, cur = {}, 0
    for name, (_, c) in shapes:
        cur = -(-cur // 8) * 8                 # 8-lane align each block
        offs[name] = cur
        cur += c
    return offs, -(-cur // 128) * 128


_B_SHAPES = [("w1", (8, 36)), ("w2", (16, 72)), ("w3", (32, 144)),
             ("w4", (32, 288)), ("w0hw", (HIDDEN, FLAT_HW * HIDDEN)),
             ("wc3", (HIDDEN, HIDDEN)), ("wf", (CLASS_NUM, HIDDEN))]
_F_SHAPES = [("bias", (32, 7)), ("poolsel", (16, 8)), ("mask3", (1, MP3)),
             ("selhw", (N_BATCH * FLAT_HW, FLAT_HW * N_BATCH))]
_B_OFF, _B_LANES = _offsets(_B_SHAPES)
_F_OFF, _F_LANES = _offsets(_F_SHAPES)
_SLAB_ROWS = 32


# ----------------------------- fused kernel ---------------------------------
def _vggfc_kernel(x_ref, bslab, fslab, o_ref,
                  im1, im2, im3, im4, st, buf2, buf3, buf4, featbuf):
    f32 = jnp.float32

    def weights(name, rows, cols, lane_off=0):
        return bslab[pl.ds(0, rows), pl.ds(_B_OFF[name] + lane_off, cols)]

    def bias(idx, rows):
        return fslab[pl.ds(0, rows), pl.ds(_F_OFF["bias"] + idx, 1)]

    taps = [(dy, dx) for dy in (-1, 0, 1) for dx in (-1, 0, 1)]

    def conv3x3_relu(in_ref, im_ref, wname, bidx, cin, cout, wp, mpad, halo):
        """3x3 / pad-1 conv + bias + ReLU on the spatially padded lane layout.

        Builds the (9*Cin, M) im2col block from 9 unmasked shifted slices and
        runs ONE K=9*Cin bf16 MXU matmul with f32 accumulation."""
        for t, (dy, dx) in enumerate(taps):
            im_ref[pl.ds(t * cin, cin), :] = (
                in_ref[:, pl.ds(halo + dy * wp + dx, mpad)])
        acc = jnp.dot(weights(wname, cout, 9 * cin),
                      im_ref[...].astype(CDT),
                      preferred_element_type=f32)
        return jnp.maximum(acc + bias(bidx, cout), 0.0)          # (cout, M) f32

    def maxpool2x2(act, c, hp, wp, store_row):
        """2x2 / stride-2 maxpool: shifted-window max (VPU, staged once in
        `st`) + a tiny shared 0/1 gather matmul per output row doing the
        stride-2 downselect into the destination layout."""
        w, wo, ho = wp - 2, (wp - 2) // 2, (hp - 2) // 2
        mpad = N_BATCH * hp * wp
        st[pl.ds(0, c), pl.ds(0, mpad)] = act
        m = jnp.maximum(
            jnp.maximum(st[pl.ds(0, c), pl.ds(0, mpad)],
                        st[pl.ds(0, c), pl.ds(1, mpad)]),
            jnp.maximum(st[pl.ds(0, c), pl.ds(wp, mpad)],
                        st[pl.ds(0, c), pl.ds(wp + 1, mpad)]))
        st[pl.ds(0, c), pl.ds(0, mpad)] = m
        sel = fslab[pl.ds(0, w), pl.ds(_F_OFF["poolsel"], wo)]   # (w, wo) 0/1
        for n in range(N_BATCH):
            for yo in range(ho):
                row = st[pl.ds(0, c),
                         pl.ds(n * hp * wp + (2 * yo + 1) * wp + 1, w)]
                store_row(n, yo, wo,
                          jnp.dot(row, sel, preferred_element_type=f32))

    # ---- one-time zeroing (grid is a single step): pad/halo lanes of the
    #      chained conv inputs + the staging halo. Interiors are overwritten
    #      below; nothing is re-zeroed per layer. ------------------------------
    buf2[...] = jnp.zeros(buf2.shape, buf2.dtype)
    buf3[...] = jnp.zeros(buf3.shape, buf3.dtype)
    buf4[...] = jnp.zeros(buf4.shape, buf4.dtype)
    st[:, pl.ds(MP1, HA1)] = jnp.zeros((st.shape[0], HA1), f32)

    # ---- self.features -------------------------------------------------------
    a1 = conv3x3_relu(x_ref, im1, "w1", 0, IN_CH, 8, WP1, MP1, HA1)   # (8, 648)

    def to_buf2(n, yo, wo, r):
        buf2[:, pl.ds(HA2 + n * HP2 * WP2 + (yo + 1) * WP2 + 1, wo)] = r
    maxpool2x2(a1, 8, HP1, WP1, to_buf2)

    a2 = conv3x3_relu(buf2, im2, "w2", 1, 8, 16, WP2, MP2, HA2)       # (16, 200)

    def to_buf3(n, yo, wo, r):
        buf3[:, pl.ds(HA3 + n * HP3 * WP3 + (yo + 1) * WP3 + 1, wo)] = r
    maxpool2x2(a2, 16, HP2, WP2, to_buf3)

    a3 = conv3x3_relu(buf3, im3, "w3", 2, 16, 32, WP3, MP3, HA3)      # (32, 72)
    # conv3 -> conv4 has no pool in between: zero the pad positions so conv4
    # sees proper zero padding, then store into its padded input buffer.
    mask3 = fslab[pl.ds(0, 1), pl.ds(_F_OFF["mask3"], MP3)]           # (1, 72)
    buf4[:, pl.ds(HA3, MP3)] = a3 * mask3

    a4 = conv3x3_relu(buf4, im4, "w4", 3, 32, 32, WP3, MP3, HA3)      # (32, 72)

    def to_feat(n, yo, wo, r):
        featbuf[:, pl.ds(n * FLAT_HW + yo * wo, wo)] = r
    maxpool2x2(a4, 32, HP3, WP3, to_feat)

    # ---- x.view(N, 128) + self.classifier + self.fc (batch on lanes) ---------
    # PyTorch flattens NCHW -> k = c*4 + hw; classifier0's weight is pre-split
    # by hw so no in-kernel reshape/transpose is needed.
    feat = featbuf[...]                                               # (32, 8) f32
    acc0 = None
    for hw in range(FLAT_HW):
        sel = fslab[pl.ds(0, N_BATCH * FLAT_HW),
                    pl.ds(_F_OFF["selhw"] + hw * N_BATCH, N_BATCH)]   # (8, N)
        cols = jnp.dot(feat, sel, preferred_element_type=f32)         # (32, N)
        t = jnp.dot(weights("w0hw", HIDDEN, HIDDEN, lane_off=hw * HIDDEN),
                    cols.astype(CDT), preferred_element_type=f32)
        acc0 = t if acc0 is None else acc0 + t
    hid0 = jnp.maximum(acc0 + bias(4, HIDDEN), 0.0)                   # (32, N)
    # classifier2 / classifier5 Dropout: eval-mode identity.
    hid3 = jnp.maximum(
        jnp.dot(weights("wc3", HIDDEN, HIDDEN), hid0.astype(CDT),
                preferred_element_type=f32) + bias(5, HIDDEN), 0.0)   # (32, N)
    # TODO(synk): if this ever feeds a larger on-TPU loop, emit (N, CLASS)
    # lane-dense output instead of (CLASS, N) to avoid tiny masked stores.
    o_ref[...] = (jnp.dot(weights("wf", CLASS_NUM, HIDDEN), hid3.astype(CDT),
                          preferred_element_type=f32) + bias(6, CLASS_NUM))


# ----------------------------- host-side params -----------------------------
def init_params(key):
    bslab = np.zeros((_SLAB_ROWS, _B_LANES), np.float32)
    fslab = np.zeros((_SLAB_ROWS, _F_LANES), np.float32)

    def put(slab, offs, name, arr):
        r, c = arr.shape
        slab[:r, offs[name]:offs[name] + c] = arr

    # conv layers: torch (Cout, Cin, 3, 3) -> matmul-ready (Cout, 9*Cin) with
    # column index (dy*3 + dx)*Cin + cin, matching the in-kernel im2col build.
    for li, (cin, cout, _, _) in enumerate(CONV_GEOM):
        key, kw, kb = jax.random.split(key, 3)
        wt = np.asarray(jax.random.normal(kw, (cout, cin, 3, 3), jnp.float32)) * 0.05
        bt = np.asarray(jax.random.normal(kb, (cout,), jnp.float32)) * 0.01
        put(bslab, _B_OFF, "w%d" % (li + 1),
            wt.transpose(0, 2, 3, 1).reshape(cout, 9 * cin))
        fslab[:cout, _F_OFF["bias"] + li] = bt

    def linear(key, fan_in, fan_out, std):
        key, kw = jax.random.split(key)
        return key, np.asarray(
            jax.random.normal(kw, (fan_out, fan_in), jnp.float32)) * std

    key, w0 = linear(key, FLAT_DIM, HIDDEN, 0.01)        # classifier0
    key, wc3 = linear(key, HIDDEN, HIDDEN, 0.01)         # classifier3
    key, wf = linear(key, HIDDEN, CLASS_NUM, 0.01)       # self.fc
    # classifier0 consumes the NCHW flatten (k = c*4 + hw): pre-split by hw.
    put(bslab, _B_OFF, "w0hw",
        np.concatenate([w0[:, hw::FLAT_HW] for hw in range(FLAT_HW)], axis=1))
    put(bslab, _B_OFF, "wc3", wc3)
    put(bslab, _B_OFF, "wf", wf)
    # linear biases are zero -> bias columns 4..6 stay 0.

    # shared 2x2-pool stride-2 gather: sel[w, o] = 1 iff w == 2*o
    poolsel = np.zeros((16, 8), np.float32)
    poolsel[2 * np.arange(8), np.arange(8)] = 1.0
    put(fslab, _F_OFF, "poolsel", poolsel)

    # interior (non-pad) mask of the conv3/conv4 padded lane layout
    mask3 = np.zeros((1, MP3), np.float32)
    for n in range(N_BATCH):
        for yp in range(1, HP3 - 1):
            base = n * HP3 * WP3 + yp * WP3
            mask3[0, base + 1:base + WP3 - 1] = 1.0
    put(fslab, _F_OFF, "mask3", mask3)

    # flatten gather: sel[j, hw*N + n] = 1 iff j == n*FLAT_HW + hw
    selhw = np.zeros((N_BATCH * FLAT_HW, FLAT_HW * N_BATCH), np.float32)
    for hw in range(FLAT_HW):
        for n in range(N_BATCH):
            selhw[n * FLAT_HW + hw, hw * N_BATCH + n] = 1.0
    put(fslab, _F_OFF, "selhw", selhw)

    return {"bslab": jnp.asarray(bslab, CDT),
            "fslab": jnp.asarray(fslab, jnp.float32)}


# ----------------------------- forward ---------------------------------------
def vggfc_forward(params, x_nchw):
    n, c, h, w = x_nchw.shape
    # normalize_op is None -> skipped.  Host prep of the *input only*:
    # channels -> sublanes, spatially zero-padded (n, H+2, W+2) -> lanes, plus
    # a zero lane halo so every in-kernel conv tap is an unmasked static slice.
    x_cm = jnp.transpose(x_nchw, (1, 0, 2, 3))                       # (C, N, H, W)
    x_sp = jnp.pad(x_cm, ((0, 0), (0, 0), (1, 1), (1, 1)))           # (C, N, Hp, Wp)
    x_pad = jnp.pad(x_sp.reshape(c, n * (h + 2) * (w + 2)),
                    ((0, 0), (HA1, HA1)))                            # (C, 686) f32

    # Kept as a single TensorCore invocation on purpose: at N=2 the per-step
    # overhead of a parallel grid axis exceeds the compute it would save.
    # TODO(synk): to fill the 256-wide MXU on v6e/v7x, batch more samples per
    # call (wider M) before considering dual-core sharding.
    out = pl.pallas_call(
        _vggfc_kernel,
        out_shape=jax.ShapeDtypeStruct((CLASS_NUM, N_BATCH), jnp.float32),
        scratch_shapes=[
            pltpu.VMEM((9 * IN_CH, MP1), jnp.float32),      # conv1 im2col
            pltpu.VMEM((9 * 8, MP2), jnp.float32),          # conv2 im2col
            pltpu.VMEM((9 * 16, MP3), jnp.float32),         # conv3 im2col
            pltpu.VMEM((9 * 32, MP3), jnp.float32),         # conv4 im2col
            pltpu.VMEM((32, MP1 + HA1), jnp.float32),       # shared pool staging
            pltpu.VMEM((8, MP2 + 2 * HA2), jnp.float32),    # conv2 padded input
            pltpu.VMEM((16, MP3 + 2 * HA3), jnp.float32),   # conv3 padded input
            pltpu.VMEM((32, MP3 + 2 * HA3), jnp.float32),   # conv4 padded input
            pltpu.VMEM((32, N_BATCH * FLAT_HW), jnp.float32),  # pooled features
        ],
    )(x_pad, params["bslab"], params["fslab"])
    return out.T                                            # (N, CLASS_NUM)


# ----------------------------- main -------------------------------------------
if __name__ == "__main__":
    key = jax.random.PRNGKey(0)
    key, kx = jax.random.split(key)
    x = jax.random.normal(kx, (N_BATCH, IN_CH, SPATIAL, SPATIAL), jnp.float32)

    params = init_params(key)

    y = jax.jit(vggfc_forward)(params, x)
    y = jax.block_until_ready(y)

    assert y.shape == (N_BATCH, CLASS_NUM), y.shape
    assert y.dtype == jnp.float32
    assert bool(jnp.all(jnp.isfinite(y)))
    print("KERNEL_OK")
</pallas_src>

<mosaic_0001>
module attributes {stable_mosaic.version = 11 : i64} {
  func.func @_vggfc_kernel(%arg0: memref<4x686xf32, #tpu.memory_space<vmem>>, %arg1: memref<32x768xbf16, #tpu.memory_space<vmem>>, %arg2: memref<32x128xf32, #tpu.memory_space<vmem>>, %arg3: memref<10x2xf32, #tpu.memory_space<vmem>>, %arg4: memref<36x648xf32, #tpu.memory_space<vmem>>, %arg5: memref<72x200xf32, #tpu.memory_space<vmem>>, %arg6: memref<144x72xf32, #tpu.memory_space<vmem>>, %arg7: memref<288x72xf32, #tpu.memory_space<vmem>>, %arg8: memref<32x667xf32, #tpu.memory_space<vmem>>, %arg9: memref<8x222xf32, #tpu.memory_space<vmem>>, %arg10: memref<16x86xf32, #tpu.memory_space<vmem>>, %arg11: memref<32x86xf32, #tpu.memory_space<vmem>>, %arg12: memref<32x8xf32, #tpu.memory_space<vmem>>) attributes {dimension_semantics = [], scalar_prefetch = 0 : i64, scratch_operands = 9 : i64, tpu.core_type = #tpu.core_type<tc>} {
    %cst = arith.constant 0.000000e+00 : f32
    %0 = vector.broadcast %cst : f32 to vector<8x222xf32>
    %c0 = arith.constant 0 : index
    %c0_0 = arith.constant 0 : index
    %1 = vector.load %arg9[%c0, %c0_0] : memref<8x222xf32, #tpu.memory_space<vmem>>, vector<8x222xf32>
    tpu.vector_store %arg9[%c0, %c0_0], %0 {strides = array<i32>} : memref<8x222xf32, #tpu.memory_space<vmem>>, vector<8x222xf32>,
    %cst_1 = arith.constant 0.000000e+00 : f32
    %2 = vector.broadcast %cst_1 : f32 to vector<16x86xf32>
    %c0_2 = arith.constant 0 : index
    %c0_3 = arith.constant 0 : index
    %3 = vector.load %arg10[%c0_2, %c0_3] : memref<16x86xf32, #tpu.memory_space<vmem>>, vector<16x86xf32>
    tpu.vector_store %arg10[%c0_2, %c0_3], %2 {strides = array<i32>} : memref<16x86xf32, #tpu.memory_space<vmem>>, vector<16x86xf32>,
    %cst_4 = arith.constant 0.000000e+00 : f32
    %4 = vector.broadcast %cst_4 : f32 to vector<32x86xf32>
    %c0_5 = arith.constant 0 : index
    %c0_6 = arith.constant 0 : index
    %5 = vector.load %arg11[%c0_5, %c0_6] : memref<32x86xf32, #tpu.memory_space<vmem>>, vector<32x86xf32>
    tpu.vector_store %arg11[%c0_5, %c0_6], %4 {strides = array<i32>} : memref<32x86xf32, #tpu.memory_space<vmem>>, vector<32x86xf32>,
    %cst_7 = arith.constant 0.000000e+00 : f32
    %6 = vector.broadcast %cst_7 : f32 to vector<32x19xf32>
    %c0_8 = arith.constant 0 : index
    %c648 = arith.constant 648 : index
    %7 = vector.load %arg8[%c0_8, %c648] : memref<32x667xf32, #tpu.memory_space<vmem>>, vector<32x19xf32>
    tpu.vector_store %arg8[%c0_8, %c648], %6 {strides = array<i32>} : memref<32x667xf32, #tpu.memory_space<vmem>>, vector<32x19xf32>,
    %c0_9 = arith.constant 0 : index
    %c0_10 = arith.constant 0 : index
    %8 = vector.load %arg0[%c0_9, %c0_10] : memref<4x686xf32, #tpu.memory_space<vmem>>, vector<4x648xf32>
    %c0_11 = arith.constant 0 : index
    %c0_12 = arith.constant 0 : index
    %9 = vector.load %arg4[%c0_11, %c0_12] : memref<36x648xf32, #tpu.memory_space<vmem>>, vector<4x648xf32>
    tpu.vector_store %arg4[%c0_11, %c0_12], %8 {strides = array<i32>} : memref<36x648xf32, #tpu.memory_space<vmem>>, vector<4x648xf32>,
    %c0_13 = arith.constant 0 : index
    %c1 = arith.constant 1 : index
    %10 = vector.load %arg0[%c0_13, %c1] : memref<4x686xf32, #tpu.memory_space<vmem>>, vector<4x648xf32>
    %c4 = arith.constant 4 : index
    %c0_14 = arith.constant 0 : index
    %11 = vector.load %arg4[%c4, %c0_14] : memref<36x648xf32, #tpu.memory_space<vmem>>, vector<4x648xf32>
    tpu.vector_store %arg4[%c4, %c0_14], %10 {strides = array<i32>} : memref<36x648xf32, #tpu.memory_space<vmem>>, vector<4x648xf32>,
    %c0_15 = arith.constant 0 : index
    %c2 = arith.constant 2 : index
    %12 = vector.load %arg0[%c0_15, %c2] : memref<4x686xf32, #tpu.memory_space<vmem>>, vector<4x648xf32>
    %c8 = arith.constant 8 : index
    %c0_16 = arith.constant 0 : index
    %13 = vector.load %arg4[%c8, %c0_16] : memref<36x648xf32, #tpu.memory_space<vmem>>, vector<4x648xf32>
    tpu.vector_store %arg4[%c8, %c0_16], %12 {strides = array<i32>} : memref<36x648xf32, #tpu.memory_space<vmem>>, vector<4x648xf32>,
    %c0_17 = arith.constant 0 : index
    %c18 = arith.constant 18 : index
    %14 = vector.load %arg0[%c0_17, %c18] : memref<4x686xf32, #tpu.memory_space<vmem>>, vector<4x648xf32>
    %c12 = arith.constant 12 : index
    %c0_18 = arith.constant 0 : index
    %15 = vector.load %arg4[%c12, %c0_18] : memref<36x648xf32, #tpu.memory_space<vmem>>, vector<4x648xf32>
    tpu.vector_store %arg4[%c12, %c0_18], %14 {strides = array<i32>} : memref<36x648xf32, #tpu.memory_space<vmem>>, vector<4x648xf32>,
    %c0_19 = arith.constant 0 : index
    %c19 = arith.constant 19 : index
    %16 = vector.load %arg0[%c0_19, %c19] : memref<4x686xf32, #tpu.memory_space<vmem>>, vector<4x648xf32>
    %c16 = arith.constant 16 : index
    %c0_20 = arith.constant 0 : index
    %17 = vector.load %arg4[%c16, %c0_20] : memref<36x648xf32, #tpu.memory_space<vmem>>, vector<4x648xf32>
    tpu.vector_store %arg4[%c16, %c0_20], %16 {strides = array<i32>} : memref<36x648xf32, #tpu.memory_space<vmem>>, vector<4x648xf32>,
    %c0_21 = arith.constant 0 : index
    %c20 = arith.constant 20 : index
    %18 = vector.load %arg0[%c0_21, %c20] : memref<4x686xf32, #tpu.memory_space<vmem>>, vector<4x648xf32>
    %c20_22 = arith.constant 20 : index
    %c0_23 = arith.constant 0 : index
    %19 = vector.load %arg4[%c20_22, %c0_23] : memref<36x648xf32, #tpu.memory_space<vmem>>, vector<4x648xf32>
    tpu.vector_store %arg4[%c20_22, %c0_23], %18 {strides = array<i32>} : memref<36x648xf32, #tpu.memory_space<vmem>>, vector<4x648xf32>,
    %c0_24 = arith.constant 0 : index
    %c36 = arith.constant 36 : index
    %20 = vector.load %arg0[%c0_24, %c36] : memref<4x686xf32, #tpu.memory_space<vmem>>, vector<4x648xf32>
    %c24 = arith.constant 24 : index
    %c0_25 = arith.constant 0 : index
    %21 = vector.load %arg4[%c24, %c0_25] : memref<36x648xf32, #tpu.memory_space<vmem>>, vector<4x648xf32>
    tpu.vector_store %arg4[%c24, %c0_25], %20 {strides = array<i32>} : memref<36x648xf32, #tpu.memory_space<vmem>>, vector<4x648xf32>,
    %c0_26 = arith.constant 0 : index
    %c37 = arith.constant 37 : index
    %22 = vector.load %arg0[%c0_26, %c37] : memref<4x686xf32, #tpu.memory_space<vmem>>, vector<4x648xf32>
    %c28 = arith.constant 28 : index
    %c0_27 = arith.constant 0 : index
    %23 = vector.load %arg4[%c28, %c0_27] : memref<36x648xf32, #tpu.memory_space<vmem>>, vector<4x648xf32>
    tpu.vector_store %arg4[%c28, %c0_27], %22 {strides = array<i32>} : memref<36x648xf32, #tpu.memory_space<vmem>>, vector<4x648xf32>,
    %c0_28 = arith.constant 0 : index
    %c38 = arith.constant 38 : index
    %24 = vector.load %arg0[%c0_28, %c38] : memref<4x686xf32, #tpu.memory_space<vmem>>, vector<4x648xf32>
    %c32 = arith.constant 32 : index
    %c0_29 = arith.constant 0 : index
    %25 = vector.load %arg4[%c32, %c0_29] : memref<36x648xf32, #tpu.memory_space<vmem>>, vector<4x648xf32>
    tpu.vector_store %arg4[%c32, %c0_29], %24 {strides = array<i32>} : memref<36x648xf32, #tpu.memory_space<vmem>>, vector<4x648xf32>,
    %c0_30 = arith.constant 0 : index
    %c0_31 = arith.constant 0 : index
    %26 = vector.load %arg1[%c0_30, %c0_31] : memref<32x768xbf16, #tpu.memory_space<vmem>>, vector<8x36xbf16>
    %c0_32 = arith.constant 0 : index
    %c0_33 = arith.constant 0 : index
    %27 = vector.load %arg4[%c0_32, %c0_33] : memref<36x648xf32, #tpu.memory_space<vmem>>, vector<36x648xf32>
    %28 = arith.truncf %27 : vector<36x648xf32> to vector<36x648xbf16>
    %cst_34 = arith.constant dense<0.000000e+00> : vector<8x648xf32>
    %29 = tpu.matmul %26, %28, %cst_34 {dimension_numbers = #tpu.dot_dimension_numbers<[1], [0], [0], [1], [0, 0, 1, 1], [], []>} : vector<8x36xbf16>, vector<36x648xbf16>, vector<8x648xf32> -> vector<8x648xf32>
    %c0_35 = arith.constant 0 : index
    %c0_36 = arith.constant 0 : index
    %30 = vector.load %arg2[%c0_35, %c0_36] : memref<32x128xf32, #tpu.memory_space<vmem>>, vector<8x1xf32>
    %31 = vector.broadcast %30 : vector<8x1xf32> to vector<8x648xf32>
    %32 = arith.addf %29, %31 : vector<8x648xf32>
    %cst_37 = arith.constant 0.000000e+00 : f32
    %33 = vector.broadcast %cst_37 : f32 to vector<8x648xf32>
    %34 = arith.maximumf %32, %33 : vector<8x648xf32>
    %c0_38 = arith.constant 0 : index
    %c0_39 = arith.constant 0 : index
    %35 = vector.load %arg8[%c0_38, %c0_39] : memref<32x667xf32, #tpu.memory_space<vmem>>, vector<8x648xf32>
    tpu.vector_store %arg8[%c0_38, %c0_39], %34 {strides = array<i32>} : memref<32x667xf32, #tpu.memory_space<vmem>>, vector<8x648xf32>,
    %c0_40 = arith.constant 0 : index
    %c0_41 = arith.constant 0 : index
    %36 = vector.load %arg8[%c0_40, %c0_41] : memref<32x667xf32, #tpu.memory_space<vmem>>, vector<8x648xf32>
    %c0_42 = arith.constant 0 : index
    %c1_43 = arith.constant 1 : index
    %37 = vector.load %arg8[%c0_42, %c1_43] : memref<32x667xf32, #tpu.memory_space<vmem>>, vector<8x648xf32>
    %38 = arith.maximumf %36, %37 : vector<8x648xf32>
    %c0_44 = arith.constant 0 : index
    %c18_45 = arith.constant 18 : index
    %39 = vector.load %arg8[%c0_44, %c18_45] : memref<32x667xf32, #tpu.memory_space<vmem>>, vector<8x648xf32>
    %c0_46 = arith.constant 0 : index
    %c19_47 = arith.constant 19 : index
    %40 = vector.load %arg8[%c0_46, %c19_47] : memref<32x667xf32, #tpu.memory_space<vmem>>, vector<8x648xf32>
    %41 = arith.maximumf %39, %40 : vector<8x648xf32>
    %42 = arith.maximumf %38, %41 : vector<8x648xf32>
    %c0_48 = arith.constant 0 : index
    %c0_49 = arith.constant 0 : index
    %43 = vector.load %arg8[%c0_48, %c0_49] : memref<32x667xf32, #tpu.memory_space<vmem>>, vector<8x648xf32>
    tpu.vector_store %arg8[%c0_48, %c0_49], %42 {strides = array<i32>} : memref<32x667xf32, #tpu.memory_space<vmem>>, vector<8x648xf32>,
    %c0_50 = arith.constant 0 : index
    %c8_51 = arith.constant 8 : index
    %44 = vector.load %arg2[%c0_50, %c8_51] : memref<32x128xf32, #tpu.memory_space<vmem>>, vector<16x8xf32>
    %c0_52 = arith.constant 0 : index
    %c19_53 = arith.constant 19 : index
    %45 = vector.load %arg8[%c0_52, %c19_53] : memref<32x667xf32, #tpu.memory_space<vmem>>, vector<8x16xf32>
    %cst_54 = arith.constant dense<0.000000e+00> : vector<8x8xf32>
    %46 = tpu.matmul %45, %44, %cst_54 {dimension_numbers = #tpu.dot_dimension_numbers<[1], [0], [0], [1], [0, 0, 1, 1], [], []>} : vector<8x16xf32>, vector<16x8xf32>, vector<8x8xf32> -> vector<8x8xf32>
    %c0_55 = arith.constant 0 : index
    %c22 = arith.constant 22 : index
    %47 = vector.load %arg9[%c0_55, %c22] : memref<8x222xf32, #tpu.memory_space<vmem>>, vector<8x8xf32>
    tpu.vector_store %arg9[%c0_55, %c22], %46 {strides = array<i32>} : memref<8x222xf32, #tpu.memory_space<vmem>>, vector<8x8xf32>,
    %c0_56 = arith.constant 0 : index
    %c55 = arith.constant 55 : index
    %48 = vector.load %arg8[%c0_56, %c55] : memref<32x667xf32, #tpu.memory_space<vmem>>, vector<8x16xf32>
    %cst_57 = arith.constant dense<0.000000e+00> : vector<8x8xf32>
    %49 = tpu.matmul %48, %44, %cst_57 {dimension_numbers = #tpu.dot_dimension_numbers<[1], [0], [0], [1], [0, 0, 1, 1], [], []>} : vector<8x16xf32>, vector<16x8xf32>, vector<8x8xf32> -> vector<8x8xf32>
    %c0_58 = arith.constant 0 : index
    %c32_59 = arith.constant 32 : index
    %50 = vector.load %arg9[%c0_58, %c32_59] : memref<8x222xf32, #tpu.memory_space<vmem>>, vector<8x8xf32>
    tpu.vector_store %arg9[%c0_58, %c32_59], %49 {strides = array<i32>} : memref<8x222xf32, #tpu.memory_space<vmem>>, vector<8x8xf32>,
    %c0_60 = arith.constant 0 : index
    %c91 = arith.constant 91 : index
    %51 = vector.load %arg8[%c0_60, %c91] : memref<32x667xf32, #tpu.memory_space<vmem>>, vector<8x16xf32>
    %cst_61 = arith.constant dense<0.000000e+00> : vector<8x8xf32>
    %52 = tpu.matmul %51, %44, %cst_61 {dimension_numbers = #tpu.dot_dimension_numbers<[1], [0], [0], [1], [0, 0, 1, 1], [], []>} : vector<8x16xf32>, vector<16x8xf32>, vector<8x8xf32> -> vector<8x8xf32>
    %c0_62 = arith.constant 0 : index
    %c42 = arith.constant 42 : index
    %53 = vector.load %arg9[%c0_62, %c42] : memref<8x222xf32, #tpu.memory_space<vmem>>, vector<8x8xf32>
    tpu.vector_store %arg9[%c0_62, %c42], %52 {strides = array<i32>} : memref<8x222xf32, #tpu.memory_space<vmem>>, vector<8x8xf32>,
    %c0_63 = arith.constant 0 : index
    %c127 = arith.constant 127 : index
    %54 = vector.load %arg8[%c0_63, %c127] : memref<32x667xf32, #tpu.memory_space<vmem>>, vector<8x16xf32>
    %cst_64 = arith.constant dense<0.000000e+00> : vector<8x8xf32>
    %55 = tpu.matmul %54, %44, %cst_64 {dimension_numbers = #tpu.dot_dimension_numbers<[1], [0], [0], [1], [0, 0, 1, 1], [], []>} : vector<8x16xf32>, vector<16x8xf32>, vector<8x8xf32> -> vector<8x8xf32>
    %c0_65 = arith.constant 0 : index
    %c52 = arith.constant 52 : index
    %56 = vector.load %arg9[%c0_65, %c52] : memref<8x222xf32, #tpu.memory_space<vmem>>, vector<8x8xf32>
    tpu.vector_store %arg9[%c0_65, %c52], %55 {strides = array<i32>} : memref<8x222xf32, #tpu.memory_space<vmem>>, vector<8x8xf32>,
    %c0_66 = arith.constant 0 : index
    %c163 = arith.constant 163 : index
    %57 = vector.load %arg8[%c0_66, %c163] : memref<32x667xf32, #tpu.memory_space<vmem>>, vector<8x16xf32>
    %cst_67 = arith.constant dense<0.000000e+00> : vector<8x8xf32>
    %58 = tpu.matmul %57, %44, %cst_67 {dimension_numbers = #tpu.dot_dimension_numbers<[1], [0], [0], [1], [0, 0, 1, 1], [], []>} : vector<8x16xf32>, vector<16x8xf32>, vector<8x8xf32> -> vector<8x8xf32>
    %c0_68 = arith.constant 0 : index
    %c62 = arith.constant 62 : index
    %59 = vector.load %arg9[%c0_68, %c62] : memref<8x222xf32, #tpu.memory_space<vmem>>, vector<8x8xf32>
    tpu.vector_store %arg9[%c0_68, %c62], %58 {strides = array<i32>} : memref<8x222xf32, #tpu.memory_space<vmem>>, vector<8x8xf32>,
    %c0_69 = arith.constant 0 : index
    %c199 = arith.constant 199 : index
    %60 = vector.load %arg8[%c0_69, %c199] : memref<32x667xf32, #tpu.memory_space<vmem>>, vector<8x16xf32>
    %cst_70 = arith.constant dense<0.000000e+00> : vector<8x8xf32>
    %61 = tpu.matmul %60, %44, %cst_70 {dimension_numbers = #tpu.dot_dimension_numbers<[1], [0], [0], [1], [0, 0, 1, 1], [], []>} : vector<8x16xf32>, vector<16x8xf32>, vector<8x8xf32> -> vector<8x8xf32>
    %c0_71 = arith.constant 0 : index
    %c72 = arith.constant 72 : index
    %62 = vector.load %arg9[%c0_71, %c72] : memref<8x222xf32, #tpu.memory_space<vmem>>, vector<8x8xf32>
    tpu.vector_store %arg9[%c0_71, %c72], %61 {strides = array<i32>} : memref<8x222xf32, #tpu.memory_space<vmem>>, vector<8x8xf32>,
    %c0_72 = arith.constant 0 : index
    %c235 = arith.constant 235 : index
    %63 = vector.load %arg8[%c0_72, %c235] : memref<32x667xf32, #tpu.memory_space<vmem>>, vector<8x16xf32>
    %cst_73 = arith.constant dense<0.000000e+00> : vector<8x8xf32>
    %64 = tpu.matmul %63, %44, %cst_73 {dimension_numbers = #tpu.dot_dimension_numbers<[1], [0], [0], [1], [0, 0, 1, 1], [], []>} : vector<8x16xf32>, vector<16x8xf32>, vector<8x8xf32> -> vector<8x8xf32>
    %c0_74 = arith.constant 0 : index
    %c82 = arith.constant 82 : index
    %65 = vector.load %arg9[%c0_74, %c82] : memref<8x222xf32, #tpu.memory_space<vmem>>, vector<8x8xf32>
    tpu.vector_store %arg9[%c0_74, %c82], %64 {strides = array<i32>} : memref<8x222xf32, #tpu.memory_space<vmem>>, vector<8x8xf32>,
    %c0_75 = arith.constant 0 : index
    %c271 = arith.constant 271 : index
    %66 = vector.load %arg8[%c0_75, %c271] : memref<32x667xf32, #tpu.memory_space<vmem>>, vector<8x16xf32>
    %cst_76 = arith.constant dense<0.000000e+00> : vector<8x8xf32>
    %67 = tpu.matmul %66, %44, %cst_76 {dimension_numbers = #tpu.dot_dimension_numbers<[1], [0], [0], [1], [0, 0, 1, 1], [], []>} : vector<8x16xf32>, vector<16x8xf32>, vector<8x8xf32> -> vector<8x8xf32>
    %c0_77 = arith.constant 0 : index
    %c92 = arith.constant 92 : index
    %68 = vector.load %arg9[%c0_77, %c92] : memref<8x222xf32, #tpu.memory_space<vmem>>, vector<8x8xf32>
    tpu.vector_store %arg9[%c0_77, %c92], %67 {strides = array<i32>} : memref<8x222xf32, #tpu.memory_space<vmem>>, vector<8x8xf32>,
    %c0_78 = arith.constant 0 : index
    %c343 = arith.constant 343 : index
    %69 = vector.load %arg8[%c0_78, %c343] : memref<32x667xf32, #tpu.memory_space<vmem>>, vector<8x16xf32>
    %cst_79 = arith.constant dense<0.000000e+00> : vector<8x8xf32>
    %70 = tpu.matmul %69, %44, %cst_79 {dimension_numbers = #tpu.dot_dimension_numbers<[1], [0], [0], [1], [0, 0, 1, 1], [], []>} : vector<8x16xf32>, vector<16x8xf32>, vector<8x8xf32> -> vector<8x8xf32>
    %c0_80 = arith.constant 0 : index
    %c122 = arith.constant 122 : index
    %71 = vector.load %arg9[%c0_80, %c122] : memref<8x222xf32, #tpu.memory_space<vmem>>, vector<8x8xf32>
    tpu.vector_store %arg9[%c0_80, %c122], %70 {strides = array<i32>} : memref<8x222xf32, #tpu.memory_space<vmem>>, vector<8x8xf32>,
    %c0_81 = arith.constant 0 : index
    %c379 = arith.constant 379 : index
    %72 = vector.load %arg8[%c0_81, %c379] : memref<32x667xf32, #tpu.memory_space<vmem>>, vector<8x16xf32>
    %cst_82 = arith.constant dense<0.000000e+00> : vector<8x8xf32>
    %73 = tpu.matmul %72, %44, %cst_82 {dimension_numbers = #tpu.dot_dimension_numbers<[1], [0], [0], [1], [0, 0, 1, 1], [], []>} : vector<8x16xf32>, vector<16x8xf32>, vector<8x8xf32> -> vector<8x8xf32>
    %c0_83 = arith.constant 0 : index
    %c132 = arith.constant 132 : index
    %74 = vector.load %arg9[%c0_83, %c132] : memref<8x222xf32, #tpu.memory_space<vmem>>, vector<8x8xf32>
    tpu.vector_store %arg9[%c0_83, %c132], %73 {strides = array<i32>} : memref<8x222xf32, #tpu.memory_space<vmem>>, vector<8x8xf32>,
    %c0_84 = arith.constant 0 : index
    %c415 = arith.constant 415 : index
    %75 = vector.load %arg8[%c0_84, %c415] : memref<32x667xf32, #tpu.memory_space<vmem>>, vector<8x16xf32>
    %cst_85 = arith.constant dense<0.000000e+00> : vector<8x8xf32>
    %76 = tpu.matmul %75, %44, %cst_85 {dimension_numbers = #tpu.dot_dimension_numbers<[1], [0], [0], [1], [0, 0, 1, 1], [], []>} : vector<8x16xf32>, vector<16x8xf32>, vector<8x8xf32> -> vector<8x8xf32>
    %c0_86 = arith.constant 0 : index
    %c142 = arith.constant 142 : index
    %77 = vector.load %arg9[%c0_86, %c142] : memref<8x222xf32, #tpu.memory_space<vmem>>, vector<8x8xf32>
    tpu.vector_store %arg9[%c0_86, %c142], %76 {strides = array<i32>} : memref<8x222xf32, #tpu.memory_space<vmem>>, vector<8x8xf32>,
    %c0_87 = arith.constant 0 : index
    %c451 = arith.constant 451 : index
    %78 = vector.load %arg8[%c0_87, %c451] : memref<32x667xf32, #tpu.memory_space<vmem>>, vector<8x16xf32>
    %cst_88 = arith.constant dense<0.000000e+00> : vector<8x8xf32>
    %79 = tpu.matmul %78, %44, %cst_88 {dimension_numbers = #tpu.dot_dimension_numbers<[1], [0], [0], [1], [0, 0, 1, 1], [], []>} : vector<8x16xf32>, vector<16x8xf32>, vector<8x8xf32> -> vector<8x8xf32>
    %c0_89 = arith.constant 0 : index
    %c152 = arith.constant 152 : index
    %80 = vector.load %arg9[%c0_89, %c152] : memref<8x222xf32, #tpu.memory_space<vmem>>, vector<8x8xf32>
    tpu.vector_store %arg9[%c0_89, %c152], %79 {strides = array<i32>} : memref<8x222xf32, #tpu.memory_space<vmem>>, vector<8x8xf32>,
    %c0_90 = arith.constant 0 : index
    %c487 = arith.constant 487 : index
    %81 = vector.load %arg8[%c0_90, %c487] : memref<32x667xf32, #tpu.memory_space<vmem>>, vector<8x16xf32>
    %cst_91 = arith.constant dense<0.000000e+00> : vector<8x8xf32>
    %82 = tpu.matmul %81, %44, %cst_91 {dimension_numbers = #tpu.dot_dimension_numbers<[1], [0], [0], [1], [0, 0, 1, 1], [], []>} : vector<8x16xf32>, vector<16x8xf32>, vector<8x8xf32> -> vector<8x8xf32>
    %c0_92 = arith.constant 0 : index
    %c162 = arith.constant 162 : index
    %83 = vector.load %arg9[%c0_92, %c162] : memref<8x222xf32, #tpu.memory_space<vmem>>, vector<8x8xf32>
    tpu.vector_store %arg9[%c0_92, %c162], %82 {strides = array<i32>} : memref<8x222xf32, #tpu.memory_space<vmem>>, vector<8x8xf32>,
    %c0_93 = arith.constant 0 : index
    %c523 = arith.constant 523 : index
    %84 = vector.load %arg8[%c0_93, %c523] : memref<32x667xf32, #tpu.memory_space<vmem>>, vector<8x16xf32>
    %cst_94 = arith.constant dense<0.000000e+00> : vector<8x8xf32>
    %85 = tpu.matmul %84, %44, %cst_94 {dimension_numbers = #tpu.dot_dimension_numbers<[1], [0], [0], [1], [0, 0, 1, 1], [], []>} : vector<8x16xf32>, vector<16x8xf32>, vector<8x8xf32> -> vector<8x8xf32>
    %c0_95 = arith.constant 0 : index
    %c172 = arith.constant 172 : index
    %86 = vector.load %arg9[%c0_95, %c172] : memref<8x222xf32, #tpu.memory_space<vmem>>, vector<8x8xf32>
    tpu.vector_store %arg9[%c0_95, %c172], %85 {strides = array<i32>} : memref<8x222xf32, #tpu.memory_space<vmem>>, vector<8x8xf32>,
    %c0_96 = arith.constant 0 : index
    %c559 = arith.constant 559 : index
    %87 = vector.load %arg8[%c0_96, %c559] : memref<32x667xf32, #tpu.memory_space<vmem>>, vector<8x16xf32>
    %cst_97 = arith.constant dense<0.000000e+00> : vector<8x8xf32>
    %88 = tpu.matmul %87, %44, %cst_97 {dimension_numbers = #tpu.dot_dimension_numbers<[1], [0], [0], [1], [0, 0, 1, 1], [], []>} : vector<8x16xf32>, vector<16x8xf32>, vector<8x8xf32> -> vector<8x8xf32>
    %c0_98 = arith.constant 0 : index
    %c182 = arith.constant 182 : index
    %89 = vector.load %arg9[%c0_98, %c182] : memref<8x222xf32, #tpu.memory_space<vmem>>, vector<8x8xf32>
    tpu.vector_store %arg9[%c0_98, %c182], %88 {strides = array<i32>} : memref<8x222xf32, #tpu.memory_space<vmem>>, vector<8x8xf32>,
    %c0_99 = arith.constant 0 : index
    %c595 = arith.constant 595 : index
    %90 = vector.load %arg8[%c0_99, %c595] : memref<32x667xf32, #tpu.memory_space<vmem>>, vector<8x16xf32>
    %cst_100 = arith.constant dense<0.000000e+00> : vector<8x8xf32>
    %91 = tpu.matmul %90, %44, %cst_100 {dimension_numbers = #tpu.dot_dimension_numbers<[1], [0], [0], [1], [0, 0, 1, 1], [], []>} : vector<8x16xf32>, vector<16x8xf32>, vector<8x8xf32> -> vector<8x8xf32>
    %c0_101 = arith.constant 0 : index
    %c192 = arith.constant 192 : index
    %92 = vector.load %arg9[%c0_101, %c192] : memref<8x222xf32, #tpu.memory_space<vmem>>, vector<8x8xf32>
    tpu.vector_store %arg9[%c0_101, %c192], %91 {strides = array<i32>} : memref<8x222xf32, #tpu.memory_space<vmem>>, vector<8x8xf32>,
    %c0_102 = arith.constant 0 : index
    %c0_103 = arith.constant 0 : index
    %93 = vector.load %arg9[%c0_102, %c0_103] : memref<8x222xf32, #tpu.memory_space<vmem>>, vector<8x200xf32>
    %c0_104 = arith.constant 0 : index
    %c0_105 = arith.constant 0 : index
    %94 = vector.load %arg5[%c0_104, %c0_105] : memref<72x200xf32, #tpu.memory_space<vmem>>, vector<8x200xf32>
    tpu.vector_store %arg5[%c0_104, %c0_105], %93 {strides = array<i32>} : memref<72x200xf32, #tpu.memory_space<vmem>>, vector<8x200xf32>,
    %c0_106 = arith.constant 0 : index
    %c1_107 = arith.constant 1 : index
    %95 = vector.load %arg9[%c0_106, %c1_107] : memref<8x222xf32, #tpu.memory_space<vmem>>, vector<8x200xf32>
    %c8_108 = arith.constant 8 : index
    %c0_109 = arith.constant 0 : index
    %96 = vector.load %arg5[%c8_108, %c0_109] : memref<72x200xf32, #tpu.memory_space<vmem>>, vector<8x200xf32>
    tpu.vector_store %arg5[%c8_108, %c0_109], %95 {strides = array<i32>} : memref<72x200xf32, #tpu.memory_space<vmem>>, vector<8x200xf32>,
    %c0_110 = arith.constant 0 : index
    %c2_111 = arith.constant 2 : index
    %97 = vector.load %arg9[%c0_110, %c2_111] : memref<8x222xf32, #tpu.memory_space<vmem>>, vector<8x200xf32>
    %c16_112 = arith.constant 16 : index
    %c0_113 = arith.constant 0 : index
    %98 = vector.load %arg5[%c16_112, %c0_113] : memref<72x200xf32, #tpu.memory_space<vmem>>, vector<8x200xf32>
    tpu.vector_store %arg5[%c16_112, %c0_113], %97 {strides = array<i32>} : memref<72x200xf32, #tpu.memory_space<vmem>>, vector<8x200xf32>,
    %c0_114 = arith.constant 0 : index
    %c10 = arith.constant 10 : index
    %99 = vector.load %arg9[%c0_114, %c10] : memref<8x222xf32, #tpu.memory_space<vmem>>, vector<8x200xf32>
    %c24_115 = arith.constant 24 : index
    %c0_116 = arith.constant 0 : index
    %100 = vector.load %arg5[%c24_115, %c0_116] : memref<72x200xf32, #tpu.memory_space<vmem>>, vector<8x200xf32>
    tpu.vector_store %arg5[%c24_115, %c0_116], %99 {strides = array<i32>} : memref<72x200xf32, #tpu.memory_space<vmem>>, vector<8x200xf32>,
    %c0_117 = arith.constant 0 : index
    %c11 = arith.constant 11 : index
    %101 = vector.load %arg9[%c0_117, %c11] : memref<8x222xf32, #tpu.memory_space<vmem>>, vector<8x200xf32>
    %c32_118 = arith.constant 32 : index
    %c0_119 = arith.constant 0 : index
    %102 = vector.load %arg5[%c32_118, %c0_119] : memref<72x200xf32, #tpu.memory_space<vmem>>, vector<8x200xf32>
    tpu.vector_store %arg5[%c32_118, %c0_119], %101 {strides = array<i32>} : memref<72x200xf32, #tpu.memory_space<vmem>>, vector<8x200xf32>,
    %c0_120 = arith.constant 0 : index
    %c12_121 = arith.constant 12 : index
    %103 = vector.load %arg9[%c0_120, %c12_121] : memref<8x222xf32, #tpu.memory_space<vmem>>, vector<8x200xf32>
    %c40 = arith.constant 40 : index
    %c0_122 = arith.constant 0 : index
    %104 = vector.load %arg5[%c40, %c0_122] : memref<72x200xf32, #tpu.memory_space<vmem>>, vector<8x200xf32>
    tpu.vector_store %arg5[%c40, %c0_122], %103 {strides = array<i32>} : memref<72x200xf32, #tpu.memory_space<vmem>>, vector<8x200xf32>,
    %c0_123 = arith.constant 0 : index
    %c20_124 = arith.constant 20 : index
    %105 = vector.load %arg9[%c0_123, %c20_124] : memref<8x222xf32, #tpu.memory_space<vmem>>, vector<8x200xf32>
    %c48 = arith.constant 48 : index
    %c0_125 = arith.constant 0 : index
    %106 = vector.load %arg5[%c48, %c0_125] : memref<72x200xf32, #tpu.memory_space<vmem>>, vector<8x200xf32>
    tpu.vector_store %arg5[%c48, %c0_125], %105 {strides = array<i32>} : memref<72x200xf32, #tpu.memory_space<vmem>>, vector<8x200xf32>,
    %c0_126 = arith.constant 0 : index
    %c21 = arith.constant 21 : index
    %107 = vector.load %arg9[%c0_126, %c21] : memref<8x222xf32, #tpu.memory_space<vmem>>, vector<8x200xf32>
    %c56 = arith.constant 56 : index
    %c0_127 = arith.constant 0 : index
    %108 = vector.load %arg5[%c56, %c0_127] : memref<72x200xf32, #tpu.memory_space<vmem>>, vector<8x200xf32>
    tpu.vector_store %arg5[%c56, %c0_127], %107 {strides = array<i32>} : memref<72x200xf32, #tpu.memory_space<vmem>>, vector<8x200xf32>,
    %c0_128 = arith.constant 0 : index
    %c22_129 = arith.constant 22 : index
    %109 = vector.load %arg9[%c0_128, %c22_129] : memref<8x222xf32, #tpu.memory_space<vmem>>, vector<8x200xf32>
    %c64 = arith.constant 64 : index
    %c0_130 = arith.constant 0 : index
    %110 = vector.load %arg5[%c64, %c0_130] : memref<72x200xf32, #tpu.memory_space<vmem>>, vector<8x200xf32>
    tpu.vector_store %arg5[%c64, %c0_130], %109 {strides = array<i32>} : memref<72x200xf32, #tpu.memory_space<vmem>>, vector<8x200xf32>,
    %c0_131 = arith.constant 0 : index
    %c40_132 = arith.constant 40 : index
    %111 = vector.load %arg1[%c0_131, %c40_132] : memref<32x768xbf16, #tpu.memory_space<vmem>>, vector<16x72xbf16>
    %c0_133 = arith.constant 0 : index
    %c0_134 = arith.constant 0 : index
    %112 = vector.load %arg5[%c0_133, %c0_134] : memref<72x200xf32, #tpu.memory_space<vmem>>, vector<72x200xf32>
    %113 = arith.truncf %112 : vector<72x200xf32> to vector<72x200xbf16>
    %cst_135 = arith.constant dense<0.000000e+00> : vector<16x200xf32>
    %114 = tpu.matmul %111, %113, %cst_135 {dimension_numbers = #tpu.dot_dimension_numbers<[1], [0], [0], [1], [0, 0, 1, 1], [], []>} : vector<16x72xbf16>, vector<72x200xbf16>, vector<16x200xf32> -> vector<16x200xf32>
    %c0_136 = arith.constant 0 : index
    %c1_137 = arith.constant 1 : index
    %115 = vector.load %arg2[%c0_136, %c1_137] : memref<32x128xf32, #tpu.memory_space<vmem>>, vector<16x1xf32>
    %116 = vector.broadcast %115 : vector<16x1xf32> to vector<16x200xf32>
    %117 = arith.addf %114, %116 : vector<16x200xf32>
    %cst_138 = arith.constant 0.000000e+00 : f32
    %118 = vector.broadcast %cst_138 : f32 to vector<16x200xf32>
    %119 = arith.maximumf %117, %118 : vector<16x200xf32>
    %c0_139 = arith.constant 0 : index
    %c0_140 = arith.constant 0 : index
    %120 = vector.load %arg8[%c0_139, %c0_140] : memref<32x667xf32, #tpu.memory_space<vmem>>, vector<16x200xf32>
    tpu.vector_store %arg8[%c0_139, %c0_140], %119 {strides = array<i32>} : memref<32x667xf32, #tpu.memory_space<vmem>>, vector<16x200xf32>,
    %c0_141 = arith.constant 0 : index
    %c0_142 = arith.constant 0 : index
    %121 = vector.load %arg8[%c0_141, %c0_142] : memref<32x667xf32, #tpu.memory_space<vmem>>, vector<16x200xf32>
    %c0_143 = arith.constant 0 : index
    %c1_144 = arith.constant 1 : index
    %122 = vector.load %arg8[%c0_143, %c1_144] : memref<32x667xf32, #tpu.memory_space<vmem>>, vector<16x200xf32>
    %123 = arith.maximumf %121, %122 : vector<16x200xf32>
    %c0_145 = arith.constant 0 : index
    %c10_146 = arith.constant 10 : index
    %124 = vector.load %arg8[%c0_145, %c10_146] : memref<32x667xf32, #tpu.memory_space<vmem>>, vector<16x200xf32>
    %c0_147 = arith.constant 0 : index
    %c11_148 = arith.constant 11 : index
    %125 = vector.load %arg8[%c0_147, %c11_148] : memref<32x667xf32, #tpu.memory_space<vmem>>, vector<16x200xf32>
    %126 = arith.maximumf %124, %125 : vector<16x200xf32>
    %127 = arith.maximumf %123, %126 : vector<16x200xf32>
    %c0_149 = arith.constant 0 : index
    %c0_150 = arith.constant 0 : index
    %128 = vector.load %arg8[%c0_149, %c0_150] : memref<32x667xf32, #tpu.memory_space<vmem>>, vector<16x200xf32>
    tpu.vector_store %arg8[%c0_149, %c0_150], %127 {strides = array<i32>} : memref<32x667xf32, #tpu.memory_space<vmem>>, vector<16x200xf32>,
    %c0_151 = arith.constant 0 : index
    %c8_152 = arith.constant 8 : index
    %129 = vector.load %arg2[%c0_151, %c8_152] : memref<32x128xf32, #tpu.memory_space<vmem>>, vector<8x4xf32>
    %c0_153 = arith.constant 0 : index
    %c11_154 = arith.constant 11 : index
    %130 = vector.load %arg8[%c0_153, %c11_154] : memref<32x667xf32, #tpu.memory_space<vmem>>, vector<16x8xf32>
    %cst_155 = arith.constant dense<0.000000e+00> : vector<16x4xf32>
    %131 = tpu.matmul %130, %129, %cst_155 {dimension_numbers = #tpu.dot_dimension_numbers<[1], [0], [0], [1], [0, 0, 1, 1], [], []>} : vector<16x8xf32>, vector<8x4xf32>, vector<16x4xf32> -> vector<16x4xf32>
    %c0_156 = arith.constant 0 : index
    %c14 = arith.constant 14 : index
    %132 = vector.load %arg10[%c0_156, %c14] : memref<16x86xf32, #tpu.memory_space<vmem>>, vector<16x4xf32>
    tpu.vector_store %arg10[%c0_156, %c14], %131 {strides = array<i32>} : memref<16x86xf32, #tpu.memory_space<vmem>>, vector<16x4xf32>,
    %c0_157 = arith.constant 0 : index
    %c31 = arith.constant 31 : index
    %133 = vector.load %arg8[%c0_157, %c31] : memref<32x667xf32, #tpu.memory_space<vmem>>, vector<16x8xf32>
    %cst_158 = arith.constant dense<0.000000e+00> : vector<16x4xf32>
    %134 = tpu.matmul %133, %129, %cst_158 {dimension_numbers = #tpu.dot_dimension_numbers<[1], [0], [0], [1], [0, 0, 1, 1], [], []>} : vector<16x8xf32>, vector<8x4xf32>, vector<16x4xf32> -> vector<16x4xf32>
    %c0_159 = arith.constant 0 : index
    %c20_160 = arith.constant 20 : index
    %135 = vector.load %arg10[%c0_159, %c20_160] : memref<16x86xf32, #tpu.memory_space<vmem>>, vector<16x4xf32>
    tpu.vector_store %arg10[%c0_159, %c20_160], %134 {strides = array<i32>} : memref<16x86xf32, #tpu.memory_space<vmem>>, vector<16x4xf32>,
    %c0_161 = arith.constant 0 : index
    %c51 = arith.constant 51 : index
    %136 = vector.load %arg8[%c0_161, %c51] : memref<32x667xf32, #tpu.memory_space<vmem>>, vector<16x8xf32>
    %cst_162 = arith.constant dense<0.000000e+00> : vector<16x4xf32>
    %137 = tpu.matmul %136, %129, %cst_162 {dimension_numbers = #tpu.dot_dimension_numbers<[1], [0], [0], [1], [0, 0, 1, 1], [], []>} : vector<16x8xf32>, vector<8x4xf32>, vector<16x4xf32> -> vector<16x4xf32>
    %c0_163 = arith.constant 0 : index
    %c26 = arith.constant 26 : index
    %138 = vector.load %arg10[%c0_163, %c26] : memref<16x86xf32, #tpu.memory_space<vmem>>, vector<16x4xf32>
    tpu.vector_store %arg10[%c0_163, %c26], %137 {strides = array<i32>} : memref<16x86xf32, #tpu.memory_space<vmem>>, vector<16x4xf32>,
    %c0_164 = arith.constant 0 : index
    %c71 = arith.constant 71 : index
    %139 = vector.load %arg8[%c0_164, %c71] : memref<32x667xf32, #tpu.memory_space<vmem>>, vector<16x8xf32>
    %cst_165 = arith.constant dense<0.000000e+00> : vector<16x4xf32>
    %140 = tpu.matmul %139, %129, %cst_165 {dimension_numbers = #tpu.dot_dimension_numbers<[1], [0], [0], [1], [0, 0, 1, 1], [], []>} : vector<16x8xf32>, vector<8x4xf32>, vector<16x4xf32> -> vector<16x4xf32>
    %c0_166 = arith.constant 0 : index
    %c32_167 = arith.constant 32 : index
    %141 = vector.load %arg10[%c0_166, %c32_167] : memref<16x86xf32, #tpu.memory_space<vmem>>, vector<16x4xf32>
    tpu.vector_store %arg10[%c0_166, %c32_167], %140 {strides = array<i32>} : memref<16x86xf32, #tpu.memory_space<vmem>>, vector<16x4xf32>,
    %c0_168 = arith.constant 0 : index
    %c111 = arith.constant 111 : index
    %142 = vector.load %arg8[%c0_168, %c111] : memref<32x667xf32, #tpu.memory_space<vmem>>, vector<16x8xf32>
    %cst_169 = arith.constant dense<0.000000e+00> : vector<16x4xf32>
    %143 = tpu.matmul %142, %129, %cst_169 {dimension_numbers = #tpu.dot_dimension_numbers<[1], [0], [0], [1], [0, 0, 1, 1], [], []>} : vector<16x8xf32>, vector<8x4xf32>, vector<16x4xf32> -> vector<16x4xf32>
    %c0_170 = arith.constant 0 : index
    %c50 = arith.constant 50 : index
    %144 = vector.load %arg10[%c0_170, %c50] : memref<16x86xf32, #tpu.memory_space<vmem>>, vector<16x4xf32>
    tpu.vector_store %arg10[%c0_170, %c50], %143 {strides = array<i32>} : memref<16x86xf32, #tpu.memory_space<vmem>>, vector<16x4xf32>,
    %c0_171 = arith.constant 0 : index
    %c131 = arith.constant 131 : index
    %145 = vector.load %arg8[%c0_171, %c131] : memref<32x667xf32, #tpu.memory_space<vmem>>, vector<16x8xf32>
    %cst_172 = arith.constant dense<0.000000e+00> : vector<16x4xf32>
    %146 = tpu.matmul %145, %129, %cst_172 {dimension_numbers = #tpu.dot_dimension_numbers<[1], [0], [0], [1], [0, 0, 1, 1], [], []>} : vector<16x8xf32>, vector<8x4xf32>, vector<16x4xf32> -> vector<16x4xf32>
    %c0_173 = arith.constant 0 : index
    %c56_174 = arith.constant 56 : index
    %147 = vector.load %arg10[%c0_173, %c56_174] : memref<16x86xf32, #tpu.memory_space<vmem>>, vector<16x4xf32>
    tpu.vector_store %arg10[%c0_173, %c56_174], %146 {strides = array<i32>} : memref<16x86xf32, #tpu.memory_space<vmem>>, vector<16x4xf32>,
    %c0_175 = arith.constant 0 : index
    %c151 = arith.constant 151 : index
    %148 = vector.load %arg8[%c0_175, %c151] : memref<32x667xf32, #tpu.memory_space<vmem>>, vector<16x8xf32>
    %cst_176 = arith.constant dense<0.000000e+00> : vector<16x4xf32>
    %149 = tpu.matmul %148, %129, %cst_176 {dimension_numbers = #tpu.dot_dimension_numbers<[1], [0], [0], [1], [0, 0, 1, 1], [], []>} : vector<16x8xf32>, vector<8x4xf32>, vector<16x4xf32> -> vector<16x4xf32>
    %c0_177 = arith.constant 0 : index
    %c62_178 = arith.constant 62 : index
    %150 = vector.load %arg10[%c0_177, %c62_178] : memref<16x86xf32, #tpu.memory_space<vmem>>, vector<16x4xf32>
    tpu.vector_store %arg10[%c0_177, %c62_178], %149 {strides = array<i32>} : memref<16x86xf32, #tpu.memory_space<vmem>>, vector<16x4xf32>,
    %c0_179 = arith.constant 0 : index
    %c171 = arith.constant 171 : index
    %151 = vector.load %arg8[%c0_179, %c171] : memref<32x667xf32, #tpu.memory_space<vmem>>, vector<16x8xf32>
    %cst_180 = arith.constant dense<0.000000e+00> : vector<16x4xf32>
    %152 = tpu.matmul %151, %129, %cst_180 {dimension_numbers = #tpu.dot_dimension_numbers<[1], [0], [0], [1], [0, 0, 1, 1], [], []>} : vector<16x8xf32>, vector<8x4xf32>, vector<16x4xf32> -> vector<16x4xf32>
    %c0_181 = arith.constant 0 : index
    %c68 = arith.constant 68 : index
    %153 = vector.load %arg10[%c0_181, %c68] : memref<16x86xf32, #tpu.memory_space<vmem>>, vector<16x4xf32>
    tpu.vector_store %arg10[%c0_181, %c68], %152 {strides = array<i32>} : memref<16x86xf32, #tpu.memory_space<vmem>>, vector<16x4xf32>,
    %c0_182 = arith.constant 0 : index
    %c0_183 = arith.constant 0 : index
    %154 = vector.load %arg10[%c0_182, %c0_183] : memref<16x86xf32, #tpu.memory_space<vmem>>, vector<16x72xf32>
    %c0_184 = arith.constant 0 : index
    %c0_185 = arith.constant 0 : index
    %155 = vector.load %arg6[%c0_184, %c0_185] : memref<144x72xf32, #tpu.memory_space<vmem>>, vector<16x72xf32>
    tpu.vector_store %arg6[%c0_184, %c0_185], %154 {strides = array<i32>} : memref<144x72xf32, #tpu.memory_space<vmem>>, vector<16x72xf32>,
    %c0_186 = arith.constant 0 : index
    %c1_187 = arith.constant 1 : index
    %156 = vector.load %arg10[%c0_186, %c1_187] : memref<16x86xf32, #tpu.memory_space<vmem>>, vector<16x72xf32>
    %c16_188 = arith.constant 16 : index
    %c0_189 = arith.constant 0 : index
    %157 = vector.load %arg6[%c16_188, %c0_189] : memref<144x72xf32, #tpu.memory_space<vmem>>, vector<16x72xf32>
    tpu.vector_store %arg6[%c16_188, %c0_189], %156 {strides = array<i32>} : memref<144x72xf32, #tpu.memory_space<vmem>>, vector<16x72xf32>,
    %c0_190 = arith.constant 0 : index
    %c2_191 = arith.constant 2 : index
    %158 = vector.load %arg10[%c0_190, %c2_191] : memref<16x86xf32, #tpu.memory_space<vmem>>, vector<16x72xf32>
    %c32_192 = arith.constant 32 : index
    %c0_193 = arith.constant 0 : index
    %159 = vector.load %arg6[%c32_192, %c0_193] : memref<144x72xf32, #tpu.memory_space<vmem>>, vector<16x72xf32>
    tpu.vector_store %arg6[%c32_192, %c0_193], %158 {strides = array<i32>} : memref<144x72xf32, #tpu.memory_space<vmem>>, vector<16x72xf32>,
    %c0_194 = arith.constant 0 : index
    %c6 = arith.constant 6 : index
    %160 = vector.load %arg10[%c0_194, %c6] : memref<16x86xf32, #tpu.memory_space<vmem>>, vector<16x72xf32>
    %c48_195 = arith.constant 48 : index
    %c0_196 = arith.constant 0 : index
    %161 = vector.load %arg6[%c48_195, %c0_196] : memref<144x72xf32, #tpu.memory_space<vmem>>, vector<16x72xf32>
    tpu.vector_store %arg6[%c48_195, %c0_196], %160 {strides = array<i32>} : memref<144x72xf32, #tpu.memory_space<vmem>>, vector<16x72xf32>,
    %c0_197 = arith.constant 0 : index
    %c7 = arith.constant 7 : index
    %162 = vector.load %arg10[%c0_197, %c7] : memref<16x86xf32, #tpu.memory_space<vmem>>, vector<16x72xf32>
    %c64_198 = arith.constant 64 : index
    %c0_199 = arith.constant 0 : index
    %163 = vector.load %arg6[%c64_198, %c0_199] : memref<144x72xf32, #tpu.memory_space<vmem>>, vector<16x72xf32>
    tpu.vector_store %arg6[%c64_198, %c0_199], %162 {strides = array<i32>} : memref<144x72xf32, #tpu.memory_space<vmem>>, vector<16x72xf32>,
    %c0_200 = arith.constant 0 : index
    %c8_201 = arith.constant 8 : index
    %164 = vector.load %arg10[%c0_200, %c8_201] : memref<16x86xf32, #tpu.memory_space<vmem>>, vector<16x72xf32>
    %c80 = arith.constant 80 : index
    %c0_202 = arith.constant 0 : index
    %165 = vector.load %arg6[%c80, %c0_202] : memref<144x72xf32, #tpu.memory_space<vmem>>, vector<16x72xf32>
    tpu.vector_store %arg6[%c80, %c0_202], %164 {strides = array<i32>} : memref<144x72xf32, #tpu.memory_space<vmem>>, vector<16x72xf32>,
    %c0_203 = arith.constant 0 : index
    %c12_204 = arith.constant 12 : index
    %166 = vector.load %arg10[%c0_203, %c12_204] : memref<16x86xf32, #tpu.memory_space<vmem>>, vector<16x72xf32>
    %c96 = arith.constant 96 : index
    %c0_205 = arith.constant 0 : index
    %167 = vector.load %arg6[%c96, %c0_205] : memref<144x72xf32, #tpu.memory_space<vmem>>, vector<16x72xf32>
    tpu.vector_store %arg6[%c96, %c0_205], %166 {strides = array<i32>} : memref<144x72xf32, #tpu.memory_space<vmem>>, vector<16x72xf32>,
    %c0_206 = arith.constant 0 : index
    %c13 = arith.constant 13 : index
    %168 = vector.load %arg10[%c0_206, %c13] : memref<16x86xf32, #tpu.memory_space<vmem>>, vector<16x72xf32>
    %c112 = arith.constant 112 : index
    %c0_207 = arith.constant 0 : index
    %169 = vector.load %arg6[%c112, %c0_207] : memref<144x72xf32, #tpu.memory_space<vmem>>, vector<16x72xf32>
    tpu.vector_store %arg6[%c112, %c0_207], %168 {strides = array<i32>} : memref<144x72xf32, #tpu.memory_space<vmem>>, vector<16x72xf32>,
    %c0_208 = arith.constant 0 : index
    %c14_209 = arith.constant 14 : index
    %170 = vector.load %arg10[%c0_208, %c14_209] : memref<16x86xf32, #tpu.memory_space<vmem>>, vector<16x72xf32>
    %c128 = arith.constant 128 : index
    %c0_210 = arith.constant 0 : index
    %171 = vector.load %arg6[%c128, %c0_210] : memref<144x72xf32, #tpu.memory_space<vmem>>, vector<16x72xf32>
    tpu.vector_store %arg6[%c128, %c0_210], %170 {strides = array<i32>} : memref<144x72xf32, #tpu.memory_space<vmem>>, vector<16x72xf32>,
    %c0_211 = arith.constant 0 : index
    %c112_212 = arith.constant 112 : index
    %172 = vector.load %arg1[%c0_211, %c112_212] : memref<32x768xbf16, #tpu.memory_space<vmem>>, vector<32x144xbf16>
    %c0_213 = arith.constant 0 : index
    %c0_214 = arith.constant 0 : index
    %173 = vector.load %arg6[%c0_213, %c0_214] : memref<144x72xf32, #tpu.memory_space<vmem>>, vector<144x72xf32>
    %174 = arith.truncf %173 : vector<144x72xf32> to vector<144x72xbf16>
    %cst_215 = arith.constant dense<0.000000e+00> : vector<32x72xf32>
    %175 = tpu.matmul %172, %174, %cst_215 {dimension_numbers = #tpu.dot_dimension_numbers<[1], [0], [0], [1], [0, 0, 1, 1], [], []>} : vector<32x144xbf16>, vector<144x72xbf16>, vector<32x72xf32> -> vector<32x72xf32>
    %c0_216 = arith.constant 0 : index
    %c2_217 = arith.constant 2 : index
    %176 = vector.load %arg2[%c0_216, %c2_217] : memref<32x128xf32, #tpu.memory_space<vmem>>, vector<32x1xf32>
    %177 = vector.broadcast %176 : vector<32x1xf32> to vector<32x72xf32>
    %178 = arith.addf %175, %177 : vector<32x72xf32>
    %cst_218 = arith.constant 0.000000e+00 : f32
    %179 = vector.broadcast %cst_218 : f32 to vector<32x72xf32>
    %180 = arith.maximumf %178, %179 : vector<32x72xf32>
    %c0_219 = arith.constant 0 : index
    %c16_220 = arith.constant 16 : index
    %181 = vector.load %arg2[%c0_219, %c16_220] : memref<32x128xf32, #tpu.memory_space<vmem>>, vector<1x72xf32>
    %182 = vector.broadcast %181 : vector<1x72xf32> to vector<32x72xf32>
    %183 = arith.mulf %180, %182 : vector<32x72xf32>
    %c0_221 = arith.constant 0 : index
    %c7_222 = arith.constant 7 : index
    %184 = vector.load %arg11[%c0_221, %c7_222] : memref<32x86xf32, #tpu.memory_space<vmem>>, vector<32x72xf32>
    tpu.vector_store %arg11[%c0_221, %c7_222], %183 {strides = array<i32>} : memref<32x86xf32, #tpu.memory_space<vmem>>, vector<32x72xf32>,
    %c0_223 = arith.constant 0 : index
    %c0_224 = arith.constant 0 : index
    %185 = vector.load %arg11[%c0_223, %c0_224] : memref<32x86xf32, #tpu.memory_space<vmem>>, vector<32x72xf32>
    %c0_225 = arith.constant 0 : index
    %c0_226 = arith.constant 0 : index
    %186 = vector.load %arg7[%c0_225, %c0_226] : memref<288x72xf32, #tpu.memory_space<vmem>>, vector<32x72xf32>
    tpu.vector_store %arg7[%c0_225, %c0_226], %185 {strides = array<i32>} : memref<288x72xf32, #tpu.memory_space<vmem>>, vector<32x72xf32>,
    %c0_227 = arith.constant 0 : index
    %c1_228 = arith.constant 1 : index
    %187 = vector.load %arg11[%c0_227, %c1_228] : memref<32x86xf32, #tpu.memory_space<vmem>>, vector<32x72xf32>
    %c32_229 = arith.constant 32 : index
    %c0_230 = arith.constant 0 : index
    %188 = vector.load %arg7[%c32_229, %c0_230] : memref<288x72xf32, #tpu.memory_space<vmem>>, vector<32x72xf32>
    tpu.vector_store %arg7[%c32_229, %c0_230], %187 {strides = array<i32>} : memref<288x72xf32, #tpu.memory_space<vmem>>, vector<32x72xf32>,
    %c0_231 = arith.constant 0 : index
    %c2_232 = arith.constant 2 : index
    %189 = vector.load %arg11[%c0_231, %c2_232] : memref<32x86xf32, #tpu.memory_space<vmem>>, vector<32x72xf32>
    %c64_233 = arith.constant 64 : index
    %c0_234 = arith.constant 0 : index
    %190 = vector.load %arg7[%c64_233, %c0_234] : memref<288x72xf32, #tpu.memory_space<vmem>>, vector<32x72xf32>
    tpu.vector_store %arg7[%c64_233, %c0_234], %189 {strides = array<i32>} : memref<288x72xf32, #tpu.memory_space<vmem>>, vector<32x72xf32>,
    %c0_235 = arith.constant 0 : index
    %c6_236 = arith.constant 6 : index
    %191 = vector.load %arg11[%c0_235, %c6_236] : memref<32x86xf32, #tpu.memory_space<vmem>>, vector<32x72xf32>
    %c96_237 = arith.constant 96 : index
    %c0_238 = arith.constant 0 : index
    %192 = vector.load %arg7[%c96_237, %c0_238] : memref<288x72xf32, #tpu.memory_space<vmem>>, vector<32x72xf32>
    tpu.vector_store %arg7[%c96_237, %c0_238], %191 {strides = array<i32>} : memref<288x72xf32, #tpu.memory_space<vmem>>, vector<32x72xf32>,
    %c0_239 = arith.constant 0 : index
    %c7_240 = arith.constant 7 : index
    %193 = vector.load %arg11[%c0_239, %c7_240] : memref<32x86xf32, #tpu.memory_space<vmem>>, vector<32x72xf32>
    %c128_241 = arith.constant 128 : index
    %c0_242 = arith.constant 0 : index
    %194 = vector.load %arg7[%c128_241, %c0_242] : memref<288x72xf32, #tpu.memory_space<vmem>>, vector<32x72xf32>
    tpu.vector_store %arg7[%c128_241, %c0_242], %193 {strides = array<i32>} : memref<288x72xf32, #tpu.memory_space<vmem>>, vector<32x72xf32>,
    %c0_243 = arith.constant 0 : index
    %c8_244 = arith.constant 8 : index
    %195 = vector.load %arg11[%c0_243, %c8_244] : memref<32x86xf32, #tpu.memory_space<vmem>>, vector<32x72xf32>
    %c160 = arith.constant 160 : index
    %c0_245 = arith.constant 0 : index
    %196 = vector.load %arg7[%c160, %c0_245] : memref<288x72xf32, #tpu.memory_space<vmem>>, vector<32x72xf32>
    tpu.vector_store %arg7[%c160, %c0_245], %195 {strides = array<i32>} : memref<288x72xf32, #tpu.memory_space<vmem>>, vector<32x72xf32>,
    %c0_246 = arith.constant 0 : index
    %c12_247 = arith.constant 12 : index
    %197 = vector.load %arg11[%c0_246, %c12_247] : memref<32x86xf32, #tpu.memory_space<vmem>>, vector<32x72xf32>
    %c192_248 = arith.constant 192 : index
    %c0_249 = arith.constant 0 : index
    %198 = vector.load %arg7[%c192_248, %c0_249] : memref<288x72xf32, #tpu.memory_space<vmem>>, vector<32x72xf32>
    tpu.vector_store %arg7[%c192_248, %c0_249], %197 {strides = array<i32>} : memref<288x72xf32, #tpu.memory_space<vmem>>, vector<32x72xf32>,
    %c0_250 = arith.constant 0 : index
    %c13_251 = arith.constant 13 : index
    %199 = vector.load %arg11[%c0_250, %c13_251] : memref<32x86xf32, #tpu.memory_space<vmem>>, vector<32x72xf32>
    %c224 = arith.constant 224 : index
    %c0_252 = arith.constant 0 : index
    %200 = vector.load %arg7[%c224, %c0_252] : memref<288x72xf32, #tpu.memory_space<vmem>>, vector<32x72xf32>
    tpu.vector_store %arg7[%c224, %c0_252], %199 {strides = array<i32>} : memref<288x72xf32, #tpu.memory_space<vmem>>, vector<32x72xf32>,
    %c0_253 = arith.constant 0 : index
    %c14_254 = arith.constant 14 : index
    %201 = vector.load %arg11[%c0_253, %c14_254] : memref<32x86xf32, #tpu.memory_space<vmem>>, vector<32x72xf32>
    %c256 = arith.constant 256 : index
    %c0_255 = arith.constant 0 : index
    %202 = vector.load %arg7[%c256, %c0_255] : memref<288x72xf32, #tpu.memory_space<vmem>>, vector<32x72xf32>
    tpu.vector_store %arg7[%c256, %c0_255], %201 {strides = array<i32>} : memref<288x72xf32, #tpu.memory_space<vmem>>, vector<32x72xf32>,
    %c0_256 = arith.constant 0 : index
    %c256_257 = arith.constant 256 : index
    %203 = vector.load %arg1[%c0_256, %c256_257] : memref<32x768xbf16, #tpu.memory_space<vmem>>, vector<32x288xbf16>
    %c0_258 = arith.constant 0 : index
    %c0_259 = arith.constant 0 : index
    %204 = vector.load %arg7[%c0_258, %c0_259] : memref<288x72xf32, #tpu.memory_space<vmem>>, vector<288x72xf32>
    %205 = arith.truncf %204 : vector<288x72xf32> to vector<288x72xbf16>
    %cst_260 = arith.constant dense<0.000000e+00> : vector<32x72xf32>
    %206 = tpu.matmul %203, %205, %cst_260 {dimension_numbers = #tpu.dot_dimension_numbers<[1], [0], [0], [1], [0, 0, 1, 1], [], []>} : vector<32x288xbf16>, vector<288x72xbf16>, vector<32x72xf32> -> vector<32x72xf32>
    %c0_261 = arith.constant 0 : index
    %c3 = arith.constant 3 : index
    %207 = vector.load %arg2[%c0_261, %c3] : memref<32x128xf32, #tpu.memory_space<vmem>>, vector<32x1xf32>
    %208 = vector.broadcast %207 : vector<32x1xf32> to vector<32x72xf32>
    %209 = arith.addf %206, %208 : vector<32x72xf32>
    %cst_262 = arith.constant 0.000000e+00 : f32
    %210 = vector.broadcast %cst_262 : f32 to vector<32x72xf32>
    %211 = arith.maximumf %209, %210 : vector<32x72xf32>
    %c0_263 = arith.constant 0 : index
    %c0_264 = arith.constant 0 : index
    %212 = vector.load %arg8[%c0_263, %c0_264] : memref<32x667xf32, #tpu.memory_space<vmem>>, vector<32x72xf32>
    tpu.vector_store %arg8[%c0_263, %c0_264], %211 {strides = array<i32>} : memref<32x667xf32, #tpu.memory_space<vmem>>, vector<32x72xf32>,
    %c0_265 = arith.constant 0 : index
    %c0_266 = arith.constant 0 : index
    %213 = vector.load %arg8[%c0_265, %c0_266] : memref<32x667xf32, #tpu.memory_space<vmem>>, vector<32x72xf32>
    %c0_267 = arith.constant 0 : index
    %c1_268 = arith.constant 1 : index
    %214 = vector.load %arg8[%c0_267, %c1_268] : memref<32x667xf32, #tpu.memory_space<vmem>>, vector<32x72xf32>
    %215 = arith.maximumf %213, %214 : vector<32x72xf32>
    %c0_269 = arith.constant 0 : index
    %c6_270 = arith.constant 6 : index
    %216 = vector.load %arg8[%c0_269, %c6_270] : memref<32x667xf32, #tpu.memory_space<vmem>>, vector<32x72xf32>
    %c0_271 = arith.constant 0 : index
    %c7_272 = arith.constant 7 : index
    %217 = vector.load %arg8[%c0_271, %c7_272] : memref<32x667xf32, #tpu.memory_space<vmem>>, vector<32x72xf32>
    %218 = arith.maximumf %216, %217 : vector<32x72xf32>
    %219 = arith.maximumf %215, %218 : vector<32x72xf32>
    %c0_273 = arith.constant 0 : index
    %c0_274 = arith.constant 0 : index
    %220 = vector.load %arg8[%c0_273, %c0_274] : memref<32x667xf32, #tpu.memory_space<vmem>>, vector<32x72xf32>
    tpu.vector_store %arg8[%c0_273, %c0_274], %219 {strides = array<i32>} : memref<32x667xf32, #tpu.memory_space<vmem>>, vector<32x72xf32>,
    %c0_275 = arith.constant 0 : index
    %c8_276 = arith.constant 8 : index
    %221 = vector.load %arg2[%c0_275, %c8_276] : memref<32x128xf32, #tpu.memory_space<vmem>>, vector<4x2xf32>
    %c0_277 = arith.constant 0 : index
    %c7_278 = arith.constant 7 : index
    %222 = vector.load %arg8[%c0_277, %c7_278] : memref<32x667xf32, #tpu.memory_space<vmem>>, vector<32x4xf32>
    %cst_279 = arith.constant dense<0.000000e+00> : vector<32x2xf32>
    %223 = tpu.matmul %222, %221, %cst_279 {dimension_numbers = #tpu.dot_dimension_numbers<[1], [0], [0], [1], [0, 0, 1, 1], [], []>} : vector<32x4xf32>, vector<4x2xf32>, vector<32x2xf32> -> vector<32x2xf32>
    %c0_280 = arith.constant 0 : index
    %c0_281 = arith.constant 0 : index
    %224 = vector.load %arg12[%c0_280, %c0_281] : memref<32x8xf32, #tpu.memory_space<vmem>>, vector<32x2xf32>
    tpu.vector_store %arg12[%c0_280, %c0_281], %223 {strides = array<i32>} : memref<32x8xf32, #tpu.memory_space<vmem>>, vector<32x2xf32>,
    %c0_282 = arith.constant 0 : index
    %c19_283 = arith.constant 19 : index
    %225 = vector.load %arg8[%c0_282, %c19_283] : memref<32x667xf32, #tpu.memory_space<vmem>>, vector<32x4xf32>
    %cst_284 = arith.constant dense<0.000000e+00> : vector<32x2xf32>
    %226 = tpu.matmul %225, %221, %cst_284 {dimension_numbers = #tpu.dot_dimension_numbers<[1], [0], [0], [1], [0, 0, 1, 1], [], []>} : vector<32x4xf32>, vector<4x2xf32>, vector<32x2xf32> -> vector<32x2xf32>
    %c0_285 = arith.constant 0 : index
    %c2_286 = arith.constant 2 : index
    %227 = vector.load %arg12[%c0_285, %c2_286] : memref<32x8xf32, #tpu.memory_space<vmem>>, vector<32x2xf32>
    tpu.vector_store %arg12[%c0_285, %c2_286], %226 {strides = array<i32>} : memref<32x8xf32, #tpu.memory_space<vmem>>, vector<32x2xf32>,
    %c0_287 = arith.constant 0 : index
    %c43 = arith.constant 43 : index
    %228 = vector.load %arg8[%c0_287, %c43] : memref<32x667xf32, #tpu.memory_space<vmem>>, vector<32x4xf32>
    %cst_288 = arith.constant dense<0.000000e+00> : vector<32x2xf32>
    %229 = tpu.matmul %228, %221, %cst_288 {dimension_numbers = #tpu.dot_dimension_numbers<[1], [0], [0], [1], [0, 0, 1, 1], [], []>} : vector<32x4xf32>, vector<4x2xf32>, vector<32x2xf32> -> vector<32x2xf32>
    %c0_289 = arith.constant 0 : index
    %c4_290 = arith.constant 4 : index
    %230 = vector.load %arg12[%c0_289, %c4_290] : memref<32x8xf32, #tpu.memory_space<vmem>>, vector<32x2xf32>
    tpu.vector_store %arg12[%c0_289, %c4_290], %229 {strides = array<i32>} : memref<32x8xf32, #tpu.memory_space<vmem>>, vector<32x2xf32>,
    %c0_291 = arith.constant 0 : index
    %c55_292 = arith.constant 55 : index
    %231 = vector.load %arg8[%c0_291, %c55_292] : memref<32x667xf32, #tpu.memory_space<vmem>>, vector<32x4xf32>
    %cst_293 = arith.constant dense<0.000000e+00> : vector<32x2xf32>
    %232 = tpu.matmul %231, %221, %cst_293 {dimension_numbers = #tpu.dot_dimension_numbers<[1], [0], [0], [1], [0, 0, 1, 1], [], []>} : vector<32x4xf32>, vector<4x2xf32>, vector<32x2xf32> -> vector<32x2xf32>
    %c0_294 = arith.constant 0 : index
    %c6_295 = arith.constant 6 : index
    %233 = vector.load %arg12[%c0_294, %c6_295] : memref<32x8xf32, #tpu.memory_space<vmem>>, vector<32x2xf32>
    tpu.vector_store %arg12[%c0_294, %c6_295], %232 {strides = array<i32>} : memref<32x8xf32, #tpu.memory_space<vmem>>, vector<32x2xf32>,
    %c0_296 = arith.constant 0 : index
    %c0_297 = arith.constant 0 : index
    %234 = vector.load %arg12[%c0_296, %c0_297] : memref<32x8xf32, #tpu.memory_space<vmem>>, vector<32x8xf32>
    %c0_298 = arith.constant 0 : index
    %c88 = arith.constant 88 : index
    %235 = vector.load %arg2[%c0_298, %c88] : memref<32x128xf32, #tpu.memory_space<vmem>>, vector<8x2xf32>
    %cst_299 = arith.constant dense<0.000000e+00> : vector<32x2xf32>
    %236 = tpu.matmul %234, %235, %cst_299 {dimension_numbers = #tpu.dot_dimension_numbers<[1], [0], [0], [1], [0, 0, 1, 1], [], []>} : vector<32x8xf32>, vector<8x2xf32>, vector<32x2xf32> -> vector<32x2xf32>
    %c0_300 = arith.constant 0 : index
    %c544 = arith.constant 544 : index
    %237 = vector.load %arg1[%c0_300, %c544] : memref<32x768xbf16, #tpu.memory_space<vmem>>, vector<32x32xbf16>
    %238 = arith.truncf %236 : vector<32x2xf32> to vector<32x2xbf16>
    %cst_301 = arith.constant dense<0.000000e+00> : vector<32x2xf32>
    %239 = tpu.matmul %237, %238, %cst_301 {dimension_numbers = #tpu.dot_dimension_numbers<[1], [0], [0], [1], [0, 0, 1, 1], [], []>} : vector<32x32xbf16>, vector<32x2xbf16>, vector<32x2xf32> -> vector<32x2xf32>
    %c0_302 = arith.constant 0 : index
    %c90 = arith.constant 90 : index
    %240 = vector.load %arg2[%c0_302, %c90] : memref<32x128xf32, #tpu.memory_space<vmem>>, vector<8x2xf32>
    %cst_303 = arith.constant dense<0.000000e+00> : vector<32x2xf32>
    %241 = tpu.matmul %234, %240, %cst_303 {dimension_numbers = #tpu.dot_dimension_numbers<[1], [0], [0], [1], [0, 0, 1, 1], [], []>} : vector<32x8xf32>, vector<8x2xf32>, vector<32x2xf32> -> vector<32x2xf32>
    %c0_304 = arith.constant 0 : index
    %c576 = arith.constant 576 : index
    %242 = vector.load %arg1[%c0_304, %c576] : memref<32x768xbf16, #tpu.memory_space<vmem>>, vector<32x32xbf16>
    %243 = arith.truncf %241 : vector<32x2xf32> to vector<32x2xbf16>
    %cst_305 = arith.constant dense<0.000000e+00> : vector<32x2xf32>
    %244 = tpu.matmul %242, %243, %cst_305 {dimension_numbers = #tpu.dot_dimension_numbers<[1], [0], [0], [1], [0, 0, 1, 1], [], []>} : vector<32x32xbf16>, vector<32x2xbf16>, vector<32x2xf32> -> vector<32x2xf32>
    %245 = arith.addf %239, %244 : vector<32x2xf32>
    %c0_306 = arith.constant 0 : index
    %c92_307 = arith.constant 92 : index
    %246 = vector.load %arg2[%c0_306, %c92_307] : memref<32x128xf32, #tpu.memory_space<vmem>>, vector<8x2xf32>
    %cst_308 = arith.constant dense<0.000000e+00> : vector<32x2xf32>
    %247 = tpu.matmul %234, %246, %cst_308 {dimension_numbers = #tpu.dot_dimension_numbers<[1], [0], [0], [1], [0, 0, 1, 1], [], []>} : vector<32x8xf32>, vector<8x2xf32>, vector<32x2xf32> -> vector<32x2xf32>
    %c0_309 = arith.constant 0 : index
    %c608 = arith.constant 608 : index
    %248 = vector.load %arg1[%c0_309, %c608] : memref<32x768xbf16, #tpu.memory_space<vmem>>, vector<32x32xbf16>
    %249 = arith.truncf %247 : vector<32x2xf32> to vector<32x2xbf16>
    %cst_310 = arith.constant dense<0.000000e+00> : vector<32x2xf32>
    %250 = tpu.matmul %248, %249, %cst_310 {dimension_numbers = #tpu.dot_dimension_numbers<[1], [0], [0], [1], [0, 0, 1, 1], [], []>} : vector<32x32xbf16>, vector<32x2xbf16>, vector<32x2xf32> -> vector<32x2xf32>
    %251 = arith.addf %245, %250 : vector<32x2xf32>
    %c0_311 = arith.constant 0 : index
    %c94 = arith.constant 94 : index
    %252 = vector.load %arg2[%c0_311, %c94] : memref<32x128xf32, #tpu.memory_space<vmem>>, vector<8x2xf32>
    %cst_312 = arith.constant dense<0.000000e+00> : vector<32x2xf32>
    %253 = tpu.matmul %234, %252, %cst_312 {dimension_numbers = #tpu.dot_dimension_numbers<[1], [0], [0], [1], [0, 0, 1, 1], [], []>} : vector<32x8xf32>, vector<8x2xf32>, vector<32x2xf32> -> vector<32x2xf32>
    %c0_313 = arith.constant 0 : index
    %c640 = arith.constant 640 : index
    %254 = vector.load %arg1[%c0_313, %c640] : memref<32x768xbf16, #tpu.memory_space<vmem>>, vector<32x32xbf16>
    %255 = arith.truncf %253 : vector<32x2xf32> to vector<32x2xbf16>
    %cst_314 = arith.constant dense<0.000000e+00> : vector<32x2xf32>
    %256 = tpu.matmul %254, %255, %cst_314 {dimension_numbers = #tpu.dot_dimension_numbers<[1], [0], [0], [1], [0, 0, 1, 1], [], []>} : vector<32x32xbf16>, vector<32x2xbf16>, vector<32x2xf32> -> vector<32x2xf32>
    %257 = arith.addf %251, %256 : vector<32x2xf32>
    %c0_315 = arith.constant 0 : index
    %c4_316 = arith.constant 4 : index
    %258 = vector.load %arg2[%c0_315, %c4_316] : memref<32x128xf32, #tpu.memory_space<vmem>>, vector<32x1xf32>
    %259 = vector.broadcast %258 : vector<32x1xf32> to vector<32x2xf32>
    %260 = arith.addf %257, %259 : vector<32x2xf32>
    %cst_317 = arith.constant 0.000000e+00 : f32
    %261 = vector.broadcast %cst_317 : f32 to vector<32x2xf32>
    %262 = arith.maximumf %260, %261 : vector<32x2xf32>
    %c0_318 = arith.constant 0 : index
    %c672 = arith.constant 672 : index
    %263 = vector.load %arg1[%c0_318, %c672] : memref<32x768xbf16, #tpu.memory_space<vmem>>, vector<32x32xbf16>
    %264 = arith.truncf %262 : vector<32x2xf32> to vector<32x2xbf16>
    %cst_319 = arith.constant dense<0.000000e+00> : vector<32x2xf32>
    %265 = tpu.matmul %263, %264, %cst_319 {dimension_numbers = #tpu.dot_dimension_numbers<[1], [0], [0], [1], [0, 0, 1, 1], [], []>} : vector<32x32xbf16>, vector<32x2xbf16>, vector<32x2xf32> -> vector<32x2xf32>
    %c0_320 = arith.constant 0 : index
    %c5 = arith.constant 5 : index
    %266 = vector.load %arg2[%c0_320, %c5] : memref<32x128xf32, #tpu.memory_space<vmem>>, vector<32x1xf32>
    %267 = vector.broadcast %266 : vector<32x1xf32> to vector<32x2xf32>
    %268 = arith.addf %265, %267 : vector<32x2xf32>
    %cst_321 = arith.constant 0.000000e+00 : f32
    %269 = vector.broadcast %cst_321 : f32 to vector<32x2xf32>
    %270 = arith.maximumf %268, %269 : vector<32x2xf32>
    %c0_322 = arith.constant 0 : index
    %c704 = arith.constant 704 : index
    %271 = vector.load %arg1[%c0_322, %c704] : memref<32x768xbf16, #tpu.memory_space<vmem>>, vector<10x32xbf16>
    %272 = arith.truncf %270 : vector<32x2xf32> to vector<32x2xbf16>
    %cst_323 = arith.constant dense<0.000000e+00> : vector<10x2xf32>
    %273 = tpu.matmul %271, %272, %cst_323 {dimension_numbers = #tpu.dot_dimension_numbers<[1], [0], [0], [1], [0, 0, 1, 1], [], []>} : vector<10x32xbf16>, vector<32x2xbf16>, vector<10x2xf32> -> vector<10x2xf32>
    %c0_324 = arith.constant 0 : index
    %c6_325 = arith.constant 6 : index
    %274 = vector.load %arg2[%c0_324, %c6_325] : memref<32x128xf32, #tpu.memory_space<vmem>>, vector<10x1xf32>
    %275 = vector.broadcast %274 : vector<10x1xf32> to vector<10x2xf32>
    %276 = arith.addf %273, %275 : vector<10x2xf32>
    %c0_326 = arith.constant 0 : index
    %c0_327 = arith.constant 0 : index
    %277 = vector.load %arg3[%c0_326, %c0_327] : memref<10x2xf32, #tpu.memory_space<vmem>>, vector<10x2xf32>
    tpu.vector_store %arg3[%c0_326, %c0_327], %276 {strides = array<i32>} : memref<10x2xf32, #tpu.memory_space<vmem>>, vector<10x2xf32>,
    return
  }
}

</mosaic_0001>

<llo_original>
// kernel: vggfc_forward.1
$region0: #{vggfc_forward.1}
  #allocation0 [shape = 'u32[]', space=smem, size = 0x4, offset = 0x4, fixed_abs, tag = 'smem constant byte address 0x4 - core index']
  #allocation1 [shape = 'u32[144,128]{1,0:T(1,128)}', space=vmem, size = 0x12000, scoped, tag = 'internal scratch']
  #allocation2 [shape = 'f32[36,648]{1,0:T(8,128)}', space=vmem, size = 0x1e000, scoped, tag = 'scratch operand']
  #allocation3 [shape = 'f32[72,200]{1,0:T(8,128)}', space=vmem, size = 0x12000, scoped, tag = 'scratch operand']
  #allocation4 [shape = 'f32[144,72]{1,0:T(8,128)}', space=vmem, size = 0x12000, scoped, tag = 'scratch operand']
  #allocation5 [shape = 'f32[288,72]{1,0:T(8,128)}', space=vmem, size = 0x24000, scoped, tag = 'scratch operand']
  #allocation6 [shape = 'f32[32,667]{1,0:T(8,128)}', space=vmem, size = 0x18000, scoped, tag = 'scratch operand']
  #allocation7 [shape = 'f32[8,222]{1,0:T(8,128)}', space=vmem, size = 0x2000, scoped, tag = 'scratch operand']
  #allocation8 [shape = 'f32[16,86]{1,0:T(8,128)}', space=vmem, size = 0x2000, scoped, tag = 'scratch operand']
  #allocation9 [shape = 'f32[32,86]{1,0:T(8,128)}', space=vmem, size = 0x4000, scoped, tag = 'scratch operand']
  #allocation10 [shape = 'f32[32,8]{1,0:T(8,128)}', space=vmem, size = 0x4000, scoped, tag = 'scratch operand']
  %s0 = inlined_call_operand.vmem [shape: f32[4,686], index: 0, kind: input, shape index: {}]
  %s1 = inlined_call_operand.vmem [shape: bf16[32,768], index: 1, kind: input, shape index: {}]
  %s2 = inlined_call_operand.vmem [shape: f32[32,128], index: 2, kind: input, shape index: {}]
  %s3 = inlined_call_operand.vmem [shape: f32[10,2], index: 3, kind: output, shape index: {}]
  %s4 = sld [smem:[#allocation0]]
  $region22: #{vggfc_forward.1} parent=0
    _
  %s6 = ssub.s32 1, %s4
  %s7 = scalar_select 0, %s6, %s4
  // Predicated region
  $region2: #{vggfc_forward.1} parent=0 // pred_check
    _
  $region3: #{vggfc_forward.1} parent=0 // pred_check_branch
    %9 = sbr.rel (0) target = $region5
  $region4: #{vggfc_forward.1} parent=0 // pred_region
    _
  $region5: #{vggfc_forward.1} parent=0 // pred_fallthru
    _
  // Predicated region
  $region6: #{vggfc_forward.1} parent=0 // pred_check
    _
  $region7: #{vggfc_forward.1} parent=0 // pred_check_branch
    %11 = sbr.rel (0) target = $region9
  $region8: #{vggfc_forward.1} parent=0 // pred_region
    _
  $region9: #{vggfc_forward.1} parent=0 // pred_fallthru
    _
  // Predicated region
  $region10: #{vggfc_forward.1} parent=0 // pred_check
    _
  $region11: #{vggfc_forward.1} parent=0 // pred_check_branch
    %13 = sbr.rel (0) target = $region13
  $region12: #{vggfc_forward.1} parent=0 // pred_region
    _
  $region13: #{vggfc_forward.1} parent=0 // pred_fallthru
    _
  %15 = vst [vmem:[#allocation7] sm:$0xff] 0.0
  %vm16 = vcmask 769024
  %17 = vst.msk [vmem:[#allocation7 + $0x8] sm:$0xff] %vm16, 0.0
  %vm18 = vcmask 703488
  %19 = vst.msk [vmem:[#allocation8] sm:$0xff] %vm18, 0.0
  %20 = vst.msk [vmem:[#allocation8 + $0x8] sm:$0xff] %vm18, 0.0
  %21 = vst.msk [vmem:[#allocation9] sm:$0xff] %vm18, 0.0
  %22 = vst.msk [vmem:[#allocation9 + $0x8] sm:$0xff] %vm18, 0.0
  %23 = vst.msk [vmem:[#allocation9 + $0x10] sm:$0xff] %vm18, 0.0
  %24 = vst.msk [vmem:[#allocation9 + $0x18] sm:$0xff] %vm18, 0.0
  %vm25 = vcmask 220224
  %26 = vst.msk [vmem:[#allocation6 + $0x28] sm:$0xff] %vm25, 0.0
  %27 = vst.msk [vmem:[#allocation6 + $0x58] sm:$0xff] %vm25, 0.0
  %28 = vst.msk [vmem:[#allocation6 + $0x88] sm:$0xff] %vm25, 0.0
  %29 = vst.msk [vmem:[#allocation6 + $0xb8] sm:$0xff] %vm25, 0.0
  %v30 = vld [vmem:[%s0] sm:$0xff]
  %v31 = vld [vmem:[%s0 + $0x8] sm:$0xff]
  %v32 = vld [vmem:[%s0 + $0x10] sm:$0xff]
  %v36 = vcombine.high %v30, %v30
  %v37 = vcombine.high %v31, %v31
  %v38 = vcombine.high %v32, %v32
  %42 = vst [vmem:[#allocation2] sm:$0xf] %v30
  %43 = vst [vmem:[#allocation2 + $0x8] sm:$0xf] %v36
  %44 = vst [vmem:[#allocation2 + $0x10] sm:$0xf] %v31
  %45 = vst [vmem:[#allocation2 + $0x18] sm:$0xf] %v37
  %46 = vst [vmem:[#allocation2 + $0x20] sm:$0xf] %v32
  %vm47 = vcmask 60416
  %48 = vst.msk [vmem:[#allocation2 + $0x28] sm:$0xf] %vm47, %v38
  %v49 = vld [vmem:[%s0] sm:$0xff]
  %v50 = vld [vmem:[%s0 + $0x8] sm:$0xff]
  %v51 = vld [vmem:[%s0 + $0x10] sm:$0xff]
  %v55 = vcombine.low %v49, %v49
  %v56 = vcombine.low %v50, %v50
  %v57 = vcombine.low %v51, %v51
  %58 = vrot.lane.b32.xlu0 %v55, 127
  %v59 = vpop.permute.xlu0 %58
  %60 = vrot.lane.b32.xlu0 %v49, 127
  %v61 = vpop.permute.xlu0 %60
  %62 = vrot.lane.b32.xlu0 %v56, 127
  %v63 = vpop.permute.xlu0 %62
  %64 = vrot.lane.b32.xlu0 %v50, 127
  %v65 = vpop.permute.xlu0 %64
  %66 = vrot.lane.b32.xlu0 %v57, 127
  %v67 = vpop.permute.xlu0 %66
  %68 = vrot.lane.b32.xlu0 %v51, 127
  %v69 = vpop.permute.xlu0 %68
  %vm70 = vcmask 1039360
  %v71 = vsel %vm70, %v59, %v61
  %v72 = vsel %vm70, %v61, %v63
  %v73 = vsel %vm70, %v63, %v65
  %v74 = vsel %vm70, %v65, %v67
  %v75 = vsel %vm70, %v67, %v69
  %82 = vst [vmem:[#allocation2] sm:$0xf0] %v71
  %83 = vst [vmem:[#allocation2 + $0x8] sm:$0xf0] %v72
  %84 = vst [vmem:[#allocation2 + $0x10] sm:$0xf0] %v73
  %85 = vst [vmem:[#allocation2 + $0x18] sm:$0xf0] %v74
  %86 = vst [vmem:[#allocation2 + $0x20] sm:$0xf0] %v75
  %vm87 = vcmask 64516
  %88 = vst.msk [vmem:[#allocation2 + $0x28] sm:$0xf0] %vm87, %v69
  %v89 = vld [vmem:[%s0] sm:$0xff]
  %v90 = vld [vmem:[%s0 + $0x8] sm:$0xff]
  %v91 = vld [vmem:[%s0 + $0x10] sm:$0xff]
  %v95 = vcombine.high %v89, %v89
  %v96 = vcombine.high %v90, %v90
  %v97 = vcombine.high %v91, %v91
  %98 = vrot.lane.b32.xlu0 %v89, 126
  %v99 = vpop.permute.xlu0 %98
  %100 = vrot.lane.b32.xlu0 %v95, 126
  %v101 = vpop.permute.xlu0 %100
  %102 = vrot.lane.b32.xlu0 %v90, 126
  %v103 = vpop.permute.xlu0 %102
  %104 = vrot.lane.b32.xlu0 %v96, 126
  %v105 = vpop.permute.xlu0 %104
  %106 = vrot.lane.b32.xlu0 %v91, 126
  %v107 = vpop.permute.xlu0 %106
  %108 = vrot.lane.b32.xlu0 %v97, 126
  %v109 = vpop.permute.xlu0 %108
  %vm110 = vcmask 1031168
  %v111 = vsel %vm110, %v99, %v101
  %v112 = vsel %vm110, %v101, %v103
  %v113 = vsel %vm110, %v103, %v105
  %v114 = vsel %vm110, %v105, %v107
  %v115 = vsel %vm110, %v107, %v109
  %122 = vst [vmem:[#allocation2 + $0x30] sm:$0xf] %v111
  %123 = vst [vmem:[#allocation2 + $0x38] sm:$0xf] %v112
  %124 = vst [vmem:[#allocation2 + $0x40] sm:$0xf] %v113
  %125 = vst [vmem:[#allocation2 + $0x48] sm:$0xf] %v114
  %126 = vst [vmem:[#allocation2 + $0x50] sm:$0xf] %v115
  %127 = vst.msk [vmem:[#allocation2 + $0x58] sm:$0xf] %vm47, %v109
  %v128 = vld [vmem:[%s0] sm:$0xff]
  %v129 = vld [vmem:[%s0 + $0x8] sm:$0xff]
  %v130 = vld [vmem:[%s0 + $0x10] sm:$0xff]
  %v134 = vcombine.low %v128, %v128
  %v135 = vcombine.low %v129, %v129
  %v136 = vcombine.low %v130, %v130
  %137 = vrot.lane.b32.xlu0 %v134, 110
  %v138 = vpop.permute.xlu0 %137
  %139 = vrot.lane.b32.xlu0 %v128, 110
  %v140 = vpop.permute.xlu0 %139
  %141 = vrot.lane.b32.xlu0 %v135, 110
  %v142 = vpop.permute.xlu0 %141
  %143 = vrot.lane.b32.xlu0 %v129, 110
  %v144 = vpop.permute.xlu0 %143
  %145 = vrot.lane.b32.xlu0 %v136, 110
  %v146 = vpop.permute.xlu0 %145
  %147 = vrot.lane.b32.xlu0 %v130, 110
  %v148 = vpop.permute.xlu0 %147
  %vm149 = vcmask 900096
  %v150 = vsel %vm149, %v138, %v140
  %v151 = vsel %vm149, %v140, %v142
  %v152 = vsel %vm149, %v142, %v144
  %v153 = vsel %vm149, %v144, %v146
  %v154 = vsel %vm149, %v146, %v148
  %161 = vst [vmem:[#allocation2 + $0x30] sm:$0xf0] %v150
  %162 = vst [vmem:[#allocation2 + $0x38] sm:$0xf0] %v151
  %163 = vst [vmem:[#allocation2 + $0x40] sm:$0xf0] %v152
  %164 = vst [vmem:[#allocation2 + $0x48] sm:$0xf0] %v153
  %165 = vst [vmem:[#allocation2 + $0x50] sm:$0xf0] %v154
  %166 = vst.msk [vmem:[#allocation2 + $0x58] sm:$0xf0] %vm87, %v148
  %v167 = vld [vmem:[%s0] sm:$0xff]
  %v168 = vld [vmem:[%s0 + $0x8] sm:$0xff]
  %v169 = vld [vmem:[%s0 + $0x10] sm:$0xff]
  %v173 = vcombine.high %v167, %v167
  %v174 = vcombine.high %v168, %v168
  %v175 = vcombine.high %v169, %v169
  %176 = vrot.lane.b32.xlu0 %v167, 109
  %v177 = vpop.permute.xlu0 %176
  %178 = vrot.lane.b32.xlu0 %v173, 109
  %v179 = vpop.permute.xlu0 %178
  %180 = vrot.lane.b32.xlu0 %v168, 109
  %v181 = vpop.permute.xlu0 %180
  %182 = vrot.lane.b32.xlu0 %v174, 109
  %v183 = vpop.permute.xlu0 %182
  %184 = vrot.lane.b32.xlu0 %v169, 109
  %v185 = vpop.permute.xlu0 %184
  %186 = vrot.lane.b32.xlu0 %v175, 109
  %v187 = vpop.permute.xlu0 %186
  %vm188 = vcmask 891904
  %v189 = vsel %vm188, %v177, %v179
  %v190 = vsel %vm188, %v179, %v181
  %v191 = vsel %vm188, %v181, %v183
  %v192 = vsel %vm188, %v183, %v185
  %v193 = vsel %vm188, %v185, %v187
  %200 = vst [vmem:[#allocation2 + $0x60] sm:$0xf] %v189
  %201 = vst [vmem:[#allocation2 + $0x68] sm:$0xf] %v190
  %202 = vst [vmem:[#allocation2 + $0x70] sm:$0xf] %v191
  %203 = vst [vmem:[#allocation2 + $0x78] sm:$0xf] %v192
  %204 = vst [vmem:[#allocation2 + $0x80] sm:$0xf] %v193
  %205 = vst.msk [vmem:[#allocation2 + $0x88] sm:$0xf] %vm47, %v187
  %v206 = vld [vmem:[%s0] sm:$0xff]
  %v207 = vld [vmem:[%s0 + $0x8] sm:$0xff]
  %v208 = vld [vmem:[%s0 + $0x10] sm:$0xff]
  %v212 = vcombine.low %v206, %v206
  %v213 = vcombine.low %v207, %v207
  %v214 = vcombine.low %v208, %v208
  %215 = vrot.lane.b32.xlu0 %v212, 108
  %v216 = vpop.permute.xlu0 %215
  %217 = vrot.lane.b32.xlu0 %v206, 108
  %v218 = vpop.permute.xlu0 %217
  %219 = vrot.lane.b32.xlu0 %v213, 108
  %v220 = vpop.permute.xlu0 %219
  %221 = vrot.lane.b32.xlu0 %v207, 108
  %v222 = vpop.permute.xlu0 %221
  %223 = vrot.lane.b32.xlu0 %v214, 108
  %v224 = vpop.permute.xlu0 %223
  %225 = vrot.lane.b32.xlu0 %v208, 108
  %v226 = vpop.permute.xlu0 %225
  %vm227 = vcmask 883712
  %v228 = vsel %vm227, %v216, %v218
  %v229 = vsel %vm227, %v218, %v220
  %v230 = vsel %vm227, %v220, %v222
  %v231 = vsel %vm227, %v222, %v224
  %v232 = vsel %vm227, %v224, %v226
  %239 = vst [vmem:[#allocation2 + $0x60] sm:$0xf0] %v228
  %240 = vst [vmem:[#allocation2 + $0x68] sm:$0xf0] %v229
  %241 = vst [vmem:[#allocation2 + $0x70] sm:$0xf0] %v230
  %242 = vst [vmem:[#allocation2 + $0x78] sm:$0xf0] %v231
  %243 = vst [vmem:[#allocation2 + $0x80] sm:$0xf0] %v232
  %244 = vst.msk [vmem:[#allocation2 + $0x88] sm:$0xf0] %vm87, %v226
  %v245 = vld [vmem:[%s0] sm:$0xff]
  %v246 = vld [vmem:[%s0 + $0x8] sm:$0xff]
  %v247 = vld [vmem:[%s0 + $0x10] sm:$0xff]
  %v251 = vcombine.high %v245, %v245
  %v252 = vcombine.high %v246, %v246
  %v253 = vcombine.high %v247, %v247
  %254 = vrot.lane.b32.xlu0 %v245, 92
  %v255 = vpop.permute.xlu0 %254
  %256 = vrot.lane.b32.xlu0 %v251, 92
  %v257 = vpop.permute.xlu0 %256
  %258 = vrot.lane.b32.xlu0 %v246, 92
  %v259 = vpop.permute.xlu0 %258
  %260 = vrot.lane.b32.xlu0 %v252, 92
  %v261 = vpop.permute.xlu0 %260
  %262 = vrot.lane.b32.xlu0 %v247, 92
  %v263 = vpop.permute.xlu0 %262
  %264 = vrot.lane.b32.xlu0 %v253, 92
  %v265 = vpop.permute.xlu0 %264
  %vm266 = vcmask 752640
  %v267 = vsel %vm266, %v255, %v257
  %v268 = vsel %vm266, %v257, %v259
  %v269 = vsel %vm266, %v259, %v261
  %v270 = vsel %vm266, %v261, %v263
  %v271 = vsel %vm266, %v263, %v265
  %278 = vst [vmem:[#allocation2 + $0x90] sm:$0xf] %v267
  %279 = vst [vmem:[#allocation2 + $0x98] sm:$0xf] %v268
  %280 = vst [vmem:[#allocation2 + $0xa0] sm:$0xf] %v269
  %281 = vst [vmem:[#allocation2 + $0xa8] sm:$0xf] %v270
  %282 = vst [vmem:[#allocation2 + $0xb0] sm:$0xf] %v271
  %283 = vst.msk [vmem:[#allocation2 + $0xb8] sm:$0xf] %vm47, %v265
  %v284 = vld [vmem:[%s0] sm:$0xff]
  %v285 = vld [vmem:[%s0 + $0x8] sm:$0xff]
  %v286 = vld [vmem:[%s0 + $0x10] sm:$0xff]
  %v290 = vcombine.low %v284, %v284
  %v291 = vcombine.low %v285, %v285
  %v292 = vcombine.low %v286, %v286
  %293 = vrot.lane.b32.xlu0 %v290, 91
  %v294 = vpop.permute.xlu0 %293
  %295 = vrot.lane.b32.xlu0 %v284, 91
  %v296 = vpop.permute.xlu0 %295
  %297 = vrot.lane.b32.xlu0 %v291, 91
  %v298 = vpop.permute.xlu0 %297
  %299 = vrot.lane.b32.xlu0 %v285, 91
  %v300 = vpop.permute.xlu0 %299
  %301 = vrot.lane.b32.xlu0 %v292, 91
  %v302 = vpop.permute.xlu0 %301
  %303 = vrot.lane.b32.xlu0 %v286, 91
  %v304 = vpop.permute.xlu0 %303
  %vm305 = vcmask 744448
  %v306 = vsel %vm305, %v294, %v296
  %v307 = vsel %vm305, %v296, %v298
  %v308 = vsel %vm305, %v298, %v300
  %v309 = vsel %vm305, %v300, %v302
  %v310 = vsel %vm305, %v302, %v304
  %317 = vst [vmem:[#allocation2 + $0x90] sm:$0xf0] %v306
  %318 = vst [vmem:[#allocation2 + $0x98] sm:$0xf0] %v307
  %319 = vst [vmem:[#allocation2 + $0xa0] sm:$0xf0] %v308
  %320 = vst [vmem:[#allocation2 + $0xa8] sm:$0xf0] %v309
  %321 = vst [vmem:[#allocation2 + $0xb0] sm:$0xf0] %v310
  %322 = vst.msk [vmem:[#allocation2 + $0xb8] sm:$0xf0] %vm87, %v304
  %v323 = vld [vmem:[%s0] sm:$0xff]
  %v324 = vld [vmem:[%s0 + $0x8] sm:$0xff]
  %v325 = vld [vmem:[%s0 + $0x10] sm:$0xff]
  %v329 = vcombine.high %v323, %v323
  %v330 = vcombine.high %v324, %v324
  %v331 = vcombine.high %v325, %v325
  %332 = vrot.lane.b32.xlu0 %v323, 90
  %v333 = vpop.permute.xlu0 %332
  %334 = vrot.lane.b32.xlu0 %v329, 90
  %v335 = vpop.permute.xlu0 %334
  %336 = vrot.lane.b32.xlu0 %v324, 90
  %v337 = vpop.permute.xlu0 %336
  %338 = vrot.lane.b32.xlu0 %v330, 90
  %v339 = vpop.permute.xlu0 %338
  %340 = vrot.lane.b32.xlu0 %v325, 90
  %v341 = vpop.permute.xlu0 %340
  %342 = vrot.lane.b32.xlu0 %v331, 90
  %v343 = vpop.permute.xlu0 %342
  %vm344 = vcmask 736256
  %v345 = vsel %vm344, %v333, %v335
  %v346 = vsel %vm344, %v335, %v337
  %v347 = vsel %vm344, %v337, %v339
  %v348 = vsel %vm344, %v339, %v341
  %v349 = vsel %vm344, %v341, %v343
  %356 = vst [vmem:[#allocation2 + $0xc0] sm:$0xf] %v345
  %357 = vst [vmem:[#allocation2 + $0xc8] sm:$0xf] %v346
  %358 = vst [vmem:[#allocation2 + $0xd0] sm:$0xf] %v347
  %359 = vst [vmem:[#allocation2 + $0xd8] sm:$0xf] %v348
  %360 = vst [vmem:[#allocation2 + $0xe0] sm:$0xf] %v349
  %361 = vst.msk [vmem:[#allocation2 + $0xe8] sm:$0xf] %vm47, %v343
  %v362 = vld [vmem:[%s1] sm:$0xf]
  %v363 = vld [vmem:[#allocation2] sm:$0xff]
  %v364 = vld [vmem:[#allocation2 + $0x8] sm:$0xff]
  %v365 = vld [vmem:[#allocation2 + $0x10] sm:$0xff]
  %v366 = vld [vmem:[#allocation2 + $0x18] sm:$0xff]
  %v367 = vld [vmem:[#allocation2 + $0x20] sm:$0xff]
  %v368 = vld [vmem:[#allocation2 + $0x28] sm:$0xff]
  %v369 = vld [vmem:[#allocation2 + $0x30] sm:$0xff]
  %v370 = vld [vmem:[#allocation2 + $0x38] sm:$0xff]
  %v371 = vld [vmem:[#allocation2 + $0x40] sm:$0xff]
  %v372 = vld [vmem:[#allocation2 + $0x48] sm:$0xff]
  %v373 = vld [vmem:[#allocation2 + $0x50] sm:$0xff]
  %v374 = vld [vmem:[#allocation2 + $0x58] sm:$0xff]
  %v375 = vld [vmem:[#allocation2 + $0x60] sm:$0xff]
  %v376 = vld [vmem:[#allocation2 + $0x68] sm:$0xff]
  %v377 = vld [vmem:[#allocation2 + $0x70] sm:$0xff]
  %v378 = vld [vmem:[#allocation2 + $0x78] sm:$0xff]
  %v379 = vld [vmem:[#allocation2 + $0x80] sm:$0xff]
  %v380 = vld [vmem:[#allocation2 + $0x88] sm:$0xff]
  %v381 = vld [vmem:[#allocation2 + $0x90] sm:$0xff]
  %v382 = vld [vmem:[#allocation2 + $0x98] sm:$0xff]
  %v383 = vld [vmem:[#allocation2 + $0xa0] sm:$0xff]
  %v384 = vld [vmem:[#allocation2 + $0xa8] sm:$0xff]
  %v385 = vld [vmem:[#allocation2 + $0xb0] sm:$0xff]
  %v386 = vld [vmem:[#allocation2 + $0xb8] sm:$0xff]
  %v387 = vld [vmem:[#allocation2 + $0xc0] sm:$0xf]
  %v388 = vld [vmem:[#allocation2 + $0xc8] sm:$0xf]
  %v389 = vld [vmem:[#allocation2 + $0xd0] sm:$0xf]
  %v390 = vld [vmem:[#allocation2 + $0xd8] sm:$0xf]
  %v391 = vld [vmem:[#allocation2 + $0xe0] sm:$0xf]
  %v392 = vld [vmem:[#allocation2 + $0xe8] sm:$0xf]
  %v393 = vpack.c.bf16 %v369, %v363
  %v394 = vpack.c.bf16 %v370, %v364
  %v395 = vpack.c.bf16 %v371, %v365
  %v396 = vpack.c.bf16 %v372, %v366
  %v397 = vpack.c.bf16 %v373, %v367
  %v398 = vpack.c.bf16 %v374, %v368
  %v399 = vpack.c.bf16 %v381, %v375
  %v400 = vpack.c.bf16 %v382, %v376
  %v401 = vpack.c.bf16 %v383, %v377
  %v402 = vpack.c.bf16 %v384, %v378
  %v403 = vpack.c.bf16 %v385, %v379
  %v404 = vpack.c.bf16 %v386, %v380
  %v405 = vpack.c.bf16 %v387, %v387
  %v406 = vpack.c.bf16 %v388, %v388
  %v407 = vpack.c.bf16 %v389, %v389
  %v408 = vpack.c.bf16 %v390, %v390
  %v409 = vpack.c.bf16 %v391, %v391
  %v410 = vpack.c.bf16 %v392, %v392
  %v411 = vld [vmem:[%s2] sm:$0xff]
  %413 = vset.pattern.permute.xlu0 0
  %414 = vperm.xlu0 %413, %v411
  %v415 = vpop.permute.xlu0 %414
  %vm417 = vcmask 293888
  %v419 = vsel %vm417, %v362, 0
  %vm421 = vcmask 1041408
  %v423 = vsel %vm421, %v405, 0
  %v426 = vsel %vm421, %v406, 0
  %v429 = vsel %vm421, %v407, 0
  %v432 = vsel %vm421, %v408, 0
  %v435 = vsel %vm421, %v409, 0
  %v438 = vsel %vm421, %v410, 0
  %440 = vmatprep.subr.bf16.mxu0 0
  %441 = vmatpush1.bf16.msra.mxu0 0
  %442 = vmatprep.subr.bf16.mxu0 0
  %443 = vmatpush1.bf16.msra.mxu0 0
  %444 = vmatprep.subr.bf16.mxu0 0
  %445 = vmatpush1.bf16.msra.mxu0 0
  %446 = vmatprep.subr.bf16.mxu0 0
  %447 = vmatpush1.bf16.msra.mxu0 0
  %448 = vmatprep.subr.bf16.mxu0 0
  %449 = vmatpush1.bf16.msra.mxu0 0
  %450 = vmatprep.subr.bf16.mxu0 %v426
  %451 = vmatpush1.bf16.msra.mxu0 %v423
  %452 = vmatprep.subr.bf16.mxu0 %v400
  %453 = vmatpush1.bf16.msra.mxu0 %v399
  %454 = vmatprep.subr.bf16.mxu0 %v394
  %455 = vmatpush1.bf16.msra.mxu0 %v393
  %456 = vmatprep.subr.bf16.mxu0 0
  %457 = vmatpush2.bf16.msra.mxu0 0
  %458 = vmatprep.subr.bf16.mxu0 0
  %459 = vmatpush2.bf16.msra.mxu0 0
  %460 = vmatprep.subr.bf16.mxu0 0
  %461 = vmatpush2.bf16.msra.mxu0 0
  %462 = vmatprep.subr.bf16.mxu0 0
  %463 = vmatpush2.bf16.msra.mxu0 0
  %464 = vmatprep.subr.bf16.mxu0 0
  %465 = vmatpush2.bf16.msra.mxu0 0
  %466 = vmatprep.subr.bf16.mxu0 0
  %467 = vmatpush2.bf16.msra.mxu0 0
  %468 = vmatprep.subr.bf16.mxu0 0
  %469 = vmatpush2.bf16.msra.mxu0 0
  %470 = vmatprep.subr.bf16.mxu0 0
  %471 = vmatpush2.bf16.msra.mxu0 0
  %472 = vmatprep.mubr.bf16.mxu0 0
  %473 = vmatmul.mubr.bf16.gmra.mxu0 %v419
  %v474 = vpop.f32.mrf.mxu0
  %v475 = vadd.f32 %v415, %v474
  %v476 = vpop.f32.mrf.mxu0
  %v477 = vadd.f32 %v415, %v476
  %v478 = vpop.f32.mrf.mxu0
  %v479 = vpop.f32.mrf.mxu0
  %480 = vdwg.mxu0
  %481 = vmatprep.subr.bf16.mxu0 0
  %482 = vmatpush1.bf16.msra.mxu0 0
  %483 = vmatprep.subr.bf16.mxu0 0
  %484 = vmatpush1.bf16.msra.mxu0 0
  %485 = vmatprep.subr.bf16.mxu0 0
  %486 = vmatpush1.bf16.msra.mxu0 0
  %487 = vmatprep.subr.bf16.mxu0 0
  %488 = vmatpush1.bf16.msra.mxu0 0
  %489 = vmatprep.subr.bf16.mxu0 0
  %490 = vmatpush1.bf16.msra.mxu0 0
  %491 = vmatprep.subr.bf16.mxu0 %v432
  %492 = vmatpush1.bf16.msra.mxu0 %v429
  %493 = vmatprep.subr.bf16.mxu0 %v402
  %494 = vmatpush1.bf16.msra.mxu0 %v401
  %495 = vmatprep.subr.bf16.mxu0 %v396
  %496 = vmatpush1.bf16.msra.mxu0 %v395
  %497 = vmatprep.subr.bf16.mxu0 0
  %498 = vmatpush2.bf16.msra.mxu0 0
  %499 = vmatprep.subr.bf16.mxu0 0
  %500 = vmatpush2.bf16.msra.mxu0 0
  %501 = vmatprep.subr.bf16.mxu0 0
  %502 = vmatpush2.bf16.msra.mxu0 0
  %503 = vmatprep.subr.bf16.mxu0 0
  %504 = vmatpush2.bf16.msra.mxu0 0
  %505 = vmatprep.subr.bf16.mxu0 0
  %506 = vmatpush2.bf16.msra.mxu0 0
  %507 = vmatprep.subr.bf16.mxu0 0
  %508 = vmatpush2.bf16.msra.mxu0 0
  %509 = vmatprep.subr.bf16.mxu0 0
  %510 = vmatpush2.bf16.msra.mxu0 0
  %511 = vmatprep.subr.bf16.mxu0 0
  %512 = vmatpush2.bf16.msra.mxu0 0
  %513 = vmatprep.mubr.bf16.mxu0 0
  %514 = vmatmul.mubr.bf16.gmra.mxu0 %v419
  %v515 = vpop.f32.mrf.mxu0
  %v516 = vadd.f32 %v415, %v515
  %v517 = vpop.f32.mrf.mxu0
  %v518 = vadd.f32 %v415, %v517
  %v519 = vpop.f32.mrf.mxu0
  %v520 = vpop.f32.mrf.mxu0
  %521 = vdwg.mxu0
  %522 = vmatprep.subr.bf16.mxu0 0
  %523 = vmatpush1.bf16.msra.mxu0 0
  %524 = vmatprep.subr.bf16.mxu0 0
  %525 = vmatpush1.bf16.msra.mxu0 0
  %526 = vmatprep.subr.bf16.mxu0 0
  %527 = vmatpush1.bf16.msra.mxu0 0
  %528 = vmatprep.subr.bf16.mxu0 0
  %529 = vmatpush1.bf16.msra.mxu0 0
  %530 = vmatprep.subr.bf16.mxu0 0
  %531 = vmatpush1.bf16.msra.mxu0 0
  %532 = vmatprep.subr.bf16.mxu0 %v438
  %533 = vmatpush1.bf16.msra.mxu0 %v435
  %534 = vmatprep.subr.bf16.mxu0 %v404
  %535 = vmatpush1.bf16.msra.mxu0 %v403
  %536 = vmatprep.subr.bf16.mxu0 %v398
  %537 = vmatpush1.bf16.msra.mxu0 %v397
  %538 = vmatprep.subr.bf16.mxu0 0
  %539 = vmatpush2.bf16.msra.mxu0 0
  %540 = vmatprep.subr.bf16.mxu0 0
  %541 = vmatpush2.bf16.msra.mxu0 0
  %542 = vmatprep.subr.bf16.mxu0 0
  %543 = vmatpush2.bf16.msra.mxu0 0
  %544 = vmatprep.subr.bf16.mxu0 0
  %545 = vmatpush2.bf16.msra.mxu0 0
  %546 = vmatprep.subr.bf16.mxu0 0
  %547 = vmatpush2.bf16.msra.mxu0 0
  %548 = vmatprep.subr.bf16.mxu0 0
  %549 = vmatpush2.bf16.msra.mxu0 0
  %550 = vmatprep.subr.bf16.mxu0 0
  %551 = vmatpush2.bf16.msra.mxu0 0
  %552 = vmatprep.subr.bf16.mxu0 0
  %553 = vmatpush2.bf16.msra.mxu0 0
  %554 = vmatprep.mubr.bf16.mxu0 0
  %555 = vmatmul.mubr.bf16.gmra.mxu0 %v419
  %v556 = vpop.f32.mrf.mxu0
  %v557 = vadd.f32 %v415, %v556
  %v558 = vpop.f32.mrf.mxu0
  %v559 = vadd.f32 %v415, %v558
  %v560 = vpop.f32.mrf.mxu0
  %v561 = vpop.f32.mrf.mxu0
  %562 = vdwg.mxu0
  %v563 = vmax.f32 %v475, 0.0
  %v564 = vmax.f32 %v477, 0.0
  %v565 = vmax.f32 %v516, 0.0
  %v566 = vmax.f32 %v518, 0.0
  %v567 = vmax.f32 %v557, 0.0
  %v568 = vmax.f32 %v559, 0.0
  %569 = vst [vmem:[#allocation6] sm:$0xff] %v563
  %570 = vst [vmem:[#allocation6 + $0x8] sm:$0xff] %v564
  %571 = vst [vmem:[#allocation6 + $0x10] sm:$0xff] %v565
  %572 = vst [vmem:[#allocation6 + $0x18] sm:$0xff] %v566
  %573 = vst [vmem:[#allocation6 + $0x20] sm:$0xff] %v567
  %vm574 = vcmask 64512
  %575 = vst.msk [vmem:[#allocation6 + $0x28] sm:$0xff] %vm574, %v568
  %v576 = vld [vmem:[#allocation6] sm:$0xff]
  %v577 = vld [vmem:[#allocation6 + $0x8] sm:$0xff]
  %v578 = vld [vmem:[#allocation6 + $0x10] sm:$0xff]
  %v579 = vld [vmem:[#allocation6 + $0x18] sm:$0xff]
  %v580 = vld [vmem:[#allocation6 + $0x20] sm:$0xff]
  %v581 = vld [vmem:[#allocation6 + $0x28] sm:$0xff]
  %588 = vrot.lane.b32.xlu0 %v576, 127
  %v589 = vpop.permute.xlu0 %588
  %590 = vrot.lane.b32.xlu0 %v577, 127
  %v591 = vpop.permute.xlu0 %590
  %592 = vrot.lane.b32.xlu0 %v578, 127
  %v593 = vpop.permute.xlu0 %592
  %594 = vrot.lane.b32.xlu0 %v579, 127
  %v595 = vpop.permute.xlu0 %594
  %596 = vrot.lane.b32.xlu0 %v580, 127
  %v597 = vpop.permute.xlu0 %596
  %598 = vrot.lane.b32.xlu0 %v581, 127
  %v599 = vpop.permute.xlu0 %598
  %v600 = vsel %vm70, %v589, %v591
  %v601 = vsel %vm70, %v591, %v593
  %v602 = vsel %vm70, %v593, %v595
  %v603 = vsel %vm70, %v595, %v597
  %v604 = vsel %vm70, %v597, %v599
  %v611 = vmax.f32 %v576, %v600
  %v612 = vmax.f32 %v577, %v601
  %v613 = vmax.f32 %v578, %v602
  %v614 = vmax.f32 %v579, %v603
  %v615 = vmax.f32 %v580, %v604
  %v616 = vmax.f32 %v581, %v599
  %623 = vrot.lane.b32.xlu0 %v611, 110
  %v624 = vpop.permute.xlu0 %623
  %625 = vrot.lane.b32.xlu0 %v612, 110
  %v626 = vpop.permute.xlu0 %625
  %627 = vrot.lane.b32.xlu0 %v613, 110
  %v628 = vpop.permute.xlu0 %627
  %629 = vrot.lane.b32.xlu0 %v614, 110
  %v630 = vpop.permute.xlu0 %629
  %631 = vrot.lane.b32.xlu0 %v615, 110
  %v632 = vpop.permute.xlu0 %631
  %633 = vrot.lane.b32.xlu0 %v616, 110
  %v634 = vpop.permute.xlu0 %633
  %v635 = vsel %vm149, %v624, %v626
  %v636 = vsel %vm149, %v626, %v628
  %v637 = vsel %vm149, %v628, %v630
  %v638 = vsel %vm149, %v630, %v632
  %v639 = vsel %vm149, %v632, %v634
  %v646 = vmax.f32 %v611, %v635
  %v647 = vmax.f32 %v612, %v636
  %v648 = vmax.f32 %v613, %v637
  %v649 = vmax.f32 %v614, %v638
  %v650 = vmax.f32 %v615, %v639
  %v651 = vmax.f32 %v616, %v634
  %652 = vst [vmem:[#allocation6] sm:$0xff] %v646
  %653 = vst [vmem:[#allocation6 + $0x8] sm:$0xff] %v647
  %654 = vst [vmem:[#allocation6 + $0x10] sm:$0xff] %v648
  %655 = vst [vmem:[#allocation6 + $0x18] sm:$0xff] %v649
  %656 = vst [vmem:[#allocation6 + $0x20] sm:$0xff] %v650
  %657 = vst.msk [vmem:[#allocation6 + $0x28] sm:$0xff] %vm574, %v651
  %v658 = vld [vmem:[%s2] sm:$0xff]
  %v659 = vld [vmem:[%s2 + $0x8] sm:$0xff]
  %v660 = vld [vmem:[#allocation6] sm:$0xff]
  %662 = vrot.lane.b32.xlu0 %v660, 109
  %v663 = vpop.permute.xlu0 %662
  %666 = vrot.lane.b32.xlu0 %v658, 120
  %v667 = vpop.permute.xlu0 %666
  %668 = vrot.lane.b32.xlu0 %v659, 120
  %v669 = vpop.permute.xlu0 %668
  %vm672 = vcmask 130048
  %v673 = vsel %vm672, %v663, 0
  %675 = vmatprep.subr.mxu0 0.0
  %676 = vmatpush1.msra.mxu0 0.0
  %677 = vmatprep.subr.mxu0 0.0
  %678 = vmatpush1.msra.mxu0 0.0
  %679 = vmatprep.subr.mxu0 0.0
  %680 = vmatpush1.msra.mxu0 0.0
  %681 = vmatprep.subr.mxu0 0.0
  %682 = vmatpush1.msra.mxu0 0.0
  %683 = vmatprep.subr.mxu0 0.0
  %684 = vmatpush1.msra.mxu0 0.0
  %685 = vmatprep.subr.mxu0 0.0
  %686 = vmatpush1.msra.mxu0 0.0
  %687 = vmatprep.subr.mxu0 0.0
  %688 = vmatpush1.msra.mxu0 0.0
  %689 = vmatprep.subr.mxu0 0.0
  %690 = vmatpush1.msra.mxu0 0.0
  %691 = vmatprep.subr.mxu0 0.0
  %692 = vmatpush1.msra.mxu0 0.0
  %693 = vmatprep.subr.mxu0 0.0
  %694 = vmatpush1.msra.mxu0 0.0
  %695 = vmatprep.subr.mxu0 0.0
  %696 = vmatpush1.msra.mxu0 0.0
  %697 = vmatprep.subr.mxu0 0.0
  %698 = vmatpush1.msra.mxu0 0.0
  %699 = vmatprep.subr.mxu0 0.0
  %700 = vmatpush1.msra.mxu0 0.0
  %701 = vmatprep.subr.mxu0 0.0
  %702 = vmatpush1.msra.mxu0 0.0
  %703 = vmatprep.subr.mxu0 0.0
  %704 = vmatpush1.msra.mxu0 %v669
  %705 = vmatprep.subr.mxu0 0.0
  %706 = vmatpush1.msra.mxu0 %v667
  %707 = vmatprep.subr.mxu0 0.0
  %708 = vmatpush2.msra.mxu0 0.0
  %709 = vmatprep.subr.mxu0 0.0
  %710 = vmatpush2.msra.mxu0 0.0
  %711 = vmatprep.subr.mxu0 0.0
  %712 = vmatpush2.msra.mxu0 0.0
  %713 = vmatprep.subr.mxu0 0.0
  %714 = vmatpush2.msra.mxu0 0.0
  %715 = vmatprep.subr.mxu0 0.0
  %716 = vmatpush2.msra.mxu0 0.0
  %717 = vmatprep.subr.mxu0 0.0
  %718 = vmatpush2.msra.mxu0 0.0
  %719 = vmatprep.subr.mxu0 0.0
  %720 = vmatpush2.msra.mxu0 0.0
  %721 = vmatprep.subr.mxu0 0.0
  %722 = vmatpush2.msra.mxu0 0.0
  %723 = vmatprep.subr.mxu0 0.0
  %724 = vmatpush2.msra.mxu0 0.0
  %725 = vmatprep.subr.mxu0 0.0
  %726 = vmatpush2.msra.mxu0 0.0
  %727 = vmatprep.subr.mxu0 0.0
  %728 = vmatpush2.msra.mxu0 0.0
  %729 = vmatprep.subr.mxu0 0.0
  %730 = vmatpush2.msra.mxu0 0.0
  %731 = vmatprep.subr.mxu0 0.0
  %732 = vmatpush2.msra.mxu0 0.0
  %733 = vmatprep.subr.mxu0 0.0
  %734 = vmatpush2.msra.mxu0 0.0
  %735 = vmatprep.subr.mxu0 0.0
  %736 = vmatpush2.msra.mxu0 0.0
  %737 = vmatprep.subr.mxu0 0.0
  %738 = vmatpush2.msra.mxu0 0.0
  %739 = vmatprep.mubr.f32.mxu0 0.0
  %740 = vmatmul.mubr.f32.gmra.mxu0 %v673
  %v741 = vpop.f32.mrf.mxu0
  %v742 = vadd.f32 0.0, %v741
  %v743 = vpop.f32.mrf.mxu0
  %744 = vdwg.mxu0
  %746 = vrot.lane.b32.xlu0 %v742, 22
  %v747 = vpop.permute.xlu0 %746
  %vm749 = vcmask 244912
  %750 = vst.msk [vmem:[#allocation7] sm:$0xff] %vm749, %v747
  %v751 = vld [vmem:[#allocation6] sm:$0xff]
  %753 = vrot.lane.b32.xlu0 %v751, 73
  %v754 = vpop.permute.xlu0 %753
  %v755 = vsel %vm672, %v754, 0
  %757 = vmatprep.subr.mxu0 0.0
  %758 = vmatpush1.msra.mxu0 0.0
  %759 = vmatprep.subr.mxu0 0.0
  %760 = vmatpush1.msra.mxu0 0.0
  %761 = vmatprep.subr.mxu0 0.0
  %762 = vmatpush1.msra.mxu0 0.0
  %763 = vmatprep.subr.mxu0 0.0
  %764 = vmatpush1.msra.mxu0 0.0
  %765 = vmatprep.subr.mxu0 0.0
  %766 = vmatpush1.msra.mxu0 0.0
  %767 = vmatprep.subr.mxu0 0.0
  %768 = vmatpush1.msra.mxu0 0.0
  %769 = vmatprep.subr.mxu0 0.0
  %770 = vmatpush1.msra.mxu0 0.0
  %771 = vmatprep.subr.mxu0 0.0
  %772 = vmatpush1.msra.mxu0 0.0
  %773 = vmatprep.subr.mxu0 0.0
  %774 = vmatpush1.msra.mxu0 0.0
  %775 = vmatprep.subr.mxu0 0.0
  %776 = vmatpush1.msra.mxu0 0.0
  %777 = vmatprep.subr.mxu0 0.0
  %778 = vmatpush1.msra.mxu0 0.0
  %779 = vmatprep.subr.mxu0 0.0
  %780 = vmatpush1.msra.mxu0 0.0
  %781 = vmatprep.subr.mxu0 0.0
  %782 = vmatpush1.msra.mxu0 0.0
  %783 = vmatprep.subr.mxu0 0.0
  %784 = vmatpush1.msra.mxu0 0.0
  %785 = vmatprep.subr.mxu0 0.0
  %786 = vmatpush1.msra.mxu0 %v669
  %787 = vmatprep.subr.mxu0 0.0
  %788 = vmatpush1.msra.mxu0 %v667
  %789 = vmatprep.subr.mxu0 0.0
  %790 = vmatpush2.msra.mxu0 0.0
  %791 = vmatprep.subr.mxu0 0.0
  %792 = vmatpush2.msra.mxu0 0.0
  %793 = vmatprep.subr.mxu0 0.0
  %794 = vmatpush2.msra.mxu0 0.0
  %795 = vmatprep.subr.mxu0 0.0
  %796 = vmatpush2.msra.mxu0 0.0
  %797 = vmatprep.subr.mxu0 0.0
  %798 = vmatpush2.msra.mxu0 0.0
  %799 = vmatprep.subr.mxu0 0.0
  %800 = vmatpush2.msra.mxu0 0.0
  %801 = vmatprep.subr.mxu0 0.0
  %802 = vmatpush2.msra.mxu0 0.0
  %803 = vmatprep.subr.mxu0 0.0
  %804 = vmatpush2.msra.mxu0 0.0
  %805 = vmatprep.subr.mxu0 0.0
  %806 = vmatpush2.msra.mxu0 0.0
  %807 = vmatprep.subr.mxu0 0.0
  %808 = vmatpush2.msra.mxu0 0.0
  %809 = vmatprep.subr.mxu0 0.0
  %810 = vmatpush2.msra.mxu0 0.0
  %811 = vmatprep.subr.mxu0 0.0
  %812 = vmatpush2.msra.mxu0 0.0
  %813 = vmatprep.subr.mxu0 0.0
  %814 = vmatpush2.msra.mxu0 0.0
  %815 = vmatprep.subr.mxu0 0.0
  %816 = vmatpush2.msra.mxu0 0.0
  %817 = vmatprep.subr.mxu0 0.0
  %818 = vmatpush2.msra.mxu0 0.0
  %819 = vmatprep.subr.mxu0 0.0
  %820 = vmatpush2.msra.mxu0 0.0
  %821 = vmatprep.mubr.f32.mxu0 0.0
  %822 = vmatmul.mubr.f32.gmra.mxu0 %v755
  %v823 = vpop.f32.mrf.mxu0
  %v824 = vadd.f32 0.0, %v823
  %v825 = vpop.f32.mrf.mxu0
  %826 = vdwg.mxu0
  %828 = vrot.lane.b32.xlu0 %v824, 32
  %v829 = vpop.permute.xlu0 %828
  %vm831 = vcmask 326912
  %832 = vst.msk [vmem:[#allocation7] sm:$0xff] %vm831, %v829
  %v833 = vld [vmem:[#allocation6] sm:$0xff]
  %835 = vrot.lane.b32.xlu0 %v833, 37
  %v836 = vpop.permute.xlu0 %835
  %v837 = vsel %vm672, %v836, 0
  %839 = vmatprep.subr.mxu0 0.0
  %840 = vmatpush1.msra.mxu0 0.0
  %841 = vmatprep.subr.mxu0 0.0
  %842 = vmatpush1.msra.mxu0 0.0
  %843 = vmatprep.subr.mxu0 0.0
  %844 = vmatpush1.msra.mxu0 0.0
  %845 = vmatprep.subr.mxu0 0.0
  %846 = vmatpush1.msra.mxu0 0.0
  %847 = vmatprep.subr.mxu0 0.0
  %848 = vmatpush1.msra.mxu0 0.0
  %849 = vmatprep.subr.mxu0 0.0
  %850 = vmatpush1.msra.mxu0 0.0
  %851 = vmatprep.subr.mxu0 0.0
  %852 = vmatpush1.msra.mxu0 0.0
  %853 = vmatprep.subr.mxu0 0.0
  %854 = vmatpush1.msra.mxu0 0.0
  %855 = vmatprep.subr.mxu0 0.0
  %856 = vmatpush1.msra.mxu0 0.0
  %857 = vmatprep.subr.mxu0 0.0
  %858 = vmatpush1.msra.mxu0 0.0
  %859 = vmatprep.subr.mxu0 0.0
  %860 = vmatpush1.msra.mxu0 0.0
  %861 = vmatprep.subr.mxu0 0.0
  %862 = vmatpush1.msra.mxu0 0.0
  %863 = vmatprep.subr.mxu0 0.0
  %864 = vmatpush1.msra.mxu0 0.0
  %865 = vmatprep.subr.mxu0 0.0
  %866 = vmatpush1.msra.mxu0 0.0
  %867 = vmatprep.subr.mxu0 0.0
  %868 = vmatpush1.msra.mxu0 %v669
  %869 = vmatprep.subr.mxu0 0.0
  %870 = vmatpush1.msra.mxu0 %v667
  %871 = vmatprep.subr.mxu0 0.0
  %872 = vmatpush2.msra.mxu0 0.0
  %873 = vmatprep.subr.mxu0 0.0
  %874 = vmatpush2.msra.mxu0 0.0
  %875 = vmatprep.subr.mxu0 0.0
  %876 = vmatpush2.msra.mxu0 0.0
  %877 = vmatprep.subr.mxu0 0.0
  %878 = vmatpush2.msra.mxu0 0.0
  %879 = vmatprep.subr.mxu0 0.0
  %880 = vmatpush2.msra.mxu0 0.0
  %881 = vmatprep.subr.mxu0 0.0
  %882 = vmatpush2.msra.mxu0 0.0
  %883 = vmatprep.subr.mxu0 0.0
  %884 = vmatpush2.msra.mxu0 0.0
  %885 = vmatprep.subr.mxu0 0.0
  %886 = vmatpush2.msra.mxu0 0.0
  %887 = vmatprep.subr.mxu0 0.0
  %888 = vmatpush2.msra.mxu0 0.0
  %889 = vmatprep.subr.mxu0 0.0
  %890 = vmatpush2.msra.mxu0 0.0
  %891 = vmatprep.subr.mxu0 0.0
  %892 = vmatpush2.msra.mxu0 0.0
  %893 = vmatprep.subr.mxu0 0.0
  %894 = vmatpush2.msra.mxu0 0.0
  %895 = vmatprep.subr.mxu0 0.0
  %896 = vmatpush2.msra.mxu0 0.0
  %897 = vmatprep.subr.mxu0 0.0
  %898 = vmatpush2.msra.mxu0 0.0
  %899 = vmatprep.subr.mxu0 0.0
  %900 = vmatpush2.msra.mxu0 0.0
  %901 = vmatprep.subr.mxu0 0.0
  %902 = vmatpush2.msra.mxu0 0.0
  %903 = vmatprep.mubr.f32.mxu0 0.0
  %904 = vmatmul.mubr.f32.gmra.mxu0 %v837
  %v905 = vpop.f32.mrf.mxu0
  %v906 = vadd.f32 0.0, %v905
  %v907 = vpop.f32.mrf.mxu0
  %908 = vdwg.mxu0
  %910 = vrot.lane.b32.xlu0 %v906, 42
  %v911 = vpop.permute.xlu0 %910
  %vm913 = vcmask 408912
  %914 = vst.msk [vmem:[#allocation7] sm:$0xff] %vm913, %v911
  %v915 = vld [vmem:[#allocation6] sm:$0xff]
  %v916 = vld [vmem:[#allocation6 + $0x8] sm:$0xff]
  %919 = vrot.lane.b32.xlu0 %v915, 1
  %v920 = vpop.permute.xlu0 %919
  %921 = vrot.lane.b32.xlu0 %v916, 1
  %v922 = vpop.permute.xlu0 %921
  %vm923 = vcmask 7168
  %v924 = vsel %vm923, %v920, %v922
  %v925 = vsel %vm672, %v924, 0
  %927 = vmatprep.subr.mxu0 0.0
  %928 = vmatpush1.msra.mxu0 0.0
  %929 = vmatprep.subr.mxu0 0.0
  %930 = vmatpush1.msra.mxu0 0.0
  %931 = vmatprep.subr.mxu0 0.0
  %932 = vmatpush1.msra.mxu0 0.0
  %933 = vmatprep.subr.mxu0 0.0
  %934 = vmatpush1.msra.mxu0 0.0
  %935 = vmatprep.subr.mxu0 0.0
  %936 = vmatpush1.msra.mxu0 0.0
  %937 = vmatprep.subr.mxu0 0.0
  %938 = vmatpush1.msra.mxu0 0.0
  %939 = vmatprep.subr.mxu0 0.0
  %940 = vmatpush1.msra.mxu0 0.0
  %941 = vmatprep.subr.mxu0 0.0
  %942 = vmatpush1.msra.mxu0 0.0
  %943 = vmatprep.subr.mxu0 0.0
  %944 = vmatpush1.msra.mxu0 0.0
  %945 = vmatprep.subr.mxu0 0.0
  %946 = vmatpush1.msra.mxu0 0.0
  %947 = vmatprep.subr.mxu0 0.0
  %948 = vmatpush1.msra.mxu0 0.0
  %949 = vmatprep.subr.mxu0 0.0
  %950 = vmatpush1.msra.mxu0 0.0
  %951 = vmatprep.subr.mxu0 0.0
  %952 = vmatpush1.msra.mxu0 0.0
  %953 = vmatprep.subr.mxu0 0.0
  %954 = vmatpush1.msra.mxu0 0.0
  %955 = vmatprep.subr.mxu0 0.0
  %956 = vmatpush1.msra.mxu0 %v669
  %957 = vmatprep.subr.mxu0 0.0
  %958 = vmatpush1.msra.mxu0 %v667
  %959 = vmatprep.subr.mxu0 0.0
  %960 = vmatpush2.msra.mxu0 0.0
  %961 = vmatprep.subr.mxu0 0.0
  %962 = vmatpush2.msra.mxu0 0.0
  %963 = vmatprep.subr.mxu0 0.0
  %964 = vmatpush2.msra.mxu0 0.0
  %965 = vmatprep.subr.mxu0 0.0
  %966 = vmatpush2.msra.mxu0 0.0
  %967 = vmatprep.subr.mxu0 0.0
  %968 = vmatpush2.msra.mxu0 0.0
  %969 = vmatprep.subr.mxu0 0.0
  %970 = vmatpush2.msra.mxu0 0.0
  %971 = vmatprep.subr.mxu0 0.0
  %972 = vmatpush2.msra.mxu0 0.0
  %973 = vmatprep.subr.mxu0 0.0
  %974 = vmatpush2.msra.mxu0 0.0
  %975 = vmatprep.subr.mxu0 0.0
  %976 = vmatpush2.msra.mxu0 0.0
  %977 = vmatprep.subr.mxu0 0.0
  %978 = vmatpush2.msra.mxu0 0.0
  %979 = vmatprep.subr.mxu0 0.0
  %980 = vmatpush2.msra.mxu0 0.0
  %981 = vmatprep.subr.mxu0 0.0
  %982 = vmatpush2.msra.mxu0 0.0
  %983 = vmatprep.subr.mxu0 0.0
  %984 = vmatpush2.msra.mxu0 0.0
  %985 = vmatprep.subr.mxu0 0.0
  %986 = vmatpush2.msra.mxu0 0.0
  %987 = vmatprep.subr.mxu0 0.0
  %988 = vmatpush2.msra.mxu0 0.0
  %989 = vmatprep.subr.mxu0 0.0
  %990 = vmatpush2.msra.mxu0 0.0
  %991 = vmatprep.mubr.f32.mxu0 0.0
  %992 = vmatmul.mubr.f32.gmra.mxu0 %v925
  %v993 = vpop.f32.mrf.mxu0
  %v994 = vadd.f32 0.0, %v993
  %v995 = vpop.f32.mrf.mxu0
  %996 = vdwg.mxu0
  %998 = vrot.lane.b32.xlu0 %v994, 52
  %v999 = vpop.permute.xlu0 %998
  %vm1001 = vcmask 490912
  %1002 = vst.msk [vmem:[#allocation7] sm:$0xff] %vm1001, %v999
  %v1003 = vld [vmem:[#allocation6 + $0x8] sm:$0xff]
  %1005 = vrot.lane.b32.xlu0 %v1003, 93
  %v1006 = vpop.permute.xlu0 %1005
  %v1007 = vsel %vm672, %v1006, 0
  %1009 = vmatprep.subr.mxu0 0.0
  %1010 = vmatpush1.msra.mxu0 0.0
  %1011 = vmatprep.subr.mxu0 0.0
  %1012 = vmatpush1.msra.mxu0 0.0
  %1013 = vmatprep.subr.mxu0 0.0
  %1014 = vmatpush1.msra.mxu0 0.0
  %1015 = vmatprep.subr.mxu0 0.0
  %1016 = vmatpush1.msra.mxu0 0.0
  %1017 = vmatprep.subr.mxu0 0.0
  %1018 = vmatpush1.msra.mxu0 0.0
  %1019 = vmatprep.subr.mxu0 0.0
  %1020 = vmatpush1.msra.mxu0 0.0
  %1021 = vmatprep.subr.mxu0 0.0
  %1022 = vmatpush1.msra.mxu0 0.0
  %1023 = vmatprep.subr.mxu0 0.0
  %1024 = vmatpush1.msra.mxu0 0.0
  %1025 = vmatprep.subr.mxu0 0.0
  %1026 = vmatpush1.msra.mxu0 0.0
  %1027 = vmatprep.subr.mxu0 0.0
  %1028 = vmatpush1.msra.mxu0 0.0
  %1029 = vmatprep.subr.mxu0 0.0
  %1030 = vmatpush1.msra.mxu0 0.0
  %1031 = vmatprep.subr.mxu0 0.0
  %1032 = vmatpush1.msra.mxu0 0.0
  %1033 = vmatprep.subr.mxu0 0.0
  %1034 = vmatpush1.msra.mxu0 0.0
  %1035 = vmatprep.subr.mxu0 0.0
  %1036 = vmatpush1.msra.mxu0 0.0
  %1037 = vmatprep.subr.mxu0 0.0
  %1038 = vmatpush1.msra.mxu0 %v669
  %1039 = vmatprep.subr.mxu0 0.0
  %1040 = vmatpush1.msra.mxu0 %v667
  %1041 = vmatprep.subr.mxu0 0.0
  %1042 = vmatpush2.msra.mxu0 0.0
  %1043 = vmatprep.subr.mxu0 0.0
  %1044 = vmatpush2.msra.mxu0 0.0
  %1045 = vmatprep.subr.mxu0 0.0
  %1046 = vmatpush2.msra.mxu0 0.0
  %1047 = vmatprep.subr.mxu0 0.0
  %1048 = vmatpush2.msra.mxu0 0.0
  %1049 = vmatprep.subr.mxu0 0.0
  %1050 = vmatpush2.msra.mxu0 0.0
  %1051 = vmatprep.subr.mxu0 0.0
  %1052 = vmatpush2.msra.mxu0 0.0
  %1053 = vmatprep.subr.mxu0 0.0
  %1054 = vmatpush2.msra.mxu0 0.0
  %1055 = vmatprep.subr.mxu0 0.0
  %1056 = vmatpush2.msra.mxu0 0.0
  %1057 = vmatprep.subr.mxu0 0.0
  %1058 = vmatpush2.msra.mxu0 0.0
  %1059 = vmatprep.subr.mxu0 0.0
  %1060 = vmatpush2.msra.mxu0 0.0
  %1061 = vmatprep.subr.mxu0 0.0
  %1062 = vmatpush2.msra.mxu0 0.0
  %1063 = vmatprep.subr.mxu0 0.0
  %1064 = vmatpush2.msra.mxu0 0.0
  %1065 = vmatprep.subr.mxu0 0.0
  %1066 = vmatpush2.msra.mxu0 0.0
  %1067 = vmatprep.subr.mxu0 0.0
  %1068 = vmatpush2.msra.mxu0 0.0
  %1069 = vmatprep.subr.mxu0 0.0
  %1070 = vmatpush2.msra.mxu0 0.0
  %1071 = vmatprep.subr.mxu0 0.0
  %1072 = vmatpush2.msra.mxu0 0.0
  %1073 = vmatprep.mubr.f32.mxu0 0.0
  %1074 = vmatmul.mubr.f32.gmra.mxu0 %v1007
  %v1075 = vpop.f32.mrf.mxu0
  %v1076 = vadd.f32 0.0, %v1075
  %v1077 = vpop.f32.mrf.mxu0
  %1078 = vdwg.mxu0
  %1080 = vrot.lane.b32.xlu0 %v1076, 62
  %v1081 = vpop.permute.xlu0 %1080
  %vm1083 = vcmask 572912
  %1084 = vst.msk [vmem:[#allocation7] sm:$0xff] %vm1083, %v1081
  %v1085 = vld [vmem:[#allocation6 + $0x8] sm:$0xff]
  %1087 = vrot.lane.b32.xlu0 %v1085, 57
  %v1088 = vpop.permute.xlu0 %1087
  %v1089 = vsel %vm672, %v1088, 0
  %1091 = vmatprep.subr.mxu0 0.0
  %1092 = vmatpush1.msra.mxu0 0.0
  %1093 = vmatprep.subr.mxu0 0.0
  %1094 = vmatpush1.msra.mxu0 0.0
  %1095 = vmatprep.subr.mxu0 0.0
  %1096 = vmatpush1.msra.mxu0 0.0
  %1097 = vmatprep.subr.mxu0 0.0
  %1098 = vmatpush1.msra.mxu0 0.0
  %1099 = vmatprep.subr.mxu0 0.0
  %1100 = vmatpush1.msra.mxu0 0.0
  %1101 = vmatprep.subr.mxu0 0.0
  %1102 = vmatpush1.msra.mxu0 0.0
  %1103 = vmatprep.subr.mxu0 0.0
  %1104 = vmatpush1.msra.mxu0 0.0
  %1105 = vmatprep.subr.mxu0 0.0
  %1106 = vmatpush1.msra.mxu0 0.0
  %1107 = vmatprep.subr.mxu0 0.0
  %1108 = vmatpush1.msra.mxu0 0.0
  %1109 = vmatprep.subr.mxu0 0.0
  %1110 = vmatpush1.msra.mxu0 0.0
  %1111 = vmatprep.subr.mxu0 0.0
  %1112 = vmatpush1.msra.mxu0 0.0
  %1113 = vmatprep.subr.mxu0 0.0
  %1114 = vmatpush1.msra.mxu0 0.0
  %1115 = vmatprep.subr.mxu0 0.0
  %1116 = vmatpush1.msra.mxu0 0.0
  %1117 = vmatprep.subr.mxu0 0.0
  %1118 = vmatpush1.msra.mxu0 0.0
  %1119 = vmatprep.subr.mxu0 0.0
  %1120 = vmatpush1.msra.mxu0 %v669
  %1121 = vmatprep.subr.mxu0 0.0
  %1122 = vmatpush1.msra.mxu0 %v667
  %1123 = vmatprep.subr.mxu0 0.0
  %1124 = vmatpush2.msra.mxu0 0.0
  %1125 = vmatprep.subr.mxu0 0.0
  %1126 = vmatpush2.msra.mxu0 0.0
  %1127 = vmatprep.subr.mxu0 0.0
  %1128 = vmatpush2.msra.mxu0 0.0
  %1129 = vmatprep.subr.mxu0 0.0
  %1130 = vmatpush2.msra.mxu0 0.0
  %1131 = vmatprep.subr.mxu0 0.0
  %1132 = vmatpush2.msra.mxu0 0.0
  %1133 = vmatprep.subr.mxu0 0.0
  %1134 = vmatpush2.msra.mxu0 0.0
  %1135 = vmatprep.subr.mxu0 0.0
  %1136 = vmatpush2.msra.mxu0 0.0
  %1137 = vmatprep.subr.mxu0 0.0
  %1138 = vmatpush2.msra.mxu0 0.0
  %1139 = vmatprep.subr.mxu0 0.0
  %1140 = vmatpush2.msra.mxu0 0.0
  %1141 = vmatprep.subr.mxu0 0.0
  %1142 = vmatpush2.msra.mxu0 0.0
  %1143 = vmatprep.subr.mxu0 0.0
  %1144 = vmatpush2.msra.mxu0 0.0
  %1145 = vmatprep.subr.mxu0 0.0
  %1146 = vmatpush2.msra.mxu0 0.0
  %1147 = vmatprep.subr.mxu0 0.0
  %1148 = vmatpush2.msra.mxu0 0.0
  %1149 = vmatprep.subr.mxu0 0.0
  %1150 = vmatpush2.msra.mxu0 0.0
  %1151 = vmatprep.subr.mxu0 0.0
  %1152 = vmatpush2.msra.mxu0 0.0
  %1153 = vmatprep.subr.mxu0 0.0
  %1154 = vmatpush2.msra.mxu0 0.0
  %1155 = vmatprep.mubr.f32.mxu0 0.0
  %1156 = vmatmul.mubr.f32.gmra.mxu0 %v1089
  %v1157 = vpop.f32.mrf.mxu0
  %v1158 = vadd.f32 0.0, %v1157
  %v1159 = vpop.f32.mrf.mxu0
  %1160 = vdwg.mxu0
  %1162 = vrot.lane.b32.xlu0 %v1158, 72
  %v1163 = vpop.permute.xlu0 %1162
  %vm1165 = vcmask 654912
  %1166 = vst.msk [vmem:[#allocation7] sm:$0xff] %vm1165, %v1163
  %v1167 = vld [vmem:[#allocation6 + $0x8] sm:$0xff]
  %1169 = vrot.lane.b32.xlu0 %v1167, 21
  %v1170 = vpop.permute.xlu0 %1169
  %v1171 = vsel %vm672, %v1170, 0
  %1173 = vmatprep.subr.mxu0 0.0
  %1174 = vmatpush1.msra.mxu0 0.0
  %1175 = vmatprep.subr.mxu0 0.0
  %1176 = vmatpush1.msra.mxu0 0.0
  %1177 = vmatprep.subr.mxu0 0.0
  %1178 = vmatpush1.msra.mxu0 0.0
  %1179 = vmatprep.subr.mxu0 0.0
  %1180 = vmatpush1.msra.mxu0 0.0
  %1181 = vmatprep.subr.mxu0 0.0
  %1182 = vmatpush1.msra.mxu0 0.0
  %1183 = vmatprep.subr.mxu0 0.0
  %1184 = vmatpush1.msra.mxu0 0.0
  %1185 = vmatprep.subr.mxu0 0.0
  %1186 = vmatpush1.msra.mxu0 0.0
  %1187 = vmatprep.subr.mxu0 0.0
  %1188 = vmatpush1.msra.mxu0 0.0
  %1189 = vmatprep.subr.mxu0 0.0
  %1190 = vmatpush1.msra.mxu0 0.0
  %1191 = vmatprep.subr.mxu0 0.0
  %1192 = vmatpush1.msra.mxu0 0.0
  %1193 = vmatprep.subr.mxu0 0.0
  %1194 = vmatpush1.msra.mxu0 0.0
  %1195 = vmatprep.subr.mxu0 0.0
  %1196 = vmatpush1.msra.mxu0 0.0
  %1197 = vmatprep.subr.mxu0 0.0
  %1198 = vmatpush1.msra.mxu0 0.0
  %1199 = vmatprep.subr.mxu0 0.0
  %1200 = vmatpush1.msra.mxu0 0.0
  %1201 = vmatprep.subr.mxu0 0.0
  %1202 = vmatpush1.msra.mxu0 %v669
  %1203 = vmatprep.subr.mxu0 0.0
  %1204 = vmatpush1.msra.mxu0 %v667
  %1205 = vmatprep.subr.mxu0 0.0
  %1206 = vmatpush2.msra.mxu0 0.0
  %1207 = vmatprep.subr.mxu0 0.0
  %1208 = vmatpush2.msra.mxu0 0.0
  %1209 = vmatprep.subr.mxu0 0.0
  %1210 = vmatpush2.msra.mxu0 0.0
  %1211 = vmatprep.subr.mxu0 0.0
  %1212 = vmatpush2.msra.mxu0 0.0
  %1213 = vmatprep.subr.mxu0 0.0
  %1214 = vmatpush2.msra.mxu0 0.0
  %1215 = vmatprep.subr.mxu0 0.0
  %1216 = vmatpush2.msra.mxu0 0.0
  %1217 = vmatprep.subr.mxu0 0.0
  %1218 = vmatpush2.msra.mxu0 0.0
  %1219 = vmatprep.subr.mxu0 0.0
  %1220 = vmatpush2.msra.mxu0 0.0
  %1221 = vmatprep.subr.mxu0 0.0
  %1222 = vmatpush2.msra.mxu0 0.0
  %1223 = vmatprep.subr.mxu0 0.0
  %1224 = vmatpush2.msra.mxu0 0.0
  %1225 = vmatprep.subr.mxu0 0.0
  %1226 = vmatpush2.msra.mxu0 0.0
  %1227 = vmatprep.subr.mxu0 0.0
  %1228 = vmatpush2.msra.mxu0 0.0
  %1229 = vmatprep.subr.mxu0 0.0
  %1230 = vmatpush2.msra.mxu0 0.0
  %1231 = vmatprep.subr.mxu0 0.0
  %1232 = vmatpush2.msra.mxu0 0.0
  %1233 = vmatprep.subr.mxu0 0.0
  %1234 = vmatpush2.msra.mxu0 0.0
  %1235 = vmatprep.subr.mxu0 0.0
  %1236 = vmatpush2.msra.mxu0 0.0
  %1237 = vmatprep.mubr.f32.mxu0 0.0
  %1238 = vmatmul.mubr.f32.gmra.mxu0 %v1171
  %v1239 = vpop.f32.mrf.mxu0
  %v1240 = vadd.f32 0.0, %v1239
  %v1241 = vpop.f32.mrf.mxu0
  %1242 = vdwg.mxu0
  %1244 = vrot.lane.b32.xlu0 %v1240, 82
  %v1245 = vpop.permute.xlu0 %1244
  %vm1247 = vcmask 736912
  %1248 = vst.msk [vmem:[#allocation7] sm:$0xff] %vm1247, %v1245
  %v1249 = vld [vmem:[#allocation6 + $0x10] sm:$0xff]
  %1251 = vrot.lane.b32.xlu0 %v1249, 113
  %v1252 = vpop.permute.xlu0 %1251
  %v1253 = vsel %vm672, %v1252, 0
  %1255 = vmatprep.subr.mxu0 0.0
  %1256 = vmatpush1.msra.mxu0 0.0
  %1257 = vmatprep.subr.mxu0 0.0
  %1258 = vmatpush1.msra.mxu0 0.0
  %1259 = vmatprep.subr.mxu0 0.0
  %1260 = vmatpush1.msra.mxu0 0.0
  %1261 = vmatprep.subr.mxu0 0.0
  %1262 = vmatpush1.msra.mxu0 0.0
  %1263 = vmatprep.subr.mxu0 0.0
  %1264 = vmatpush1.msra.mxu0 0.0
  %1265 = vmatprep.subr.mxu0 0.0
  %1266 = vmatpush1.msra.mxu0 0.0
  %1267 = vmatprep.subr.mxu0 0.0
  %1268 = vmatpush1.msra.mxu0 0.0
  %1269 = vmatprep.subr.mxu0 0.0
  %1270 = vmatpush1.msra.mxu0 0.0
  %1271 = vmatprep.subr.mxu0 0.0
  %1272 = vmatpush1.msra.mxu0 0.0
  %1273 = vmatprep.subr.mxu0 0.0
  %1274 = vmatpush1.msra.mxu0 0.0
  %1275 = vmatprep.subr.mxu0 0.0
  %1276 = vmatpush1.msra.mxu0 0.0
  %1277 = vmatprep.subr.mxu0 0.0
  %1278 = vmatpush1.msra.mxu0 0.0
  %1279 = vmatprep.subr.mxu0 0.0
  %1280 = vmatpush1.msra.mxu0 0.0
  %1281 = vmatprep.subr.mxu0 0.0
  %1282 = vmatpush1.msra.mxu0 0.0
  %1283 = vmatprep.subr.mxu0 0.0
  %1284 = vmatpush1.msra.mxu0 %v669
  %1285 = vmatprep.subr.mxu0 0.0
  %1286 = vmatpush1.msra.mxu0 %v667
  %1287 = vmatprep.subr.mxu0 0.0
  %1288 = vmatpush2.msra.mxu0 0.0
  %1289 = vmatprep.subr.mxu0 0.0
  %1290 = vmatpush2.msra.mxu0 0.0
  %1291 = vmatprep.subr.mxu0 0.0
  %1292 = vmatpush2.msra.mxu0 0.0
  %1293 = vmatprep.subr.mxu0 0.0
  %1294 = vmatpush2.msra.mxu0 0.0
  %1295 = vmatprep.subr.mxu0 0.0
  %1296 = vmatpush2.msra.mxu0 0.0
  %1297 = vmatprep.subr.mxu0 0.0
  %1298 = vmatpush2.msra.mxu0 0.0
  %1299 = vmatprep.subr.mxu0 0.0
  %1300 = vmatpush2.msra.mxu0 0.0
  %1301 = vmatprep.subr.mxu0 0.0
  %1302 = vmatpush2.msra.mxu0 0.0
  %1303 = vmatprep.subr.mxu0 0.0
  %1304 = vmatpush2.msra.mxu0 0.0
  %1305 = vmatprep.subr.mxu0 0.0
  %1306 = vmatpush2.msra.mxu0 0.0
  %1307 = vmatprep.subr.mxu0 0.0
  %1308 = vmatpush2.msra.mxu0 0.0
  %1309 = vmatprep.subr.mxu0 0.0
  %1310 = vmatpush2.msra.mxu0 0.0
  %1311 = vmatprep.subr.mxu0 0.0
  %1312 = vmatpush2.msra.mxu0 0.0
  %1313 = vmatprep.subr.mxu0 0.0
  %1314 = vmatpush2.msra.mxu0 0.0
  %1315 = vmatprep.subr.mxu0 0.0
  %1316 = vmatpush2.msra.mxu0 0.0
  %1317 = vmatprep.subr.mxu0 0.0
  %1318 = vmatpush2.msra.mxu0 0.0
  %1319 = vmatprep.mubr.f32.mxu0 0.0
  %1320 = vmatmul.mubr.f32.gmra.mxu0 %v1253
  %v1321 = vpop.f32.mrf.mxu0
  %v1322 = vadd.f32 0.0, %v1321
  %v1323 = vpop.f32.mrf.mxu0
  %1324 = vdwg.mxu0
  %1326 = vrot.lane.b32.xlu0 %v1322, 92
  %v1327 = vpop.permute.xlu0 %1326
  %vm1329 = vcmask 818912
  %1330 = vst.msk [vmem:[#allocation7] sm:$0xff] %vm1329, %v1327
  %v1331 = vld [vmem:[#allocation6 + $0x10] sm:$0xff]
  %1333 = vrot.lane.b32.xlu0 %v1331, 41
  %v1334 = vpop.permute.xlu0 %1333
  %v1335 = vsel %vm672, %v1334, 0
  %1337 = vmatprep.subr.mxu0 0.0
  %1338 = vmatpush1.msra.mxu0 0.0
  %1339 = vmatprep.subr.mxu0 0.0
  %1340 = vmatpush1.msra.mxu0 0.0
  %1341 = vmatprep.subr.mxu0 0.0
  %1342 = vmatpush1.msra.mxu0 0.0
  %1343 = vmatprep.subr.mxu0 0.0
  %1344 = vmatpush1.msra.mxu0 0.0
  %1345 = vmatprep.subr.mxu0 0.0
  %1346 = vmatpush1.msra.mxu0 0.0
  %1347 = vmatprep.subr.mxu0 0.0
  %1348 = vmatpush1.msra.mxu0 0.0
  %1349 = vmatprep.subr.mxu0 0.0
  %1350 = vmatpush1.msra.mxu0 0.0
  %1351 = vmatprep.subr.mxu0 0.0
  %1352 = vmatpush1.msra.mxu0 0.0
  %1353 = vmatprep.subr.mxu0 0.0
  %1354 = vmatpush1.msra.mxu0 0.0
  %1355 = vmatprep.subr.mxu0 0.0
  %1356 = vmatpush1.msra.mxu0 0.0
  %1357 = vmatprep.subr.mxu0 0.0
  %1358 = vmatpush1.msra.mxu0 0.0
  %1359 = vmatprep.subr.mxu0 0.0
  %1360 = vmatpush1.msra.mxu0 0.0
  %1361 = vmatprep.subr.mxu0 0.0
  %1362 = vmatpush1.msra.mxu0 0.0
  %1363 = vmatprep.subr.mxu0 0.0
  %1364 = vmatpush1.msra.mxu0 0.0
  %1365 = vmatprep.subr.mxu0 0.0
  %1366 = vmatpush1.msra.mxu0 %v669
  %1367 = vmatprep.subr.mxu0 0.0
  %1368 = vmatpush1.msra.mxu0 %v667
  %1369 = vmatprep.subr.mxu0 0.0
  %1370 = vmatpush2.msra.mxu0 0.0
  %1371 = vmatprep.subr.mxu0 0.0
  %1372 = vmatpush2.msra.mxu0 0.0
  %1373 = vmatprep.subr.mxu0 0.0
  %1374 = vmatpush2.msra.mxu0 0.0
  %1375 = vmatprep.subr.mxu0 0.0
  %1376 = vmatpush2.msra.mxu0 0.0
  %1377 = vmatprep.subr.mxu0 0.0
  %1378 = vmatpush2.msra.mxu0 0.0
  %1379 = vmatprep.subr.mxu0 0.0
  %1380 = vmatpush2.msra.mxu0 0.0
  %1381 = vmatprep.subr.mxu0 0.0
  %1382 = vmatpush2.msra.mxu0 0.0
  %1383 = vmatprep.subr.mxu0 0.0
  %1384 = vmatpush2.msra.mxu0 0.0
  %1385 = vmatprep.subr.mxu0 0.0
  %1386 = vmatpush2.msra.mxu0 0.0
  %1387 = vmatprep.subr.mxu0 0.0
  %1388 = vmatpush2.msra.mxu0 0.0
  %1389 = vmatprep.subr.mxu0 0.0
  %1390 = vmatpush2.msra.mxu0 0.0
  %1391 = vmatprep.subr.mxu0 0.0
  %1392 = vmatpush2.msra.mxu0 0.0
  %1393 = vmatprep.subr.mxu0 0.0
  %1394 = vmatpush2.msra.mxu0 0.0
  %1395 = vmatprep.subr.mxu0 0.0
  %1396 = vmatpush2.msra.mxu0 0.0
  %1397 = vmatprep.subr.mxu0 0.0
  %1398 = vmatpush2.msra.mxu0 0.0
  %1399 = vmatprep.subr.mxu0 0.0
  %1400 = vmatpush2.msra.mxu0 0.0
  %1401 = vmatprep.mubr.f32.mxu0 0.0
  %1402 = vmatmul.mubr.f32.gmra.mxu0 %v1335
  %v1403 = vpop.f32.mrf.mxu0
  %v1404 = vadd.f32 0.0, %v1403
  %v1405 = vpop.f32.mrf.mxu0
  %1406 = vdwg.mxu0
  %1408 = vrot.lane.b32.xlu0 %v1404, 122
  %v1409 = vpop.permute.xlu0 %1408
  %vm1411 = vcmask 1048528
  %1412 = vst.msk [vmem:[#allocation7] sm:$0xff] %vm1411, %v1409
  %vm1413 = vcmask 15360
  %1414 = vst.msk [vmem:[#allocation7 + $0x8] sm:$0xff] %vm1413, %v1409
  %v1415 = vld [vmem:[#allocation6 + $0x10] sm:$0xff]
  %v1416 = vld [vmem:[#allocation6 + $0x18] sm:$0xff]
  %1419 = vrot.lane.b32.xlu0 %v1415, 5
  %v1420 = vpop.permute.xlu0 %1419
  %1421 = vrot.lane.b32.xlu0 %v1416, 5
  %v1422 = vpop.permute.xlu0 %1421
  %vm1423 = vcmask 39936
  %v1424 = vsel %vm1423, %v1420, %v1422
  %v1425 = vsel %vm672, %v1424, 0
  %1427 = vmatprep.subr.mxu0 0.0
  %1428 = vmatpush1.msra.mxu0 0.0
  %1429 = vmatprep.subr.mxu0 0.0
  %1430 = vmatpush1.msra.mxu0 0.0
  %1431 = vmatprep.subr.mxu0 0.0
  %1432 = vmatpush1.msra.mxu0 0.0
  %1433 = vmatprep.subr.mxu0 0.0
  %1434 = vmatpush1.msra.mxu0 0.0
  %1435 = vmatprep.subr.mxu0 0.0
  %1436 = vmatpush1.msra.mxu0 0.0
  %1437 = vmatprep.subr.mxu0 0.0
  %1438 = vmatpush1.msra.mxu0 0.0
  %1439 = vmatprep.subr.mxu0 0.0
  %1440 = vmatpush1.msra.mxu0 0.0
  %1441 = vmatprep.subr.mxu0 0.0
  %1442 = vmatpush1.msra.mxu0 0.0
  %1443 = vmatprep.subr.mxu0 0.0
  %1444 = vmatpush1.msra.mxu0 0.0
  %1445 = vmatprep.subr.mxu0 0.0
  %1446 = vmatpush1.msra.mxu0 0.0
  %1447 = vmatprep.subr.mxu0 0.0
  %1448 = vmatpush1.msra.mxu0 0.0
  %1449 = vmatprep.subr.mxu0 0.0
  %1450 = vmatpush1.msra.mxu0 0.0
  %1451 = vmatprep.subr.mxu0 0.0
  %1452 = vmatpush1.msra.mxu0 0.0
  %1453 = vmatprep.subr.mxu0 0.0
  %1454 = vmatpush1.msra.mxu0 0.0
  %1455 = vmatprep.subr.mxu0 0.0
  %1456 = vmatpush1.msra.mxu0 %v669
  %1457 = vmatprep.subr.mxu0 0.0
  %1458 = vmatpush1.msra.mxu0 %v667
  %1459 = vmatprep.subr.mxu0 0.0
  %1460 = vmatpush2.msra.mxu0 0.0
  %1461 = vmatprep.subr.mxu0 0.0
  %1462 = vmatpush2.msra.mxu0 0.0
  %1463 = vmatprep.subr.mxu0 0.0
  %1464 = vmatpush2.msra.mxu0 0.0
  %1465 = vmatprep.subr.mxu0 0.0
  %1466 = vmatpush2.msra.mxu0 0.0
  %1467 = vmatprep.subr.mxu0 0.0
  %1468 = vmatpush2.msra.mxu0 0.0
  %1469 = vmatprep.subr.mxu0 0.0
  %1470 = vmatpush2.msra.mxu0 0.0
  %1471 = vmatprep.subr.mxu0 0.0
  %1472 = vmatpush2.msra.mxu0 0.0
  %1473 = vmatprep.subr.mxu0 0.0
  %1474 = vmatpush2.msra.mxu0 0.0
  %1475 = vmatprep.subr.mxu0 0.0
  %1476 = vmatpush2.msra.mxu0 0.0
  %1477 = vmatprep.subr.mxu0 0.0
  %1478 = vmatpush2.msra.mxu0 0.0
  %1479 = vmatprep.subr.mxu0 0.0
  %1480 = vmatpush2.msra.mxu0 0.0
  %1481 = vmatprep.subr.mxu0 0.0
  %1482 = vmatpush2.msra.mxu0 0.0
  %1483 = vmatprep.subr.mxu0 0.0
  %1484 = vmatpush2.msra.mxu0 0.0
  %1485 = vmatprep.subr.mxu0 0.0
  %1486 = vmatpush2.msra.mxu0 0.0
  %1487 = vmatprep.subr.mxu0 0.0
  %1488 = vmatpush2.msra.mxu0 0.0
  %1489 = vmatprep.subr.mxu0 0.0
  %1490 = vmatpush2.msra.mxu0 0.0
  %1491 = vmatprep.mubr.f32.mxu0 0.0
  %1492 = vmatmul.mubr.f32.gmra.mxu0 %v1425
  %v1493 = vpop.f32.mrf.mxu0
  %v1494 = vadd.f32 0.0, %v1493
  %v1495 = vpop.f32.mrf.mxu0
  %1496 = vdwg.mxu0
  %1498 = vrot.lane.b32.xlu0 %v1494, 4
  %v1499 = vpop.permute.xlu0 %1498
  %vm1501 = vcmask 97312
  %1502 = vst.msk [vmem:[#allocation7 + $0x8] sm:$0xff] %vm1501, %v1499
  %v1503 = vld [vmem:[#allocation6 + $0x18] sm:$0xff]
  %1505 = vrot.lane.b32.xlu0 %v1503, 97
  %v1506 = vpop.permute.xlu0 %1505
  %v1507 = vsel %vm672, %v1506, 0
  %1509 = vmatprep.subr.mxu0 0.0
  %1510 = vmatpush1.msra.mxu0 0.0
  %1511 = vmatprep.subr.mxu0 0.0
  %1512 = vmatpush1.msra.mxu0 0.0
  %1513 = vmatprep.subr.mxu0 0.0
  %1514 = vmatpush1.msra.mxu0 0.0
  %1515 = vmatprep.subr.mxu0 0.0
  %1516 = vmatpush1.msra.mxu0 0.0
  %1517 = vmatprep.subr.mxu0 0.0
  %1518 = vmatpush1.msra.mxu0 0.0
  %1519 = vmatprep.subr.mxu0 0.0
  %1520 = vmatpush1.msra.mxu0 0.0
  %1521 = vmatprep.subr.mxu0 0.0
  %1522 = vmatpush1.msra.mxu0 0.0
  %1523 = vmatprep.subr.mxu0 0.0
  %1524 = vmatpush1.msra.mxu0 0.0
  %1525 = vmatprep.subr.mxu0 0.0
  %1526 = vmatpush1.msra.mxu0 0.0
  %1527 = vmatprep.subr.mxu0 0.0
  %1528 = vmatpush1.msra.mxu0 0.0
  %1529 = vmatprep.subr.mxu0 0.0
  %1530 = vmatpush1.msra.mxu0 0.0
  %1531 = vmatprep.subr.mxu0 0.0
  %1532 = vmatpush1.msra.mxu0 0.0
  %1533 = vmatprep.subr.mxu0 0.0
  %1534 = vmatpush1.msra.mxu0 0.0
  %1535 = vmatprep.subr.mxu0 0.0
  %1536 = vmatpush1.msra.mxu0 0.0
  %1537 = vmatprep.subr.mxu0 0.0
  %1538 = vmatpush1.msra.mxu0 %v669
  %1539 = vmatprep.subr.mxu0 0.0
  %1540 = vmatpush1.msra.mxu0 %v667
  %1541 = vmatprep.subr.mxu0 0.0
  %1542 = vmatpush2.msra.mxu0 0.0
  %1543 = vmatprep.subr.mxu0 0.0
  %1544 = vmatpush2.msra.mxu0 0.0
  %1545 = vmatprep.subr.mxu0 0.0
  %1546 = vmatpush2.msra.mxu0 0.0
  %1547 = vmatprep.subr.mxu0 0.0
  %1548 = vmatpush2.msra.mxu0 0.0
  %1549 = vmatprep.subr.mxu0 0.0
  %1550 = vmatpush2.msra.mxu0 0.0
  %1551 = vmatprep.subr.mxu0 0.0
  %1552 = vmatpush2.msra.mxu0 0.0
  %1553 = vmatprep.subr.mxu0 0.0
  %1554 = vmatpush2.msra.mxu0 0.0
  %1555 = vmatprep.subr.mxu0 0.0
  %1556 = vmatpush2.msra.mxu0 0.0
  %1557 = vmatprep.subr.mxu0 0.0
  %1558 = vmatpush2.msra.mxu0 0.0
  %1559 = vmatprep.subr.mxu0 0.0
  %1560 = vmatpush2.msra.mxu0 0.0
  %1561 = vmatprep.subr.mxu0 0.0
  %1562 = vmatpush2.msra.mxu0 0.0
  %1563 = vmatprep.subr.mxu0 0.0
  %1564 = vmatpush2.msra.mxu0 0.0
  %1565 = vmatprep.subr.mxu0 0.0
  %1566 = vmatpush2.msra.mxu0 0.0
  %1567 = vmatprep.subr.mxu0 0.0
  %1568 = vmatpush2.msra.mxu0 0.0
  %1569 = vmatprep.subr.mxu0 0.0
  %1570 = vmatpush2.msra.mxu0 0.0
  %1571 = vmatprep.subr.mxu0 0.0
  %1572 = vmatpush2.msra.mxu0 0.0
  %1573 = vmatprep.mubr.f32.mxu0 0.0
  %1574 = vmatmul.mubr.f32.gmra.mxu0 %v1507
  %v1575 = vpop.f32.mrf.mxu0
  %v1576 = vadd.f32 0.0, %v1575
  %v1577 = vpop.f32.mrf.mxu0
  %1578 = vdwg.mxu0
  %1580 = vrot.lane.b32.xlu0 %v1576, 14
  %v1581 = vpop.permute.xlu0 %1580
  %vm1583 = vcmask 179312
  %1584 = vst.msk [vmem:[#allocation7 + $0x8] sm:$0xff] %vm1583, %v1581
  %v1585 = vld [vmem:[#allocation6 + $0x18] sm:$0xff]
  %1587 = vrot.lane.b32.xlu0 %v1585, 61
  %v1588 = vpop.permute.xlu0 %1587
  %v1589 = vsel %vm672, %v1588, 0
  %1591 = vmatprep.subr.mxu0 0.0
  %1592 = vmatpush1.msra.mxu0 0.0
  %1593 = vmatprep.subr.mxu0 0.0
  %1594 = vmatpush1.msra.mxu0 0.0
  %1595 = vmatprep.subr.mxu0 0.0
  %1596 = vmatpush1.msra.mxu0 0.0
  %1597 = vmatprep.subr.mxu0 0.0
  %1598 = vmatpush1.msra.mxu0 0.0
  %1599 = vmatprep.subr.mxu0 0.0
  %1600 = vmatpush1.msra.mxu0 0.0
  %1601 = vmatprep.subr.mxu0 0.0
  %1602 = vmatpush1.msra.mxu0 0.0
  %1603 = vmatprep.subr.mxu0 0.0
  %1604 = vmatpush1.msra.mxu0 0.0
  %1605 = vmatprep.subr.mxu0 0.0
  %1606 = vmatpush1.msra.mxu0 0.0
  %1607 = vmatprep.subr.mxu0 0.0
  %1608 = vmatpush1.msra.mxu0 0.0
  %1609 = vmatprep.subr.mxu0 0.0
  %1610 = vmatpush1.msra.mxu0 0.0
  %1611 = vmatprep.subr.mxu0 0.0
  %1612 = vmatpush1.msra.mxu0 0.0
  %1613 = vmatprep.subr.mxu0 0.0
  %1614 = vmatpush1.msra.mxu0 0.0
  %1615 = vmatprep.subr.mxu0 0.0
  %1616 = vmatpush1.msra.mxu0 0.0
  %1617 = vmatprep.subr.mxu0 0.0
  %1618 = vmatpush1.msra.mxu0 0.0
  %1619 = vmatprep.subr.mxu0 0.0
  %1620 = vmatpush1.msra.mxu0 %v669
  %1621 = vmatprep.subr.mxu0 0.0
  %1622 = vmatpush1.msra.mxu0 %v667
  %1623 = vmatprep.subr.mxu0 0.0
  %1624 = vmatpush2.msra.mxu0 0.0
  %1625 = vmatprep.subr.mxu0 0.0
  %1626 = vmatpush2.msra.mxu0 0.0
  %1627 = vmatprep.subr.mxu0 0.0
  %1628 = vmatpush2.msra.mxu0 0.0
  %1629 = vmatprep.subr.mxu0 0.0
  %1630 = vmatpush2.msra.mxu0 0.0
  %1631 = vmatprep.subr.mxu0 0.0
  %1632 = vmatpush2.msra.mxu0 0.0
  %1633 = vmatprep.subr.mxu0 0.0
  %1634 = vmatpush2.msra.mxu0 0.0
  %1635 = vmatprep.subr.mxu0 0.0
  %1636 = vmatpush2.msra.mxu0 0.0
  %1637 = vmatprep.subr.mxu0 0.0
  %1638 = vmatpush2.msra.mxu0 0.0
  %1639 = vmatprep.subr.mxu0 0.0
  %1640 = vmatpush2.msra.mxu0 0.0
  %1641 = vmatprep.subr.mxu0 0.0
  %1642 = vmatpush2.msra.mxu0 0.0
  %1643 = vmatprep.subr.mxu0 0.0
  %1644 = vmatpush2.msra.mxu0 0.0
  %1645 = vmatprep.subr.mxu0 0.0
  %1646 = vmatpush2.msra.mxu0 0.0
  %1647 = vmatprep.subr.mxu0 0.0
  %1648 = vmatpush2.msra.mxu0 0.0
  %1649 = vmatprep.subr.mxu0 0.0
  %1650 = vmatpush2.msra.mxu0 0.0
  %1651 = vmatprep.subr.mxu0 0.0
  %1652 = vmatpush2.msra.mxu0 0.0
  %1653 = vmatprep.subr.mxu0 0.0
  %1654 = vmatpush2.msra.mxu0 0.0
  %1655 = vmatprep.mubr.f32.mxu0 0.0
  %1656 = vmatmul.mubr.f32.gmra.mxu0 %v1589
  %v1657 = vpop.f32.mrf.mxu0
  %v1658 = vadd.f32 0.0, %v1657
  %v1659 = vpop.f32.mrf.mxu0
  %1660 = vdwg.mxu0
  %1662 = vrot.lane.b32.xlu0 %v1658, 24
  %v1663 = vpop.permute.xlu0 %1662
  %vm1665 = vcmask 261312
  %1666 = vst.msk [vmem:[#allocation7 + $0x8] sm:$0xff] %vm1665, %v1663
  %v1667 = vld [vmem:[#allocation6 + $0x18] sm:$0xff]
  %1669 = vrot.lane.b32.xlu0 %v1667, 25
  %v1670 = vpop.permute.xlu0 %1669
  %v1671 = vsel %vm672, %v1670, 0
  %1673 = vmatprep.subr.mxu0 0.0
  %1674 = vmatpush1.msra.mxu0 0.0
  %1675 = vmatprep.subr.mxu0 0.0
  %1676 = vmatpush1.msra.mxu0 0.0
  %1677 = vmatprep.subr.mxu0 0.0
  %1678 = vmatpush1.msra.mxu0 0.0
  %1679 = vmatprep.subr.mxu0 0.0
  %1680 = vmatpush1.msra.mxu0 0.0
  %1681 = vmatprep.subr.mxu0 0.0
  %1682 = vmatpush1.msra.mxu0 0.0
  %1683 = vmatprep.subr.mxu0 0.0
  %1684 = vmatpush1.msra.mxu0 0.0
  %1685 = vmatprep.subr.mxu0 0.0
  %1686 = vmatpush1.msra.mxu0 0.0
  %1687 = vmatprep.subr.mxu0 0.0
  %1688 = vmatpush1.msra.mxu0 0.0
  %1689 = vmatprep.subr.mxu0 0.0
  %1690 = vmatpush1.msra.mxu0 0.0
  %1691 = vmatprep.subr.mxu0 0.0
  %1692 = vmatpush1.msra.mxu0 0.0
  %1693 = vmatprep.subr.mxu0 0.0
  %1694 = vmatpush1.msra.mxu0 0.0
  %1695 = vmatprep.subr.mxu0 0.0
  %1696 = vmatpush1.msra.mxu0 0.0
  %1697 = vmatprep.subr.mxu0 0.0
  %1698 = vmatpush1.msra.mxu0 0.0
  %1699 = vmatprep.subr.mxu0 0.0
  %1700 = vmatpush1.msra.mxu0 0.0
  %1701 = vmatprep.subr.mxu0 0.0
  %1702 = vmatpush1.msra.mxu0 %v669
  %1703 = vmatprep.subr.mxu0 0.0
  %1704 = vmatpush1.msra.mxu0 %v667
  %1705 = vmatprep.subr.mxu0 0.0
  %1706 = vmatpush2.msra.mxu0 0.0
  %1707 = vmatprep.subr.mxu0 0.0
  %1708 = vmatpush2.msra.mxu0 0.0
  %1709 = vmatprep.subr.mxu0 0.0
  %1710 = vmatpush2.msra.mxu0 0.0
  %1711 = vmatprep.subr.mxu0 0.0
  %1712 = vmatpush2.msra.mxu0 0.0
  %1713 = vmatprep.subr.mxu0 0.0
  %1714 = vmatpush2.msra.mxu0 0.0
  %1715 = vmatprep.subr.mxu0 0.0
  %1716 = vmatpush2.msra.mxu0 0.0
  %1717 = vmatprep.subr.mxu0 0.0
  %1718 = vmatpush2.msra.mxu0 0.0
  %1719 = vmatprep.subr.mxu0 0.0
  %1720 = vmatpush2.msra.mxu0 0.0
  %1721 = vmatprep.subr.mxu0 0.0
  %1722 = vmatpush2.msra.mxu0 0.0
  %1723 = vmatprep.subr.mxu0 0.0
  %1724 = vmatpush2.msra.mxu0 0.0
  %1725 = vmatprep.subr.mxu0 0.0
  %1726 = vmatpush2.msra.mxu0 0.0
  %1727 = vmatprep.subr.mxu0 0.0
  %1728 = vmatpush2.msra.mxu0 0.0
  %1729 = vmatprep.subr.mxu0 0.0
  %1730 = vmatpush2.msra.mxu0 0.0
  %1731 = vmatprep.subr.mxu0 0.0
  %1732 = vmatpush2.msra.mxu0 0.0
  %1733 = vmatprep.subr.mxu0 0.0
  %1734 = vmatpush2.msra.mxu0 0.0
  %1735 = vmatprep.subr.mxu0 0.0
  %1736 = vmatpush2.msra.mxu0 0.0
  %1737 = vmatprep.mubr.f32.mxu0 0.0
  %1738 = vmatmul.mubr.f32.gmra.mxu0 %v1671
  %v1739 = vpop.f32.mrf.mxu0
  %v1740 = vadd.f32 0.0, %v1739
  %v1741 = vpop.f32.mrf.mxu0
  %1742 = vdwg.mxu0
  %1744 = vrot.lane.b32.xlu0 %v1740, 34
  %v1745 = vpop.permute.xlu0 %1744
  %vm1747 = vcmask 343312
  %1748 = vst.msk [vmem:[#allocation7 + $0x8] sm:$0xff] %vm1747, %v1745
  %v1749 = vld [vmem:[#allocation6 + $0x20] sm:$0xff]
  %1751 = vrot.lane.b32.xlu0 %v1749, 117
  %v1752 = vpop.permute.xlu0 %1751
  %v1753 = vsel %vm672, %v1752, 0
  %1755 = vmatprep.subr.mxu0 0.0
  %1756 = vmatpush1.msra.mxu0 0.0
  %1757 = vmatprep.subr.mxu0 0.0
  %1758 = vmatpush1.msra.mxu0 0.0
  %1759 = vmatprep.subr.mxu0 0.0
  %1760 = vmatpush1.msra.mxu0 0.0
  %1761 = vmatprep.subr.mxu0 0.0
  %1762 = vmatpush1.msra.mxu0 0.0
  %1763 = vmatprep.subr.mxu0 0.0
  %1764 = vmatpush1.msra.mxu0 0.0
  %1765 = vmatprep.subr.mxu0 0.0
  %1766 = vmatpush1.msra.mxu0 0.0
  %1767 = vmatprep.subr.mxu0 0.0
  %1768 = vmatpush1.msra.mxu0 0.0
  %1769 = vmatprep.subr.mxu0 0.0
  %1770 = vmatpush1.msra.mxu0 0.0
  %1771 = vmatprep.subr.mxu0 0.0
  %1772 = vmatpush1.msra.mxu0 0.0
  %1773 = vmatprep.subr.mxu0 0.0
  %1774 = vmatpush1.msra.mxu0 0.0
  %1775 = vmatprep.subr.mxu0 0.0
  %1776 = vmatpush1.msra.mxu0 0.0
  %1777 = vmatprep.subr.mxu0 0.0
  %1778 = vmatpush1.msra.mxu0 0.0
  %1779 = vmatprep.subr.mxu0 0.0
  %1780 = vmatpush1.msra.mxu0 0.0
  %1781 = vmatprep.subr.mxu0 0.0
  %1782 = vmatpush1.msra.mxu0 0.0
  %1783 = vmatprep.subr.mxu0 0.0
  %1784 = vmatpush1.msra.mxu0 %v669
  %1785 = vmatprep.subr.mxu0 0.0
  %1786 = vmatpush1.msra.mxu0 %v667
  %1787 = vmatprep.subr.mxu0 0.0
  %1788 = vmatpush2.msra.mxu0 0.0
  %1789 = vmatprep.subr.mxu0 0.0
  %1790 = vmatpush2.msra.mxu0 0.0
  %1791 = vmatprep.subr.mxu0 0.0
  %1792 = vmatpush2.msra.mxu0 0.0
  %1793 = vmatprep.subr.mxu0 0.0
  %1794 = vmatpush2.msra.mxu0 0.0
  %1795 = vmatprep.subr.mxu0 0.0
  %1796 = vmatpush2.msra.mxu0 0.0
  %1797 = vmatprep.subr.mxu0 0.0
  %1798 = vmatpush2.msra.mxu0 0.0
  %1799 = vmatprep.subr.mxu0 0.0
  %1800 = vmatpush2.msra.mxu0 0.0
  %1801 = vmatprep.subr.mxu0 0.0
  %1802 = vmatpush2.msra.mxu0 0.0
  %1803 = vmatprep.subr.mxu0 0.0
  %1804 = vmatpush2.msra.mxu0 0.0
  %1805 = vmatprep.subr.mxu0 0.0
  %1806 = vmatpush2.msra.mxu0 0.0
  %1807 = vmatprep.subr.mxu0 0.0
  %1808 = vmatpush2.msra.mxu0 0.0
  %1809 = vmatprep.subr.mxu0 0.0
  %1810 = vmatpush2.msra.mxu0 0.0
  %1811 = vmatprep.subr.mxu0 0.0
  %1812 = vmatpush2.msra.mxu0 0.0
  %1813 = vmatprep.subr.mxu0 0.0
  %1814 = vmatpush2.msra.mxu0 0.0
  %1815 = vmatprep.subr.mxu0 0.0
  %1816 = vmatpush2.msra.mxu0 0.0
  %1817 = vmatprep.subr.mxu0 0.0
  %1818 = vmatpush2.msra.mxu0 0.0
  %1819 = vmatprep.mubr.f32.mxu0 0.0
  %1820 = vmatmul.mubr.f32.gmra.mxu0 %v1753
  %v1821 = vpop.f32.mrf.mxu0
  %v1822 = vadd.f32 0.0, %v1821
  %v1823 = vpop.f32.mrf.mxu0
  %1824 = vdwg.mxu0
  %1826 = vrot.lane.b32.xlu0 %v1822, 44
  %v1827 = vpop.permute.xlu0 %1826
  %vm1829 = vcmask 425312
  %1830 = vst.msk [vmem:[#allocation7 + $0x8] sm:$0xff] %vm1829, %v1827
  %v1831 = vld [vmem:[#allocation6 + $0x20] sm:$0xff]
  %1833 = vrot.lane.b32.xlu0 %v1831, 81
  %v1834 = vpop.permute.xlu0 %1833
  %v1835 = vsel %vm672, %v1834, 0
  %1837 = vmatprep.subr.mxu0 0.0
  %1838 = vmatpush1.msra.mxu0 0.0
  %1839 = vmatprep.subr.mxu0 0.0
  %1840 = vmatpush1.msra.mxu0 0.0
  %1841 = vmatprep.subr.mxu0 0.0
  %1842 = vmatpush1.msra.mxu0 0.0
  %1843 = vmatprep.subr.mxu0 0.0
  %1844 = vmatpush1.msra.mxu0 0.0
  %1845 = vmatprep.subr.mxu0 0.0
  %1846 = vmatpush1.msra.mxu0 0.0
  %1847 = vmatprep.subr.mxu0 0.0
  %1848 = vmatpush1.msra.mxu0 0.0
  %1849 = vmatprep.subr.mxu0 0.0
  %1850 = vmatpush1.msra.mxu0 0.0
  %1851 = vmatprep.subr.mxu0 0.0
  %1852 = vmatpush1.msra.mxu0 0.0
  %1853 = vmatprep.subr.mxu0 0.0
  %1854 = vmatpush1.msra.mxu0 0.0
  %1855 = vmatprep.subr.mxu0 0.0
  %1856 = vmatpush1.msra.mxu0 0.0
  %1857 = vmatprep.subr.mxu0 0.0
  %1858 = vmatpush1.msra.mxu0 0.0
  %1859 = vmatprep.subr.mxu0 0.0
  %1860 = vmatpush1.msra.mxu0 0.0
  %1861 = vmatprep.subr.mxu0 0.0
  %1862 = vmatpush1.msra.mxu0 0.0
  %1863 = vmatprep.subr.mxu0 0.0
  %1864 = vmatpush1.msra.mxu0 0.0
  %1865 = vmatprep.subr.mxu0 0.0
  %1866 = vmatpush1.msra.mxu0 %v669
  %1867 = vmatprep.subr.mxu0 0.0
  %1868 = vmatpush1.msra.mxu0 %v667
  %1869 = vmatprep.subr.mxu0 0.0
  %1870 = vmatpush2.msra.mxu0 0.0
  %1871 = vmatprep.subr.mxu0 0.0
  %1872 = vmatpush2.msra.mxu0 0.0
  %1873 = vmatprep.subr.mxu0 0.0
  %1874 = vmatpush2.msra.mxu0 0.0
  %1875 = vmatprep.subr.mxu0 0.0
  %1876 = vmatpush2.msra.mxu0 0.0
  %1877 = vmatprep.subr.mxu0 0.0
  %1878 = vmatpush2.msra.mxu0 0.0
  %1879 = vmatprep.subr.mxu0 0.0
  %1880 = vmatpush2.msra.mxu0 0.0
  %1881 = vmatprep.subr.mxu0 0.0
  %1882 = vmatpush2.msra.mxu0 0.0
  %1883 = vmatprep.subr.mxu0 0.0
  %1884 = vmatpush2.msra.mxu0 0.0
  %1885 = vmatprep.subr.mxu0 0.0
  %1886 = vmatpush2.msra.mxu0 0.0
  %1887 = vmatprep.subr.mxu0 0.0
  %1888 = vmatpush2.msra.mxu0 0.0
  %1889 = vmatprep.subr.mxu0 0.0
  %1890 = vmatpush2.msra.mxu0 0.0
  %1891 = vmatprep.subr.mxu0 0.0
  %1892 = vmatpush2.msra.mxu0 0.0
  %1893 = vmatprep.subr.mxu0 0.0
  %1894 = vmatpush2.msra.mxu0 0.0
  %1895 = vmatprep.subr.mxu0 0.0
  %1896 = vmatpush2.msra.mxu0 0.0
  %1897 = vmatprep.subr.mxu0 0.0
  %1898 = vmatpush2.msra.mxu0 0.0
  %1899 = vmatprep.subr.mxu0 0.0
  %1900 = vmatpush2.msra.mxu0 0.0
  %1901 = vmatprep.mubr.f32.mxu0 0.0
  %1902 = vmatmul.mubr.f32.gmra.mxu0 %v1835
  %v1903 = vpop.f32.mrf.mxu0
  %v1904 = vadd.f32 0.0, %v1903
  %v1905 = vpop.f32.mrf.mxu0
  %1906 = vdwg.mxu0
  %1908 = vrot.lane.b32.xlu0 %v1904, 54
  %v1909 = vpop.permute.xlu0 %1908
  %vm1911 = vcmask 507312
  %1912 = vst.msk [vmem:[#allocation7 + $0x8] sm:$0xff] %vm1911, %v1909
  %v1913 = vld [vmem:[#allocation6 + $0x20] sm:$0xff]
  %1915 = vrot.lane.b32.xlu0 %v1913, 45
  %v1916 = vpop.permute.xlu0 %1915
  %v1917 = vsel %vm672, %v1916, 0
  %1919 = vmatprep.subr.mxu0 0.0
  %1920 = vmatpush1.msra.mxu0 0.0
  %1921 = vmatprep.subr.mxu0 0.0
  %1922 = vmatpush1.msra.mxu0 0.0
  %1923 = vmatprep.subr.mxu0 0.0
  %1924 = vmatpush1.msra.mxu0 0.0
  %1925 = vmatprep.subr.mxu0 0.0
  %1926 = vmatpush1.msra.mxu0 0.0
  %1927 = vmatprep.subr.mxu0 0.0
  %1928 = vmatpush1.msra.mxu0 0.0
  %1929 = vmatprep.subr.mxu0 0.0
  %1930 = vmatpush1.msra.mxu0 0.0
  %1931 = vmatprep.subr.mxu0 0.0
  %1932 = vmatpush1.msra.mxu0 0.0
  %1933 = vmatprep.subr.mxu0 0.0
  %1934 = vmatpush1.msra.mxu0 0.0
  %1935 = vmatprep.subr.mxu0 0.0
  %1936 = vmatpush1.msra.mxu0 0.0
  %1937 = vmatprep.subr.mxu0 0.0
  %1938 = vmatpush1.msra.mxu0 0.0
  %1939 = vmatprep.subr.mxu0 0.0
  %1940 = vmatpush1.msra.mxu0 0.0
  %1941 = vmatprep.subr.mxu0 0.0
  %1942 = vmatpush1.msra.mxu0 0.0
  %1943 = vmatprep.subr.mxu0 0.0
  %1944 = vmatpush1.msra.mxu0 0.0
  %1945 = vmatprep.subr.mxu0 0.0
  %1946 = vmatpush1.msra.mxu0 0.0
  %1947 = vmatprep.subr.mxu0 0.0
  %1948 = vmatpush1.msra.mxu0 %v669
  %1949 = vmatprep.subr.mxu0 0.0
  %1950 = vmatpush1.msra.mxu0 %v667
  %1951 = vmatprep.subr.mxu0 0.0
  %1952 = vmatpush2.msra.mxu0 0.0
  %1953 = vmatprep.subr.mxu0 0.0
  %1954 = vmatpush2.msra.mxu0 0.0
  %1955 = vmatprep.subr.mxu0 0.0
  %1956 = vmatpush2.msra.mxu0 0.0
  %1957 = vmatprep.subr.mxu0 0.0
  %1958 = vmatpush2.msra.mxu0 0.0
  %1959 = vmatprep.subr.mxu0 0.0
  %1960 = vmatpush2.msra.mxu0 0.0
  %1961 = vmatprep.subr.mxu0 0.0
  %1962 = vmatpush2.msra.mxu0 0.0
  %1963 = vmatprep.subr.mxu0 0.0
  %1964 = vmatpush2.msra.mxu0 0.0
  %1965 = vmatprep.subr.mxu0 0.0
  %1966 = vmatpush2.msra.mxu0 0.0
  %1967 = vmatprep.subr.mxu0 0.0
  %1968 = vmatpush2.msra.mxu0 0.0
  %1969 = vmatprep.subr.mxu0 0.0
  %1970 = vmatpush2.msra.mxu0 0.0
  %1971 = vmatprep.subr.mxu0 0.0
  %1972 = vmatpush2.msra.mxu0 0.0
  %1973 = vmatprep.subr.mxu0 0.0
  %1974 = vmatpush2.msra.mxu0 0.0
  %1975 = vmatprep.subr.mxu0 0.0
  %1976 = vmatpush2.msra.mxu0 0.0
  %1977 = vmatprep.subr.mxu0 0.0
  %1978 = vmatpush2.msra.mxu0 0.0
  %1979 = vmatprep.subr.mxu0 0.0
  %1980 = vmatpush2.msra.mxu0 0.0
  %1981 = vmatprep.subr.mxu0 0.0
  %1982 = vmatpush2.msra.mxu0 0.0
  %1983 = vmatprep.mubr.f32.mxu0 0.0
  %1984 = vmatmul.mubr.f32.gmra.mxu0 %v1917
  %v1985 = vpop.f32.mrf.mxu0
  %v1986 = vadd.f32 0.0, %v1985
  %v1987 = vpop.f32.mrf.mxu0
  %1988 = vdwg.mxu0
  %1990 = vrot.lane.b32.xlu0 %v1986, 64
  %v1991 = vpop.permute.xlu0 %1990
  %vm1993 = vcmask 589312
  %1994 = vst.msk [vmem:[#allocation7 + $0x8] sm:$0xff] %vm1993, %v1991
  %v1995 = vld [vmem:[#allocation7] sm:$0xff]
  %v1996 = vld [vmem:[#allocation7 + $0x8] sm:$0xff]
  %1997 = vst [vmem:[#allocation3] sm:$0xff] %v1995
  %vm1998 = vcmask 588800
  %1999 = vst.msk [vmem:[#allocation3 + $0x8] sm:$0xff] %vm1998, %v1996
  %v2000 = vld [vmem:[#allocation7] sm:$0xff]
  %v2001 = vld [vmem:[#allocation7 + $0x8] sm:$0xff]
  %2004 = vrot.lane.b32.xlu0 %v2000, 127
  %v2005 = vpop.permute.xlu0 %2004
  %2006 = vrot.lane.b32.xlu0 %v2001, 127
  %v2007 = vpop.permute.xlu0 %2006
  %v2008 = vsel %vm70, %v2005, %v2007
  %2011 = vst [vmem:[#allocation3 + $0x10] sm:$0xff] %v2008
  %2012 = vst.msk [vmem:[#allocation3 + $0x18] sm:$0xff] %vm1998, %v2007
  %v2013 = vld [vmem:[#allocation7] sm:$0xff]
  %v2014 = vld [vmem:[#allocation7 + $0x8] sm:$0xff]
  %2017 = vrot.lane.b32.xlu0 %v2013, 126
  %v2018 = vpop.permute.xlu0 %2017
  %2019 = vrot.lane.b32.xlu0 %v2014, 126
  %v2020 = vpop.permute.xlu0 %2019
  %v2021 = vsel %vm110, %v2018, %v2020
  %2024 = vst [vmem:[#allocation3 + $0x20] sm:$0xff] %v2021
  %2025 = vst.msk [vmem:[#allocation3 + $0x28] sm:$0xff] %vm1998, %v2020
  %v2026 = vld [vmem:[#allocation7] sm:$0xff]
  %v2027 = vld [vmem:[#allocation7 + $0x8] sm:$0xff]
  %2030 = vrot.lane.b32.xlu0 %v2026, 118
  %v2031 = vpop.permute.xlu0 %2030
  %2032 = vrot.lane.b32.xlu0 %v2027, 118
  %v2033 = vpop.permute.xlu0 %2032
  %vm2034 = vcmask 965632
  %v2035 = vsel %vm2034, %v2031, %v2033
  %2038 = vst [vmem:[#allocation3 + $0x30] sm:$0xff] %v2035
  %2039 = vst.msk [vmem:[#allocation3 + $0x38] sm:$0xff] %vm1998, %v2033
  %v2040 = vld [vmem:[#allocation7] sm:$0xff]
  %v2041 = vld [vmem:[#allocation7 + $0x8] sm:$0xff]
  %2044 = vrot.lane.b32.xlu0 %v2040, 117
  %v2045 = vpop.permute.xlu0 %2044
  %2046 = vrot.lane.b32.xlu0 %v2041, 117
  %v2047 = vpop.permute.xlu0 %2046
  %vm2048 = vcmask 957440
  %v2049 = vsel %vm2048, %v2045, %v2047
  %2052 = vst [vmem:[#allocation3 + $0x40] sm:$0xff] %v2049
  %2053 = vst.msk [vmem:[#allocation3 + $0x48] sm:$0xff] %vm1998, %v2047
  %v2054 = vld [vmem:[#allocation7] sm:$0xff]
  %v2055 = vld [vmem:[#allocation7 + $0x8] sm:$0xff]
  %2058 = vrot.lane.b32.xlu0 %v2054, 116
  %v2059 = vpop.permute.xlu0 %2058
  %2060 = vrot.lane.b32.xlu0 %v2055, 116
  %v2061 = vpop.permute.xlu0 %2060
  %vm2062 = vcmask 949248
  %v2063 = vsel %vm2062, %v2059, %v2061
  %2066 = vst [vmem:[#allocation3 + $0x50] sm:$0xff] %v2063
  %2067 = vst.msk [vmem:[#allocation3 + $0x58] sm:$0xff] %vm1998, %v2061
  %v2068 = vld [vmem:[#allocation7] sm:$0xff]
  %v2069 = vld [vmem:[#allocation7 + $0x8] sm:$0xff]
  %2072 = vrot.lane.b32.xlu0 %v2068, 108
  %v2073 = vpop.permute.xlu0 %2072
  %2074 = vrot.lane.b32.xlu0 %v2069, 108
  %v2075 = vpop.permute.xlu0 %2074
  %v2076 = vsel %vm227, %v2073, %v2075
  %2079 = vst [vmem:[#allocation3 + $0x60] sm:$0xff] %v2076
  %2080 = vst.msk [vmem:[#allocation3 + $0x68] sm:$0xff] %vm1998, %v2075
  %v2081 = vld [vmem:[#allocation7] sm:$0xff]
  %v2082 = vld [vmem:[#allocation7 + $0x8] sm:$0xff]
  %2085 = vrot.lane.b32.xlu0 %v2081, 107
  %v2086 = vpop.permute.xlu0 %2085
  %2087 = vrot.lane.b32.xlu0 %v2082, 107
  %v2088 = vpop.permute.xlu0 %2087
  %vm2089 = vcmask 875520
  %v2090 = vsel %vm2089, %v2086, %v2088
  %2093 = vst [vmem:[#allocation3 + $0x70] sm:$0xff] %v2090
  %2094 = vst.msk [vmem:[#allocation3 + $0x78] sm:$0xff] %vm1998, %v2088
  %v2095 = vld [vmem:[#allocation7] sm:$0xff]
  %v2096 = vld [vmem:[#allocation7 + $0x8] sm:$0xff]
  %2099 = vrot.lane.b32.xlu0 %v2095, 106
  %v2100 = vpop.permute.xlu0 %2099
  %2101 = vrot.lane.b32.xlu0 %v2096, 106
  %v2102 = vpop.permute.xlu0 %2101
  %vm2103 = vcmask 867328
  %v2104 = vsel %vm2103, %v2100, %v2102
  %2107 = vst [vmem:[#allocation3 + $0x80] sm:$0xff] %v2104
  %2108 = vst.msk [vmem:[#allocation3 + $0x88] sm:$0xff] %vm1998, %v2102
  %v2109 = vld [vmem:[%s1] sm:$0xf]
  %v2110 = vld [vmem:[%s1 + $0x18] sm:$0xf]
  %v2111 = vld [vmem:[#allocation3] sm:$0xff]
  %v2112 = vld [vmem:[#allocation3 + $0x8] sm:$0xff]
  %v2113 = vld [vmem:[#allocation3 + $0x10] sm:$0xff]
  %v2114 = vld [vmem:[#allocation3 + $0x18] sm:$0xff]
  %v2115 = vld [vmem:[#allocation3 + $0x20] sm:$0xff]
  %v2116 = vld [vmem:[#allocation3 + $0x28] sm:$0xff]
  %v2117 = vld [vmem:[#allocation3 + $0x30] sm:$0xff]
  %v2118 = vld [vmem:[#allocation3 + $0x38] sm:$0xff]
  %v2119 = vld [vmem:[#allocation3 + $0x40] sm:$0xff]
  %v2120 = vld [vmem:[#allocation3 + $0x48] sm:$0xff]
  %v2121 = vld [vmem:[#allocation3 + $0x50] sm:$0xff]
  %v2122 = vld [vmem:[#allocation3 + $0x58] sm:$0xff]
  %v2123 = vld [vmem:[#allocation3 + $0x60] sm:$0xff]
  %v2124 = vld [vmem:[#allocation3 + $0x68] sm:$0xff]
  %v2125 = vld [vmem:[#allocation3 + $0x70] sm:$0xff]
  %v2126 = vld [vmem:[#allocation3 + $0x78] sm:$0xff]
  %v2127 = vld [vmem:[#allocation3 + $0x80] sm:$0xff]
  %v2128 = vld [vmem:[#allocation3 + $0x88] sm:$0xff]
  %v2129 = vpack.c.bf16 %v2113, %v2111
  %v2130 = vpack.c.bf16 %v2114, %v2112
  %v2131 = vpack.c.bf16 %v2117, %v2115
  %v2132 = vpack.c.bf16 %v2118, %v2116
  %v2133 = vpack.c.bf16 %v2121, %v2119
  %v2134 = vpack.c.bf16 %v2122, %v2120
  %v2135 = vpack.c.bf16 %v2125, %v2123
  %v2136 = vpack.c.bf16 %v2126, %v2124
  %v2137 = vpack.c.bf16 %v2127, %v2127
  %v2138 = vpack.c.bf16 %v2128, %v2128
  %v2139 = vld [vmem:[%s2] sm:$0xff]
  %v2140 = vld [vmem:[%s2 + $0x8] sm:$0xff]
  %2142 = vset.pattern.permute.xlu0 1
  %2143 = vperm.xlu0 %2142, %v2139
  %v2144 = vpop.permute.xlu0 %2143
  %2147 = vset.pattern.permute.xlu0 1
  %2148 = vperm.xlu0 %2147, %v2140
  %v2149 = vpop.permute.xlu0 %2148
  %v2153 = vunpack.c.l.b16 %v2109
  %v2154 = vunpack.c.l.b16 %v2110
  %v2155 = vpack.c.b16 %v2154, %v2153
  %2156 = vrot.lane.b32.xlu0 %v2155, 88
  %v2157 = vpop.permute.xlu0 %2156
  %v2159 = vsel %vm1998, %v2157, 0
  %vm2161 = vcmask 1043456
  %v2163 = vsel %vm2161, %v2137, 0
  %v2166 = vsel %vm2161, %v2138, 0
  %2168 = vmatprep.subr.bf16.mxu0 0
  %2169 = vmatpush1.bf16.msra.mxu0 0
  %2170 = vmatprep.subr.bf16.mxu0 0
  %2171 = vmatpush1.bf16.msra.mxu0 0
  %2172 = vmatprep.subr.bf16.mxu0 0
  %2173 = vmatpush1.bf16.msra.mxu0 0
  %2174 = vmatprep.subr.bf16.mxu0 %v2166
  %2175 = vmatpush1.bf16.msra.mxu0 %v2163
  %2176 = vmatprep.subr.bf16.mxu0 %v2136
  %2177 = vmatpush1.bf16.msra.mxu0 %v2135
  %2178 = vmatprep.subr.bf16.mxu0 %v2134
  %2179 = vmatpush1.bf16.msra.mxu0 %v2133
  %2180 = vmatprep.subr.bf16.mxu0 %v2132
  %2181 = vmatpush1.bf16.msra.mxu0 %v2131
  %2182 = vmatprep.subr.bf16.mxu0 %v2130
  %2183 = vmatpush1.bf16.msra.mxu0 %v2129
  %2184 = vmatprep.subr.bf16.mxu0 0
  %2185 = vmatpush2.bf16.msra.mxu0 0
  %2186 = vmatprep.subr.bf16.mxu0 0
  %2187 = vmatpush2.bf16.msra.mxu0 0
  %2188 = vmatprep.subr.bf16.mxu0 0
  %2189 = vmatpush2.bf16.msra.mxu0 0
  %2190 = vmatprep.subr.bf16.mxu0 0
  %2191 = vmatpush2.bf16.msra.mxu0 0
  %2192 = vmatprep.subr.bf16.mxu0 0
  %2193 = vmatpush2.bf16.msra.mxu0 0
  %2194 = vmatprep.subr.bf16.mxu0 0
  %2195 = vmatpush2.bf16.msra.mxu0 0
  %2196 = vmatprep.subr.bf16.mxu0 0
  %2197 = vmatpush2.bf16.msra.mxu0 0
  %2198 = vmatprep.subr.bf16.mxu0 0
  %2199 = vmatpush2.bf16.msra.mxu0 0
  %2200 = vmatprep.mubr.bf16.mxu0 0
  %2201 = vmatmul.mubr.bf16.gmra.mxu0 %v2159
  %v2202 = vpop.f32.mrf.mxu0
  %v2203 = vadd.f32 %v2144, %v2202
  %v2204 = vpop.f32.mrf.mxu0
  %v2205 = vadd.f32 %v2144, %v2204
  %v2206 = vpop.f32.mrf.mxu0
  %v2207 = vadd.f32 %v2149, %v2206
  %v2208 = vpop.f32.mrf.mxu0
  %v2209 = vadd.f32 %v2149, %v2208
  %2210 = vdwg.mxu0
  %v2211 = vmax.f32 %v2203, 0.0
  %v2212 = vmax.f32 %v2205, 0.0
  %v2213 = vmax.f32 %v2207, 0.0
  %v2214 = vmax.f32 %v2209, 0.0
  %2215 = vst [vmem:[#allocation6] sm:$0xff] %v2211
  %2216 = vst.msk [vmem:[#allocation6 + $0x8] sm:$0xff] %vm1998, %v2212
  %2217 = vst [vmem:[#allocation6 + $0x30] sm:$0xff] %v2213
  %2218 = vst.msk [vmem:[#allocation6 + $0x38] sm:$0xff] %vm1998, %v2214
  %v2219 = vld [vmem:[#allocation6] sm:$0xff]
  %v2220 = vld [vmem:[#allocation6 + $0x8] sm:$0xff]
  %v2221 = vld [vmem:[#allocation6 + $0x30] sm:$0xff]
  %v2222 = vld [vmem:[#allocation6 + $0x38] sm:$0xff]
  %2227 = vrot.lane.b32.xlu0 %v2219, 127
  %v2228 = vpop.permute.xlu0 %2227
  %2229 = vrot.lane.b32.xlu0 %v2220, 127
  %v2230 = vpop.permute.xlu0 %2229
  %2231 = vrot.lane.b32.xlu0 %v2221, 127
  %v2232 = vpop.permute.xlu0 %2231
  %2233 = vrot.lane.b32.xlu0 %v2222, 127
  %v2234 = vpop.permute.xlu0 %2233
  %v2235 = vsel %vm70, %v2228, %v2230
  %v2236 = vsel %vm70, %v2232, %v2234
  %v2241 = vmax.f32 %v2219, %v2235
  %v2242 = vmax.f32 %v2220, %v2230
  %v2243 = vmax.f32 %v2221, %v2236
  %v2244 = vmax.f32 %v2222, %v2234
  %2249 = vrot.lane.b32.xlu0 %v2241, 118
  %v2250 = vpop.permute.xlu0 %2249
  %2251 = vrot.lane.b32.xlu0 %v2242, 118
  %v2252 = vpop.permute.xlu0 %2251
  %2253 = vrot.lane.b32.xlu0 %v2243, 118
  %v2254 = vpop.permute.xlu0 %2253
  %2255 = vrot.lane.b32.xlu0 %v2244, 118
  %v2256 = vpop.permute.xlu0 %2255
  %v2257 = vsel %vm2034, %v2250, %v2252
  %v2258 = vsel %vm2034, %v2254, %v2256
  %v2263 = vmax.f32 %v2241, %v2257
  %v2264 = vmax.f32 %v2242, %v2252
  %v2265 = vmax.f32 %v2243, %v2258
  %v2266 = vmax.f32 %v2244, %v2256
  %2267 = vst [vmem:[#allocation6] sm:$0xff] %v2263
  %2268 = vst.msk [vmem:[#allocation6 + $0x8] sm:$0xff] %vm1998, %v2264
  %2269 = vst [vmem:[#allocation6 + $0x30] sm:$0xff] %v2265
  %2270 = vst.msk [vmem:[#allocation6 + $0x38] sm:$0xff] %vm1998, %v2266
  %v2271 = vld [vmem:[%s2] sm:$0xff]
  %v2272 = vld [vmem:[#allocation6] sm:$0xff]
  %v2273 = vld [vmem:[#allocation6 + $0x30] sm:$0xff]
  %2276 = vrot.lane.b32.xlu0 %v2272, 117
  %v2277 = vpop.permute.xlu0 %2276
  %2278 = vrot.lane.b32.xlu0 %v2273, 117
  %v2279 = vpop.permute.xlu0 %2278
  %2281 = vrot.lane.b32.xlu0 %v2271, 120
  %v2282 = vpop.permute.xlu0 %2281
  %v2284 = vsel %vm574, %v2277, 0
  %v2286 = vsel %vm574, %v2279, 0
  %2288 = vmatprep.subr.mxu0 0.0
  %2289 = vmatpush1.msra.mxu0 0.0
  %2290 = vmatprep.subr.mxu0 0.0
  %2291 = vmatpush1.msra.mxu0 0.0
  %2292 = vmatprep.subr.mxu0 0.0
  %2293 = vmatpush1.msra.mxu0 0.0
  %2294 = vmatprep.subr.mxu0 0.0
  %2295 = vmatpush1.msra.mxu0 0.0
  %2296 = vmatprep.subr.mxu0 0.0
  %2297 = vmatpush1.msra.mxu0 0.0
  %2298 = vmatprep.subr.mxu0 0.0
  %2299 = vmatpush1.msra.mxu0 0.0
  %2300 = vmatprep.subr.mxu0 0.0
  %2301 = vmatpush1.msra.mxu0 0.0
  %2302 = vmatprep.subr.mxu0 0.0
  %2303 = vmatpush1.msra.mxu0 0.0
  %2304 = vmatprep.subr.mxu0 0.0
  %2305 = vmatpush1.msra.mxu0 0.0
  %2306 = vmatprep.subr.mxu0 0.0
  %2307 = vmatpush1.msra.mxu0 0.0
  %2308 = vmatprep.subr.mxu0 0.0
  %2309 = vmatpush1.msra.mxu0 0.0
  %2310 = vmatprep.subr.mxu0 0.0
  %2311 = vmatpush1.msra.mxu0 0.0
  %2312 = vmatprep.subr.mxu0 0.0
  %2313 = vmatpush1.msra.mxu0 0.0
  %2314 = vmatprep.subr.mxu0 0.0
  %2315 = vmatpush1.msra.mxu0 0.0
  %2316 = vmatprep.subr.mxu0 0.0
  %2317 = vmatpush1.msra.mxu0 0.0
  %2318 = vmatprep.subr.mxu0 0.0
  %2319 = vmatpush1.msra.mxu0 %v2282
  %2320 = vmatprep.subr.mxu0 0.0
  %2321 = vmatpush2.msra.mxu0 0.0
  %2322 = vmatprep.subr.mxu0 0.0
  %2323 = vmatpush2.msra.mxu0 0.0
  %2324 = vmatprep.subr.mxu0 0.0
  %2325 = vmatpush2.msra.mxu0 0.0
  %2326 = vmatprep.subr.mxu0 0.0
  %2327 = vmatpush2.msra.mxu0 0.0
  %2328 = vmatprep.subr.mxu0 0.0
  %2329 = vmatpush2.msra.mxu0 0.0
  %2330 = vmatprep.subr.mxu0 0.0
  %2331 = vmatpush2.msra.mxu0 0.0
  %2332 = vmatprep.subr.mxu0 0.0
  %2333 = vmatpush2.msra.mxu0 0.0
  %2334 = vmatprep.subr.mxu0 0.0
  %2335 = vmatpush2.msra.mxu0 0.0
  %2336 = vmatprep.subr.mxu0 0.0
  %2337 = vmatpush2.msra.mxu0 0.0
  %2338 = vmatprep.subr.mxu0 0.0
  %2339 = vmatpush2.msra.mxu0 0.0
  %2340 = vmatprep.subr.mxu0 0.0
  %2341 = vmatpush2.msra.mxu0 0.0
  %2342 = vmatprep.subr.mxu0 0.0
  %2343 = vmatpush2.msra.mxu0 0.0
  %2344 = vmatprep.subr.mxu0 0.0
  %2345 = vmatpush2.msra.mxu0 0.0
  %2346 = vmatprep.subr.mxu0 0.0
  %2347 = vmatpush2.msra.mxu0 0.0
  %2348 = vmatprep.subr.mxu0 0.0
  %2349 = vmatpush2.msra.mxu0 0.0
  %2350 = vmatprep.subr.mxu0 0.0
  %2351 = vmatpush2.msra.mxu0 0.0
  %2352 = vmatprep.mubr.f32.mxu0 0.0
  %2353 = vmatmul.mubr.f32.gmra.mxu0 %v2284
  %v2354 = vpop.f32.mrf.mxu0
  %v2355 = vadd.f32 0.0, %v2354
  %v2356 = vpop.f32.mrf.mxu0
  %2357 = vmatprep.mubr.f32.mxu0 0.0
  %2358 = vmatmul.mubr.f32.gmra.mxu0 %v2286
  %v2359 = vpop.f32.mrf.mxu0
  %v2360 = vadd.f32 0.0, %v2359
  %v2361 = vpop.f32.mrf.mxu0
  %2362 = vdwg.mxu0
  %2365 = vrot.lane.b32.xlu0 %v2355, 14
  %v2366 = vpop.permute.xlu0 %2365
  %2367 = vrot.lane.b32.xlu0 %v2360, 14
  %v2368 = vpop.permute.xlu0 %2367
  %vm2371 = vcmask 146544
  %2372 = vst.msk [vmem:[#allocation8] sm:$0xff] %vm2371, %v2366
  %2373 = vst.msk [vmem:[#allocation8 + $0x8] sm:$0xff] %vm2371, %v2368
  %v2374 = vld [vmem:[#allocation6] sm:$0xff]
  %v2375 = vld [vmem:[#allocation6 + $0x30] sm:$0xff]
  %2378 = vrot.lane.b32.xlu0 %v2374, 97
  %v2379 = vpop.permute.xlu0 %2378
  %2380 = vrot.lane.b32.xlu0 %v2375, 97
  %v2381 = vpop.permute.xlu0 %2380
  %v2382 = vsel %vm574, %v2379, 0
  %v2384 = vsel %vm574, %v2381, 0
  %2386 = vmatprep.subr.mxu0 0.0
  %2387 = vmatpush1.msra.mxu0 0.0
  %2388 = vmatprep.subr.mxu0 0.0
  %2389 = vmatpush1.msra.mxu0 0.0
  %2390 = vmatprep.subr.mxu0 0.0
  %2391 = vmatpush1.msra.mxu0 0.0
  %2392 = vmatprep.subr.mxu0 0.0
  %2393 = vmatpush1.msra.mxu0 0.0
  %2394 = vmatprep.subr.mxu0 0.0
  %2395 = vmatpush1.msra.mxu0 0.0
  %2396 = vmatprep.subr.mxu0 0.0
  %2397 = vmatpush1.msra.mxu0 0.0
  %2398 = vmatprep.subr.mxu0 0.0
  %2399 = vmatpush1.msra.mxu0 0.0
  %2400 = vmatprep.subr.mxu0 0.0
  %2401 = vmatpush1.msra.mxu0 0.0
  %2402 = vmatprep.subr.mxu0 0.0
  %2403 = vmatpush1.msra.mxu0 0.0
  %2404 = vmatprep.subr.mxu0 0.0
  %2405 = vmatpush1.msra.mxu0 0.0
  %2406 = vmatprep.subr.mxu0 0.0
  %2407 = vmatpush1.msra.mxu0 0.0
  %2408 = vmatprep.subr.mxu0 0.0
  %2409 = vmatpush1.msra.mxu0 0.0
  %2410 = vmatprep.subr.mxu0 0.0
  %2411 = vmatpush1.msra.mxu0 0.0
  %2412 = vmatprep.subr.mxu0 0.0
  %2413 = vmatpush1.msra.mxu0 0.0
  %2414 = vmatprep.subr.mxu0 0.0
  %2415 = vmatpush1.msra.mxu0 0.0
  %2416 = vmatprep.subr.mxu0 0.0
  %2417 = vmatpush1.msra.mxu0 %v2282
  %2418 = vmatprep.subr.mxu0 0.0
  %2419 = vmatpush2.msra.mxu0 0.0
  %2420 = vmatprep.subr.mxu0 0.0
  %2421 = vmatpush2.msra.mxu0 0.0
  %2422 = vmatprep.subr.mxu0 0.0
  %2423 = vmatpush2.msra.mxu0 0.0
  %2424 = vmatprep.subr.mxu0 0.0
  %2425 = vmatpush2.msra.mxu0 0.0
  %2426 = vmatprep.subr.mxu0 0.0
  %2427 = vmatpush2.msra.mxu0 0.0
  %2428 = vmatprep.subr.mxu0 0.0
  %2429 = vmatpush2.msra.mxu0 0.0
  %2430 = vmatprep.subr.mxu0 0.0
  %2431 = vmatpush2.msra.mxu0 0.0
  %2432 = vmatprep.subr.mxu0 0.0
  %2433 = vmatpush2.msra.mxu0 0.0
  %2434 = vmatprep.subr.mxu0 0.0
  %2435 = vmatpush2.msra.mxu0 0.0
  %2436 = vmatprep.subr.mxu0 0.0
  %2437 = vmatpush2.msra.mxu0 0.0
  %2438 = vmatprep.subr.mxu0 0.0
  %2439 = vmatpush2.msra.mxu0 0.0
  %2440 = vmatprep.subr.mxu0 0.0
  %2441 = vmatpush2.msra.mxu0 0.0
  %2442 = vmatprep.subr.mxu0 0.0
  %2443 = vmatpush2.msra.mxu0 0.0
  %2444 = vmatprep.subr.mxu0 0.0
  %2445 = vmatpush2.msra.mxu0 0.0
  %2446 = vmatprep.subr.mxu0 0.0
  %2447 = vmatpush2.msra.mxu0 0.0
  %2448 = vmatprep.subr.mxu0 0.0
  %2449 = vmatpush2.msra.mxu0 0.0
  %2450 = vmatprep.mubr.f32.mxu0 0.0
  %2451 = vmatmul.mubr.f32.gmra.mxu0 %v2382
  %v2452 = vpop.f32.mrf.mxu0
  %v2453 = vadd.f32 0.0, %v2452
  %v2454 = vpop.f32.mrf.mxu0
  %2455 = vmatprep.mubr.f32.mxu0 0.0
  %2456 = vmatmul.mubr.f32.gmra.mxu0 %v2384
  %v2457 = vpop.f32.mrf.mxu0
  %v2458 = vadd.f32 0.0, %v2457
  %v2459 = vpop.f32.mrf.mxu0
  %2460 = vdwg.mxu0
  %2463 = vrot.lane.b32.xlu0 %v2453, 20
  %v2464 = vpop.permute.xlu0 %2463
  %2465 = vrot.lane.b32.xlu0 %v2458, 20
  %v2466 = vpop.permute.xlu0 %2465
  %vm2469 = vcmask 195744
  %2470 = vst.msk [vmem:[#allocation8] sm:$0xff] %vm2469, %v2464
  %2471 = vst.msk [vmem:[#allocation8 + $0x8] sm:$0xff] %vm2469, %v2466
  %v2472 = vld [vmem:[#allocation6] sm:$0xff]
  %v2473 = vld [vmem:[#allocation6 + $0x30] sm:$0xff]
  %2476 = vrot.lane.b32.xlu0 %v2472, 77
  %v2477 = vpop.permute.xlu0 %2476
  %2478 = vrot.lane.b32.xlu0 %v2473, 77
  %v2479 = vpop.permute.xlu0 %2478
  %v2480 = vsel %vm574, %v2477, 0
  %v2482 = vsel %vm574, %v2479, 0
  %2484 = vmatprep.subr.mxu0 0.0
  %2485 = vmatpush1.msra.mxu0 0.0
  %2486 = vmatprep.subr.mxu0 0.0
  %2487 = vmatpush1.msra.mxu0 0.0
  %2488 = vmatprep.subr.mxu0 0.0
  %2489 = vmatpush1.msra.mxu0 0.0
  %2490 = vmatprep.subr.mxu0 0.0
  %2491 = vmatpush1.msra.mxu0 0.0
  %2492 = vmatprep.subr.mxu0 0.0
  %2493 = vmatpush1.msra.mxu0 0.0
  %2494 = vmatprep.subr.mxu0 0.0
  %2495 = vmatpush1.msra.mxu0 0.0
  %2496 = vmatprep.subr.mxu0 0.0
  %2497 = vmatpush1.msra.mxu0 0.0
  %2498 = vmatprep.subr.mxu0 0.0
  %2499 = vmatpush1.msra.mxu0 0.0
  %2500 = vmatprep.subr.mxu0 0.0
  %2501 = vmatpush1.msra.mxu0 0.0
  %2502 = vmatprep.subr.mxu0 0.0
  %2503 = vmatpush1.msra.mxu0 0.0
  %2504 = vmatprep.subr.mxu0 0.0
  %2505 = vmatpush1.msra.mxu0 0.0
  %2506 = vmatprep.subr.mxu0 0.0
  %2507 = vmatpush1.msra.mxu0 0.0
  %2508 = vmatprep.subr.mxu0 0.0
  %2509 = vmatpush1.msra.mxu0 0.0
  %2510 = vmatprep.subr.mxu0 0.0
  %2511 = vmatpush1.msra.mxu0 0.0
  %2512 = vmatprep.subr.mxu0 0.0
  %2513 = vmatpush1.msra.mxu0 0.0
  %2514 = vmatprep.subr.mxu0 0.0
  %2515 = vmatpush1.msra.mxu0 %v2282
  %2516 = vmatprep.subr.mxu0 0.0
  %2517 = vmatpush2.msra.mxu0 0.0
  %2518 = vmatprep.subr.mxu0 0.0
  %2519 = vmatpush2.msra.mxu0 0.0
  %2520 = vmatprep.subr.mxu0 0.0
  %2521 = vmatpush2.msra.mxu0 0.0
  %2522 = vmatprep.subr.mxu0 0.0
  %2523 = vmatpush2.msra.mxu0 0.0
  %2524 = vmatprep.subr.mxu0 0.0
  %2525 = vmatpush2.msra.mxu0 0.0
  %2526 = vmatprep.subr.mxu0 0.0
  %2527 = vmatpush2.msra.mxu0 0.0
  %2528 = vmatprep.subr.mxu0 0.0
  %2529 = vmatpush2.msra.mxu0 0.0
  %2530 = vmatprep.subr.mxu0 0.0
  %2531 = vmatpush2.msra.mxu0 0.0
  %2532 = vmatprep.subr.mxu0 0.0
  %2533 = vmatpush2.msra.mxu0 0.0
  %2534 = vmatprep.subr.mxu0 0.0
  %2535 = vmatpush2.msra.mxu0 0.0
  %2536 = vmatprep.subr.mxu0 0.0
  %2537 = vmatpush2.msra.mxu0 0.0
  %2538 = vmatprep.subr.mxu0 0.0
  %2539 = vmatpush2.msra.mxu0 0.0
  %2540 = vmatprep.subr.mxu0 0.0
  %2541 = vmatpush2.msra.mxu0 0.0
  %2542 = vmatprep.subr.mxu0 0.0
  %2543 = vmatpush2.msra.mxu0 0.0
  %2544 = vmatprep.subr.mxu0 0.0
  %2545 = vmatpush2.msra.mxu0 0.0
  %2546 = vmatprep.subr.mxu0 0.0
  %2547 = vmatpush2.msra.mxu0 0.0
  %2548 = vmatprep.mubr.f32.mxu0 0.0
  %2549 = vmatmul.mubr.f32.gmra.mxu0 %v2480
  %v2550 = vpop.f32.mrf.mxu0
  %v2551 = vadd.f32 0.0, %v2550
  %v2552 = vpop.f32.mrf.mxu0
  %2553 = vmatprep.mubr.f32.mxu0 0.0
  %2554 = vmatmul.mubr.f32.gmra.mxu0 %v2482
  %v2555 = vpop.f32.mrf.mxu0
  %v2556 = vadd.f32 0.0, %v2555
  %v2557 = vpop.f32.mrf.mxu0
  %2558 = vdwg.mxu0
  %2561 = vrot.lane.b32.xlu0 %v2551, 26
  %v2562 = vpop.permute.xlu0 %2561
  %2563 = vrot.lane.b32.xlu0 %v2556, 26
  %v2564 = vpop.permute.xlu0 %2563
  %vm2567 = vcmask 244944
  %2568 = vst.msk [vmem:[#allocation8] sm:$0xff] %vm2567, %v2562
  %2569 = vst.msk [vmem:[#allocation8 + $0x8] sm:$0xff] %vm2567, %v2564
  %v2570 = vld [vmem:[#allocation6] sm:$0xff]
  %v2571 = vld [vmem:[#allocation6 + $0x30] sm:$0xff]
  %2574 = vrot.lane.b32.xlu0 %v2570, 57
  %v2575 = vpop.permute.xlu0 %2574
  %2576 = vrot.lane.b32.xlu0 %v2571, 57
  %v2577 = vpop.permute.xlu0 %2576
  %v2578 = vsel %vm574, %v2575, 0
  %v2580 = vsel %vm574, %v2577, 0
  %2582 = vmatprep.subr.mxu0 0.0
  %2583 = vmatpush1.msra.mxu0 0.0
  %2584 = vmatprep.subr.mxu0 0.0
  %2585 = vmatpush1.msra.mxu0 0.0
  %2586 = vmatprep.subr.mxu0 0.0
  %2587 = vmatpush1.msra.mxu0 0.0
  %2588 = vmatprep.subr.mxu0 0.0
  %2589 = vmatpush1.msra.mxu0 0.0
  %2590 = vmatprep.subr.mxu0 0.0
  %2591 = vmatpush1.msra.mxu0 0.0
  %2592 = vmatprep.subr.mxu0 0.0
  %2593 = vmatpush1.msra.mxu0 0.0
  %2594 = vmatprep.subr.mxu0 0.0
  %2595 = vmatpush1.msra.mxu0 0.0
  %2596 = vmatprep.subr.mxu0 0.0
  %2597 = vmatpush1.msra.mxu0 0.0
  %2598 = vmatprep.subr.mxu0 0.0
  %2599 = vmatpush1.msra.mxu0 0.0
  %2600 = vmatprep.subr.mxu0 0.0
  %2601 = vmatpush1.msra.mxu0 0.0
  %2602 = vmatprep.subr.mxu0 0.0
  %2603 = vmatpush1.msra.mxu0 0.0
  %2604 = vmatprep.subr.mxu0 0.0
  %2605 = vmatpush1.msra.mxu0 0.0
  %2606 = vmatprep.subr.mxu0 0.0
  %2607 = vmatpush1.msra.mxu0 0.0
  %2608 = vmatprep.subr.mxu0 0.0
  %2609 = vmatpush1.msra.mxu0 0.0
  %2610 = vmatprep.subr.mxu0 0.0
  %2611 = vmatpush1.msra.mxu0 0.0
  %2612 = vmatprep.subr.mxu0 0.0
  %2613 = vmatpush1.msra.mxu0 %v2282
  %2614 = vmatprep.subr.mxu0 0.0
  %2615 = vmatpush2.msra.mxu0 0.0
  %2616 = vmatprep.subr.mxu0 0.0
  %2617 = vmatpush2.msra.mxu0 0.0
  %2618 = vmatprep.subr.mxu0 0.0
  %2619 = vmatpush2.msra.mxu0 0.0
  %2620 = vmatprep.subr.mxu0 0.0
  %2621 = vmatpush2.msra.mxu0 0.0
  %2622 = vmatprep.subr.mxu0 0.0
  %2623 = vmatpush2.msra.mxu0 0.0
  %2624 = vmatprep.subr.mxu0 0.0
  %2625 = vmatpush2.msra.mxu0 0.0
  %2626 = vmatprep.subr.mxu0 0.0
  %2627 = vmatpush2.msra.mxu0 0.0
  %2628 = vmatprep.subr.mxu0 0.0
  %2629 = vmatpush2.msra.mxu0 0.0
  %2630 = vmatprep.subr.mxu0 0.0
  %2631 = vmatpush2.msra.mxu0 0.0
  %2632 = vmatprep.subr.mxu0 0.0
  %2633 = vmatpush2.msra.mxu0 0.0
  %2634 = vmatprep.subr.mxu0 0.0
  %2635 = vmatpush2.msra.mxu0 0.0
  %2636 = vmatprep.subr.mxu0 0.0
  %2637 = vmatpush2.msra.mxu0 0.0
  %2638 = vmatprep.subr.mxu0 0.0
  %2639 = vmatpush2.msra.mxu0 0.0
  %2640 = vmatprep.subr.mxu0 0.0
  %2641 = vmatpush2.msra.mxu0 0.0
  %2642 = vmatprep.subr.mxu0 0.0
  %2643 = vmatpush2.msra.mxu0 0.0
  %2644 = vmatprep.subr.mxu0 0.0
  %2645 = vmatpush2.msra.mxu0 0.0
  %2646 = vmatprep.mubr.f32.mxu0 0.0
  %2647 = vmatmul.mubr.f32.gmra.mxu0 %v2578
  %v2648 = vpop.f32.mrf.mxu0
  %v2649 = vadd.f32 0.0, %v2648
  %v2650 = vpop.f32.mrf.mxu0
  %2651 = vmatprep.mubr.f32.mxu0 0.0
  %2652 = vmatmul.mubr.f32.gmra.mxu0 %v2580
  %v2653 = vpop.f32.mrf.mxu0
  %v2654 = vadd.f32 0.0, %v2653
  %v2655 = vpop.f32.mrf.mxu0
  %2656 = vdwg.mxu0
  %2659 = vrot.lane.b32.xlu0 %v2649, 32
  %v2660 = vpop.permute.xlu0 %2659
  %2661 = vrot.lane.b32.xlu0 %v2654, 32
  %v2662 = vpop.permute.xlu0 %2661
  %vm2665 = vcmask 294144
  %2666 = vst.msk [vmem:[#allocation8] sm:$0xff] %vm2665, %v2660
  %2667 = vst.msk [vmem:[#allocation8 + $0x8] sm:$0xff] %vm2665, %v2662
  %v2668 = vld [vmem:[#allocation6] sm:$0xff]
  %v2669 = vld [vmem:[#allocation6 + $0x30] sm:$0xff]
  %2672 = vrot.lane.b32.xlu0 %v2668, 17
  %v2673 = vpop.permute.xlu0 %2672
  %2674 = vrot.lane.b32.xlu0 %v2669, 17
  %v2675 = vpop.permute.xlu0 %2674
  %v2676 = vsel %vm574, %v2673, 0
  %v2678 = vsel %vm574, %v2675, 0
  %2680 = vmatprep.subr.mxu0 0.0
  %2681 = vmatpush1.msra.mxu0 0.0
  %2682 = vmatprep.subr.mxu0 0.0
  %2683 = vmatpush1.msra.mxu0 0.0
  %2684 = vmatprep.subr.mxu0 0.0
  %2685 = vmatpush1.msra.mxu0 0.0
  %2686 = vmatprep.subr.mxu0 0.0
  %2687 = vmatpush1.msra.mxu0 0.0
  %2688 = vmatprep.subr.mxu0 0.0
  %2689 = vmatpush1.msra.mxu0 0.0
  %2690 = vmatprep.subr.mxu0 0.0
  %2691 = vmatpush1.msra.mxu0 0.0
  %2692 = vmatprep.subr.mxu0 0.0
  %2693 = vmatpush1.msra.mxu0 0.0
  %2694 = vmatprep.subr.mxu0 0.0
  %2695 = vmatpush1.msra.mxu0 0.0
  %2696 = vmatprep.subr.mxu0 0.0
  %2697 = vmatpush1.msra.mxu0 0.0
  %2698 = vmatprep.subr.mxu0 0.0
  %2699 = vmatpush1.msra.mxu0 0.0
  %2700 = vmatprep.subr.mxu0 0.0
  %2701 = vmatpush1.msra.mxu0 0.0
  %2702 = vmatprep.subr.mxu0 0.0
  %2703 = vmatpush1.msra.mxu0 0.0
  %2704 = vmatprep.subr.mxu0 0.0
  %2705 = vmatpush1.msra.mxu0 0.0
  %2706 = vmatprep.subr.mxu0 0.0
  %2707 = vmatpush1.msra.mxu0 0.0
  %2708 = vmatprep.subr.mxu0 0.0
  %2709 = vmatpush1.msra.mxu0 0.0
  %2710 = vmatprep.subr.mxu0 0.0
  %2711 = vmatpush1.msra.mxu0 %v2282
  %2712 = vmatprep.subr.mxu0 0.0
  %2713 = vmatpush2.msra.mxu0 0.0
  %2714 = vmatprep.subr.mxu0 0.0
  %2715 = vmatpush2.msra.mxu0 0.0
  %2716 = vmatprep.subr.mxu0 0.0
  %2717 = vmatpush2.msra.mxu0 0.0
  %2718 = vmatprep.subr.mxu0 0.0
  %2719 = vmatpush2.msra.mxu0 0.0
  %2720 = vmatprep.subr.mxu0 0.0
  %2721 = vmatpush2.msra.mxu0 0.0
  %2722 = vmatprep.subr.mxu0 0.0
  %2723 = vmatpush2.msra.mxu0 0.0
  %2724 = vmatprep.subr.mxu0 0.0
  %2725 = vmatpush2.msra.mxu0 0.0
  %2726 = vmatprep.subr.mxu0 0.0
  %2727 = vmatpush2.msra.mxu0 0.0
  %2728 = vmatprep.subr.mxu0 0.0
  %2729 = vmatpush2.msra.mxu0 0.0
  %2730 = vmatprep.subr.mxu0 0.0
  %2731 = vmatpush2.msra.mxu0 0.0
  %2732 = vmatprep.subr.mxu0 0.0
  %2733 = vmatpush2.msra.mxu0 0.0
  %2734 = vmatprep.subr.mxu0 0.0
  %2735 = vmatpush2.msra.mxu0 0.0
  %2736 = vmatprep.subr.mxu0 0.0
  %2737 = vmatpush2.msra.mxu0 0.0
  %2738 = vmatprep.subr.mxu0 0.0
  %2739 = vmatpush2.msra.mxu0 0.0
  %2740 = vmatprep.subr.mxu0 0.0
  %2741 = vmatpush2.msra.mxu0 0.0
  %2742 = vmatprep.subr.mxu0 0.0
  %2743 = vmatpush2.msra.mxu0 0.0
  %2744 = vmatprep.mubr.f32.mxu0 0.0
  %2745 = vmatmul.mubr.f32.gmra.mxu0 %v2676
  %v2746 = vpop.f32.mrf.mxu0
  %v2747 = vadd.f32 0.0, %v2746
  %v2748 = vpop.f32.mrf.mxu0
  %2749 = vmatprep.mubr.f32.mxu0 0.0
  %2750 = vmatmul.mubr.f32.gmra.mxu0 %v2678
  %v2751 = vpop.f32.mrf.mxu0
  %v2752 = vadd.f32 0.0, %v2751
  %v2753 = vpop.f32.mrf.mxu0
  %2754 = vdwg.mxu0
  %2757 = vrot.lane.b32.xlu0 %v2747, 50
  %v2758 = vpop.permute.xlu0 %2757
  %2759 = vrot.lane.b32.xlu0 %v2752, 50
  %v2760 = vpop.permute.xlu0 %2759
  %vm2763 = vcmask 441744
  %2764 = vst.msk [vmem:[#allocation8] sm:$0xff] %vm2763, %v2758
  %2765 = vst.msk [vmem:[#allocation8 + $0x8] sm:$0xff] %vm2763, %v2760
  %v2766 = vld [vmem:[#allocation6 + $0x8] sm:$0xff]
  %v2767 = vld [vmem:[#allocation6 + $0x38] sm:$0xff]
  %2770 = vrot.lane.b32.xlu0 %v2766, 125
  %v2771 = vpop.permute.xlu0 %2770
  %2772 = vrot.lane.b32.xlu0 %v2767, 125
  %v2773 = vpop.permute.xlu0 %2772
  %v2774 = vsel %vm574, %v2771, 0
  %v2776 = vsel %vm574, %v2773, 0
  %2778 = vmatprep.subr.mxu0 0.0
  %2779 = vmatpush1.msra.mxu0 0.0
  %2780 = vmatprep.subr.mxu0 0.0
  %2781 = vmatpush1.msra.mxu0 0.0
  %2782 = vmatprep.subr.mxu0 0.0
  %2783 = vmatpush1.msra.mxu0 0.0
  %2784 = vmatprep.subr.mxu0 0.0
  %2785 = vmatpush1.msra.mxu0 0.0
  %2786 = vmatprep.subr.mxu0 0.0
  %2787 = vmatpush1.msra.mxu0 0.0
  %2788 = vmatprep.subr.mxu0 0.0
  %2789 = vmatpush1.msra.mxu0 0.0
  %2790 = vmatprep.subr.mxu0 0.0
  %2791 = vmatpush1.msra.mxu0 0.0
  %2792 = vmatprep.subr.mxu0 0.0
  %2793 = vmatpush1.msra.mxu0 0.0
  %2794 = vmatprep.subr.mxu0 0.0
  %2795 = vmatpush1.msra.mxu0 0.0
  %2796 = vmatprep.subr.mxu0 0.0
  %2797 = vmatpush1.msra.mxu0 0.0
  %2798 = vmatprep.subr.mxu0 0.0
  %2799 = vmatpush1.msra.mxu0 0.0
  %2800 = vmatprep.subr.mxu0 0.0
  %2801 = vmatpush1.msra.mxu0 0.0
  %2802 = vmatprep.subr.mxu0 0.0
  %2803 = vmatpush1.msra.mxu0 0.0
  %2804 = vmatprep.subr.mxu0 0.0
  %2805 = vmatpush1.msra.mxu0 0.0
  %2806 = vmatprep.subr.mxu0 0.0
  %2807 = vmatpush1.msra.mxu0 0.0
  %2808 = vmatprep.subr.mxu0 0.0
  %2809 = vmatpush1.msra.mxu0 %v2282
  %2810 = vmatprep.subr.mxu0 0.0
  %2811 = vmatpush2.msra.mxu0 0.0
  %2812 = vmatprep.subr.mxu0 0.0
  %2813 = vmatpush2.msra.mxu0 0.0
  %2814 = vmatprep.subr.mxu0 0.0
  %2815 = vmatpush2.msra.mxu0 0.0
  %2816 = vmatprep.subr.mxu0 0.0
  %2817 = vmatpush2.msra.mxu0 0.0
  %2818 = vmatprep.subr.mxu0 0.0
  %2819 = vmatpush2.msra.mxu0 0.0
  %2820 = vmatprep.subr.mxu0 0.0
  %2821 = vmatpush2.msra.mxu0 0.0
  %2822 = vmatprep.subr.mxu0 0.0
  %2823 = vmatpush2.msra.mxu0 0.0
  %2824 = vmatprep.subr.mxu0 0.0
  %2825 = vmatpush2.msra.mxu0 0.0
  %2826 = vmatprep.subr.mxu0 0.0
  %2827 = vmatpush2.msra.mxu0 0.0
  %2828 = vmatprep.subr.mxu0 0.0
  %2829 = vmatpush2.msra.mxu0 0.0
  %2830 = vmatprep.subr.mxu0 0.0
  %2831 = vmatpush2.msra.mxu0 0.0
  %2832 = vmatprep.subr.mxu0 0.0
  %2833 = vmatpush2.msra.mxu0 0.0
  %2834 = vmatprep.subr.mxu0 0.0
  %2835 = vmatpush2.msra.mxu0 0.0
  %2836 = vmatprep.subr.mxu0 0.0
  %2837 = vmatpush2.msra.mxu0 0.0
  %2838 = vmatprep.subr.mxu0 0.0
  %2839 = vmatpush2.msra.mxu0 0.0
  %2840 = vmatprep.subr.mxu0 0.0
  %2841 = vmatpush2.msra.mxu0 0.0
  %2842 = vmatprep.mubr.f32.mxu0 0.0
  %2843 = vmatmul.mubr.f32.gmra.mxu0 %v2774
  %v2844 = vpop.f32.mrf.mxu0
  %v2845 = vadd.f32 0.0, %v2844
  %v2846 = vpop.f32.mrf.mxu0
  %2847 = vmatprep.mubr.f32.mxu0 0.0
  %2848 = vmatmul.mubr.f32.gmra.mxu0 %v2776
  %v2849 = vpop.f32.mrf.mxu0
  %v2850 = vadd.f32 0.0, %v2849
  %v2851 = vpop.f32.mrf.mxu0
  %2852 = vdwg.mxu0
  %2855 = vrot.lane.b32.xlu0 %v2845, 56
  %v2856 = vpop.permute.xlu0 %2855
  %2857 = vrot.lane.b32.xlu0 %v2850, 56
  %v2858 = vpop.permute.xlu0 %2857
  %vm2861 = vcmask 490944
  %2862 = vst.msk [vmem:[#allocation8] sm:$0xff] %vm2861, %v2856
  %2863 = vst.msk [vmem:[#allocation8 + $0x8] sm:$0xff] %vm2861, %v2858
  %v2864 = vld [vmem:[#allocation6 + $0x8] sm:$0xff]
  %v2865 = vld [vmem:[#allocation6 + $0x38] sm:$0xff]
  %2868 = vrot.lane.b32.xlu0 %v2864, 105
  %v2869 = vpop.permute.xlu0 %2868
  %2870 = vrot.lane.b32.xlu0 %v2865, 105
  %v2871 = vpop.permute.xlu0 %2870
  %v2872 = vsel %vm574, %v2869, 0
  %v2874 = vsel %vm574, %v2871, 0
  %2876 = vmatprep.subr.mxu0 0.0
  %2877 = vmatpush1.msra.mxu0 0.0
  %2878 = vmatprep.subr.mxu0 0.0
  %2879 = vmatpush1.msra.mxu0 0.0
  %2880 = vmatprep.subr.mxu0 0.0
  %2881 = vmatpush1.msra.mxu0 0.0
  %2882 = vmatprep.subr.mxu0 0.0
  %2883 = vmatpush1.msra.mxu0 0.0
  %2884 = vmatprep.subr.mxu0 0.0
  %2885 = vmatpush1.msra.mxu0 0.0
  %2886 = vmatprep.subr.mxu0 0.0
  %2887 = vmatpush1.msra.mxu0 0.0
  %2888 = vmatprep.subr.mxu0 0.0
  %2889 = vmatpush1.msra.mxu0 0.0
  %2890 = vmatprep.subr.mxu0 0.0
  %2891 = vmatpush1.msra.mxu0 0.0
  %2892 = vmatprep.subr.mxu0 0.0
  %2893 = vmatpush1.msra.mxu0 0.0
  %2894 = vmatprep.subr.mxu0 0.0
  %2895 = vmatpush1.msra.mxu0 0.0
  %2896 = vmatprep.subr.mxu0 0.0
  %2897 = vmatpush1.msra.mxu0 0.0
  %2898 = vmatprep.subr.mxu0 0.0
  %2899 = vmatpush1.msra.mxu0 0.0
  %2900 = vmatprep.subr.mxu0 0.0
  %2901 = vmatpush1.msra.mxu0 0.0
  %2902 = vmatprep.subr.mxu0 0.0
  %2903 = vmatpush1.msra.mxu0 0.0
  %2904 = vmatprep.subr.mxu0 0.0
  %2905 = vmatpush1.msra.mxu0 0.0
  %2906 = vmatprep.subr.mxu0 0.0
  %2907 = vmatpush1.msra.mxu0 %v2282
  %2908 = vmatprep.subr.mxu0 0.0
  %2909 = vmatpush2.msra.mxu0 0.0
  %2910 = vmatprep.subr.mxu0 0.0
  %2911 = vmatpush2.msra.mxu0 0.0
  %2912 = vmatprep.subr.mxu0 0.0
  %2913 = vmatpush2.msra.mxu0 0.0
  %2914 = vmatprep.subr.mxu0 0.0
  %2915 = vmatpush2.msra.mxu0 0.0
  %2916 = vmatprep.subr.mxu0 0.0
  %2917 = vmatpush2.msra.mxu0 0.0
  %2918 = vmatprep.subr.mxu0 0.0
  %2919 = vmatpush2.msra.mxu0 0.0
  %2920 = vmatprep.subr.mxu0 0.0
  %2921 = vmatpush2.msra.mxu0 0.0
  %2922 = vmatprep.subr.mxu0 0.0
  %2923 = vmatpush2.msra.mxu0 0.0
  %2924 = vmatprep.subr.mxu0 0.0
  %2925 = vmatpush2.msra.mxu0 0.0
  %2926 = vmatprep.subr.mxu0 0.0
  %2927 = vmatpush2.msra.mxu0 0.0
  %2928 = vmatprep.subr.mxu0 0.0
  %2929 = vmatpush2.msra.mxu0 0.0
  %2930 = vmatprep.subr.mxu0 0.0
  %2931 = vmatpush2.msra.mxu0 0.0
  %2932 = vmatprep.subr.mxu0 0.0
  %2933 = vmatpush2.msra.mxu0 0.0
  %2934 = vmatprep.subr.mxu0 0.0
  %2935 = vmatpush2.msra.mxu0 0.0
  %2936 = vmatprep.subr.mxu0 0.0
  %2937 = vmatpush2.msra.mxu0 0.0
  %2938 = vmatprep.subr.mxu0 0.0
  %2939 = vmatpush2.msra.mxu0 0.0
  %2940 = vmatprep.mubr.f32.mxu0 0.0
  %2941 = vmatmul.mubr.f32.gmra.mxu0 %v2872
  %v2942 = vpop.f32.mrf.mxu0
  %v2943 = vadd.f32 0.0, %v2942
  %v2944 = vpop.f32.mrf.mxu0
  %2945 = vmatprep.mubr.f32.mxu0 0.0
  %2946 = vmatmul.mubr.f32.gmra.mxu0 %v2874
  %v2947 = vpop.f32.mrf.mxu0
  %v2948 = vadd.f32 0.0, %v2947
  %v2949 = vpop.f32.mrf.mxu0
  %2950 = vdwg.mxu0
  %2953 = vrot.lane.b32.xlu0 %v2943, 62
  %v2954 = vpop.permute.xlu0 %2953
  %2955 = vrot.lane.b32.xlu0 %v2948, 62
  %v2956 = vpop.permute.xlu0 %2955
  %vm2959 = vcmask 540144
  %2960 = vst.msk [vmem:[#allocation8] sm:$0xff] %vm2959, %v2954
  %2961 = vst.msk [vmem:[#allocation8 + $0x8] sm:$0xff] %vm2959, %v2956
  %v2962 = vld [vmem:[#allocation6 + $0x8] sm:$0xff]
  %v2963 = vld [vmem:[#allocation6 + $0x38] sm:$0xff]
  %2966 = vrot.lane.b32.xlu0 %v2962, 85
  %v2967 = vpop.permute.xlu0 %2966
  %2968 = vrot.lane.b32.xlu0 %v2963, 85
  %v2969 = vpop.permute.xlu0 %2968
  %v2970 = vsel %vm574, %v2967, 0
  %v2972 = vsel %vm574, %v2969, 0
  %2974 = vmatprep.subr.mxu0 0.0
  %2975 = vmatpush1.msra.mxu0 0.0
  %2976 = vmatprep.subr.mxu0 0.0
  %2977 = vmatpush1.msra.mxu0 0.0
  %2978 = vmatprep.subr.mxu0 0.0
  %2979 = vmatpush1.msra.mxu0 0.0
  %2980 = vmatprep.subr.mxu0 0.0
  %2981 = vmatpush1.msra.mxu0 0.0
  %2982 = vmatprep.subr.mxu0 0.0
  %2983 = vmatpush1.msra.mxu0 0.0
  %2984 = vmatprep.subr.mxu0 0.0
  %2985 = vmatpush1.msra.mxu0 0.0
  %2986 = vmatprep.subr.mxu0 0.0
  %2987 = vmatpush1.msra.mxu0 0.0
  %2988 = vmatprep.subr.mxu0 0.0
  %2989 = vmatpush1.msra.mxu0 0.0
  %2990 = vmatprep.subr.mxu0 0.0
  %2991 = vmatpush1.msra.mxu0 0.0
  %2992 = vmatprep.subr.mxu0 0.0
  %2993 = vmatpush1.msra.mxu0 0.0
  %2994 = vmatprep.subr.mxu0 0.0
  %2995 = vmatpush1.msra.mxu0 0.0
  %2996 = vmatprep.subr.mxu0 0.0
  %2997 = vmatpush1.msra.mxu0 0.0
  %2998 = vmatprep.subr.mxu0 0.0
  %2999 = vmatpush1.msra.mxu0 0.0
  %3000 = vmatprep.subr.mxu0 0.0
  %3001 = vmatpush1.msra.mxu0 0.0
  %3002 = vmatprep.subr.mxu0 0.0
  %3003 = vmatpush1.msra.mxu0 0.0
  %3004 = vmatprep.subr.mxu0 0.0
  %3005 = vmatpush1.msra.mxu0 %v2282
  %3006 = vmatprep.subr.mxu0 0.0
  %3007 = vmatpush2.msra.mxu0 0.0
  %3008 = vmatprep.subr.mxu0 0.0
  %3009 = vmatpush2.msra.mxu0 0.0
  %3010 = vmatprep.subr.mxu0 0.0
  %3011 = vmatpush2.msra.mxu0 0.0
  %3012 = vmatprep.subr.mxu0 0.0
  %3013 = vmatpush2.msra.mxu0 0.0
  %3014 = vmatprep.subr.mxu0 0.0
  %3015 = vmatpush2.msra.mxu0 0.0
  %3016 = vmatprep.subr.mxu0 0.0
  %3017 = vmatpush2.msra.mxu0 0.0
  %3018 = vmatprep.subr.mxu0 0.0
  %3019 = vmatpush2.msra.mxu0 0.0
  %3020 = vmatprep.subr.mxu0 0.0
  %3021 = vmatpush2.msra.mxu0 0.0
  %3022 = vmatprep.subr.mxu0 0.0
  %3023 = vmatpush2.msra.mxu0 0.0
  %3024 = vmatprep.subr.mxu0 0.0
  %3025 = vmatpush2.msra.mxu0 0.0
  %3026 = vmatprep.subr.mxu0 0.0
  %3027 = vmatpush2.msra.mxu0 0.0
  %3028 = vmatprep.subr.mxu0 0.0
  %3029 = vmatpush2.msra.mxu0 0.0
  %3030 = vmatprep.subr.mxu0 0.0
  %3031 = vmatpush2.msra.mxu0 0.0
  %3032 = vmatprep.subr.mxu0 0.0
  %3033 = vmatpush2.msra.mxu0 0.0
  %3034 = vmatprep.subr.mxu0 0.0
  %3035 = vmatpush2.msra.mxu0 0.0
  %3036 = vmatprep.subr.mxu0 0.0
  %3037 = vmatpush2.msra.mxu0 0.0
  %3038 = vmatprep.mubr.f32.mxu0 0.0
  %3039 = vmatmul.mubr.f32.gmra.mxu0 %v2970
  %v3040 = vpop.f32.mrf.mxu0
  %v3041 = vadd.f32 0.0, %v3040
  %v3042 = vpop.f32.mrf.mxu0
  %3043 = vmatprep.mubr.f32.mxu0 0.0
  %3044 = vmatmul.mubr.f32.gmra.mxu0 %v2972
  %v3045 = vpop.f32.mrf.mxu0
  %v3046 = vadd.f32 0.0, %v3045
  %v3047 = vpop.f32.mrf.mxu0
  %3048 = vdwg.mxu0
  %3051 = vrot.lane.b32.xlu0 %v3041, 68
  %v3052 = vpop.permute.xlu0 %3051
  %3053 = vrot.lane.b32.xlu0 %v3046, 68
  %v3054 = vpop.permute.xlu0 %3053
  %vm3057 = vcmask 589344
  %3058 = vst.msk [vmem:[#allocation8] sm:$0xff] %vm3057, %v3052
  %3059 = vst.msk [vmem:[#allocation8 + $0x8] sm:$0xff] %vm3057, %v3054
  %v3060 = vld [vmem:[#allocation8] sm:$0xff]
  %v3061 = vld [vmem:[#allocation8 + $0x8] sm:$0xff]
  %3062 = vst.msk [vmem:[#allocation4] sm:$0xff] %vm1998, %v3060
  %3063 = vst.msk [vmem:[#allocation4 + $0x8] sm:$0xff] %vm1998, %v3061
  %v3064 = vld [vmem:[#allocation8] sm:$0xff]
  %v3065 = vld [vmem:[#allocation8 + $0x8] sm:$0xff]
  %3068 = vrot.lane.b32.xlu0 %v3064, 127
  %v3069 = vpop.permute.xlu0 %3068
  %3070 = vrot.lane.b32.xlu0 %v3065, 127
  %v3071 = vpop.permute.xlu0 %3070
  %3074 = vst.msk [vmem:[#allocation4 + $0x10] sm:$0xff] %vm1998, %v3069
  %3075 = vst.msk [vmem:[#allocation4 + $0x18] sm:$0xff] %vm1998, %v3071
  %v3076 = vld [vmem:[#allocation8] sm:$0xff]
  %v3077 = vld [vmem:[#allocation8 + $0x8] sm:$0xff]
  %3080 = vrot.lane.b32.xlu0 %v3076, 126
  %v3081 = vpop.permute.xlu0 %3080
  %3082 = vrot.lane.b32.xlu0 %v3077, 126
  %v3083 = vpop.permute.xlu0 %3082
  %3086 = vst.msk [vmem:[#allocation4 + $0x20] sm:$0xff] %vm1998, %v3081
  %3087 = vst.msk [vmem:[#allocation4 + $0x28] sm:$0xff] %vm1998, %v3083
  %v3088 = vld [vmem:[#allocation8] sm:$0xff]
  %v3089 = vld [vmem:[#allocation8 + $0x8] sm:$0xff]
  %3092 = vrot.lane.b32.xlu0 %v3088, 122
  %v3093 = vpop.permute.xlu0 %3092
  %3094 = vrot.lane.b32.xlu0 %v3089, 122
  %v3095 = vpop.permute.xlu0 %3094
  %3098 = vst.msk [vmem:[#allocation4 + $0x30] sm:$0xff] %vm1998, %v3093
  %3099 = vst.msk [vmem:[#allocation4 + $0x38] sm:$0xff] %vm1998, %v3095
  %v3100 = vld [vmem:[#allocation8] sm:$0xff]
  %v3101 = vld [vmem:[#allocation8 + $0x8] sm:$0xff]
  %3104 = vrot.lane.b32.xlu0 %v3100, 121
  %v3105 = vpop.permute.xlu0 %3104
  %3106 = vrot.lane.b32.xlu0 %v3101, 121
  %v3107 = vpop.permute.xlu0 %3106
  %3110 = vst.msk [vmem:[#allocation4 + $0x40] sm:$0xff] %vm1998, %v3105
  %3111 = vst.msk [vmem:[#allocation4 + $0x48] sm:$0xff] %vm1998, %v3107
  %v3112 = vld [vmem:[#allocation8] sm:$0xff]
  %v3113 = vld [vmem:[#allocation8 + $0x8] sm:$0xff]
  %3116 = vrot.lane.b32.xlu0 %v3112, 120
  %v3117 = vpop.permute.xlu0 %3116
  %3118 = vrot.lane.b32.xlu0 %v3113, 120
  %v3119 = vpop.permute.xlu0 %3118
  %3122 = vst.msk [vmem:[#allocation4 + $0x50] sm:$0xff] %vm1998, %v3117
  %3123 = vst.msk [vmem:[#allocation4 + $0x58] sm:$0xff] %vm1998, %v3119
  %v3124 = vld [vmem:[#allocation8] sm:$0xff]
  %v3125 = vld [vmem:[#allocation8 + $0x8] sm:$0xff]
  %3128 = vrot.lane.b32.xlu0 %v3124, 116
  %v3129 = vpop.permute.xlu0 %3128
  %3130 = vrot.lane.b32.xlu0 %v3125, 116
  %v3131 = vpop.permute.xlu0 %3130
  %3134 = vst.msk [vmem:[#allocation4 + $0x60] sm:$0xff] %vm1998, %v3129
  %3135 = vst.msk [vmem:[#allocation4 + $0x68] sm:$0xff] %vm1998, %v3131
  %v3136 = vld [vmem:[#allocation8] sm:$0xff]
  %v3137 = vld [vmem:[#allocation8 + $0x8] sm:$0xff]
  %3140 = vrot.lane.b32.xlu0 %v3136, 115
  %v3141 = vpop.permute.xlu0 %3140
  %3142 = vrot.lane.b32.xlu0 %v3137, 115
  %v3143 = vpop.permute.xlu0 %3142
  %3146 = vst.msk [vmem:[#allocation4 + $0x70] sm:$0xff] %vm1998, %v3141
  %3147 = vst.msk [vmem:[#allocation4 + $0x78] sm:$0xff] %vm1998, %v3143
  %v3148 = vld [vmem:[#allocation8] sm:$0xff]
  %v3149 = vld [vmem:[#allocation8 + $0x8] sm:$0xff]
  %3152 = vrot.lane.b32.xlu0 %v3148, 114
  %v3153 = vpop.permute.xlu0 %3152
  %3154 = vrot.lane.b32.xlu0 %v3149, 114
  %v3155 = vpop.permute.xlu0 %3154
  %3158 = vst.msk [vmem:[#allocation4 + $0x80] sm:$0xff] %vm1998, %v3153
  %3159 = vst.msk [vmem:[#allocation4 + $0x88] sm:$0xff] %vm1998, %v3155
  %v3160 = vld [vmem:[%s1] sm:$0xff]
  %v3161 = vld [vmem:[%s1 + $0x18] sm:$0xff]
  %v3162 = vld [vmem:[%s1 + $0x30] sm:$0xff]
  %v3163 = vld [vmem:[%s1 + $0x48] sm:$0xff]
  %v3164 = vld [vmem:[#allocation4] sm:$0xff]
  %v3165 = vld [vmem:[#allocation4 + $0x8] sm:$0xff]
  %v3166 = vld [vmem:[#allocation4 + $0x10] sm:$0xff]
  %v3167 = vld [vmem:[#allocation4 + $0x18] sm:$0xff]
  %v3168 = vld [vmem:[#allocation4 + $0x20] sm:$0xff]
  %v3169 = vld [vmem:[#allocation4 + $0x28] sm:$0xff]
  %v3170 = vld [vmem:[#allocation4 + $0x30] sm:$0xff]
  %v3171 = vld [vmem:[#allocation4 + $0x38] sm:$0xff]
  %v3172 = vld [vmem:[#allocation4 + $0x40] sm:$0xff]
  %v3173 = vld [vmem:[#allocation4 + $0x48] sm:$0xff]
  %v3174 = vld [vmem:[#allocation4 + $0x50] sm:$0xff]
  %v3175 = vld [vmem:[#allocation4 + $0x58] sm:$0xff]
  %v3176 = vld [vmem:[#allocation4 + $0x60] sm:$0xff]
  %v3177 = vld [vmem:[#allocation4 + $0x68] sm:$0xff]
  %v3178 = vld [vmem:[#allocation4 + $0x70] sm:$0xff]
  %v3179 = vld [vmem:[#allocation4 + $0x78] sm:$0xff]
  %v3180 = vld [vmem:[#allocation4 + $0x80] sm:$0xff]
  %v3181 = vld [vmem:[#allocation4 + $0x88] sm:$0xff]
  %v3182 = vpack.c.bf16 %v3165, %v3164
  %v3183 = vpack.c.bf16 %v3167, %v3166
  %v3184 = vpack.c.bf16 %v3169, %v3168
  %v3185 = vpack.c.bf16 %v3171, %v3170
  %v3186 = vpack.c.bf16 %v3173, %v3172
  %v3187 = vpack.c.bf16 %v3175, %v3174
  %v3188 = vpack.c.bf16 %v3177, %v3176
  %v3189 = vpack.c.bf16 %v3179, %v3178
  %v3190 = vpack.c.bf16 %v3181, %v3180
  %v3191 = vld [vmem:[%s2] sm:$0xff]
  %v3192 = vld [vmem:[%s2 + $0x8] sm:$0xff]
  %v3193 = vld [vmem:[%s2 + $0x10] sm:$0xff]
  %v3194 = vld [vmem:[%s2 + $0x18] sm:$0xff]
  %3196 = vset.pattern.permute.xlu0 2
  %3197 = vperm.xlu0 %3196, %v3191
  %v3198 = vpop.permute.xlu0 %3197
  %3201 = vset.pattern.permute.xlu0 2
  %3202 = vperm.xlu0 %3201, %v3192
  %v3203 = vpop.permute.xlu0 %3202
  %3206 = vset.pattern.permute.xlu0 2
  %3207 = vperm.xlu0 %3206, %v3193
  %v3208 = vpop.permute.xlu0 %3207
  %3211 = vset.pattern.permute.xlu0 2
  %3212 = vperm.xlu0 %3211, %v3194
  %v3213 = vpop.permute.xlu0 %3212
  %v3219 = vunpack.c.l.b16 %v3160
  %v3220 = vunpack.c.h.b16 %v3160
  %v3221 = vunpack.c.l.b16 %v3161
  %v3222 = vunpack.c.h.b16 %v3161
  %v3223 = vunpack.c.l.b16 %v3162
  %v3224 = vunpack.c.h.b16 %v3162
  %v3225 = vunpack.c.l.b16 %v3163
  %v3226 = vunpack.c.h.b16 %v3163
  %v3227 = vpack.c.b16 %v3221, %v3219
  %v3228 = vpack.c.b16 %v3222, %v3220
  %v3229 = vpack.c.b16 %v3225, %v3223
  %v3230 = vpack.c.b16 %v3226, %v3224
  %3231 = vrot.lane.b32.xlu0 %v3227, 16
  %v3232 = vpop.permute.xlu0 %3231
  %3233 = vrot.lane.b32.xlu0 %v3228, 16
  %v3234 = vpop.permute.xlu0 %3233
  %3235 = vrot.lane.b32.xlu0 %v3229, 16
  %v3236 = vpop.permute.xlu0 %3235
  %3237 = vrot.lane.b32.xlu0 %v3230, 16
  %v3238 = vpop.permute.xlu0 %3237
  %vm3239 = vcmask 130048
  %v3240 = vsel %vm3239, %v3232, %v3234
  %v3241 = vsel %vm3239, %v3236, %v3238
  %v3245 = vsel %vm672, %v3234, 0
  %v3248 = vsel %vm672, %v3238, 0
  %3250 = vmatprep.subr.bf16.mxu0 0
  %3251 = vmatpush1.bf16.msra.mxu0 %v3189
  %3252 = vmatprep.subr.bf16.mxu0 0
  %3253 = vmatpush1.bf16.msra.mxu0 %v3188
  %3254 = vmatprep.subr.bf16.mxu0 0
  %3255 = vmatpush1.bf16.msra.mxu0 %v3187
  %3256 = vmatprep.subr.bf16.mxu0 0
  %3257 = vmatpush1.bf16.msra.mxu0 %v3186
  %3258 = vmatprep.subr.bf16.mxu0 0
  %3259 = vmatpush1.bf16.msra.mxu0 %v3185
  %3260 = vmatprep.subr.bf16.mxu0 0
  %3261 = vmatpush1.bf16.msra.mxu0 %v3184
  %3262 = vmatprep.subr.bf16.mxu0 0
  %3263 = vmatpush1.bf16.msra.mxu0 %v3183
  %3264 = vmatprep.subr.bf16.mxu0 0
  %3265 = vmatpush1.bf16.msra.mxu0 %v3182
  %3266 = vmatprep.subr.bf16.mxu0 0
  %3267 = vmatpush2.bf16.msra.mxu0 0
  %3268 = vmatprep.subr.bf16.mxu0 0
  %3269 = vmatpush2.bf16.msra.mxu0 0
  %3270 = vmatprep.subr.bf16.mxu0 0
  %3271 = vmatpush2.bf16.msra.mxu0 0
  %3272 = vmatprep.subr.bf16.mxu0 0
  %3273 = vmatpush2.bf16.msra.mxu0 0
  %3274 = vmatprep.subr.bf16.mxu0 0
  %3275 = vmatpush2.bf16.msra.mxu0 0
  %3276 = vmatprep.subr.bf16.mxu0 0
  %3277 = vmatpush2.bf16.msra.mxu0 0
  %3278 = vmatprep.subr.bf16.mxu0 0
  %3279 = vmatpush2.bf16.msra.mxu0 0
  %3280 = vmatprep.subr.bf16.mxu0 0
  %3281 = vmatpush2.bf16.msra.mxu0 %v3190
  %3282 = vmatprep.mubr.bf16.mxu0 %v3245
  %3283 = vmatmul.mubr.bf16.gmra.mxu0 %v3240
  %v3284 = vpop.f32.mrf.mxu0
  %v3285 = vadd.f32 %v3198, %v3284
  %v3286 = vpop.f32.mrf.mxu0
  %v3287 = vpop.f32.mrf.mxu0
  %v3288 = vadd.f32 %v3203, %v3287
  %v3289 = vpop.f32.mrf.mxu0
  %3290 = vmatprep.mubr.bf16.mxu0 %v3248
  %3291 = vmatmul.mubr.bf16.gmra.mxu0 %v3241
  %v3292 = vpop.f32.mrf.mxu0
  %v3293 = vadd.f32 %v3208, %v3292
  %v3294 = vpop.f32.mrf.mxu0
  %v3295 = vpop.f32.mrf.mxu0
  %v3296 = vadd.f32 %v3213, %v3295
  %v3297 = vpop.f32.mrf.mxu0
  %3298 = vdwg.mxu0
  %v3299 = vmax.f32 %v3285, 0.0
  %v3300 = vmax.f32 %v3288, 0.0
  %v3301 = vmax.f32 %v3293, 0.0
  %v3302 = vmax.f32 %v3296, 0.0
  %v3303 = vld [vmem:[%s2] sm:$0x1]
  %v3304 = vlaneseq
  %v3305 = vshrl.u32 %v3304, 7
  %v3306 = vsub.s32 0, %v3305
  %v3307 = vrot.slane %v3303, %v3306
  %3309 = vrot.lane.b32.xlu0 %v3307, 112
  %v3310 = vpop.permute.xlu0 %3309
  %v3312 = vmul.f32 %v3299, %v3310
  %v3313 = vmul.f32 %v3300, %v3310
  %v3314 = vmul.f32 %v3301, %v3310
  %v3315 = vmul.f32 %v3302, %v3310
  %3320 = vrot.lane.b32.xlu0 %v3312, 7
  %v3321 = vpop.permute.xlu0 %3320
  %3322 = vrot.lane.b32.xlu0 %v3313, 7
  %v3323 = vpop.permute.xlu0 %3322
  %3324 = vrot.lane.b32.xlu0 %v3314, 7
  %v3325 = vpop.permute.xlu0 %3324
  %3326 = vrot.lane.b32.xlu0 %v3315, 7
  %v3327 = vpop.permute.xlu0 %3326
  %vm3332 = vcmask 646200
  %3333 = vst.msk [vmem:[#allocation9] sm:$0xff] %vm3332, %v3321
  %3334 = vst.msk [vmem:[#allocation9 + $0x8] sm:$0xff] %vm3332, %v3323
  %3335 = vst.msk [vmem:[#allocation9 + $0x10] sm:$0xff] %vm3332, %v3325
  %3336 = vst.msk [vmem:[#allocation9 + $0x18] sm:$0xff] %vm3332, %v3327
  %v3337 = vld [vmem:[#allocation9] sm:$0xff]
  %v3338 = vld [vmem:[#allocation9 + $0x8] sm:$0xff]
  %v3339 = vld [vmem:[#allocation9 + $0x10] sm:$0xff]
  %v3340 = vld [vmem:[#allocation9 + $0x18] sm:$0xff]
  %3341 = vst.msk [vmem:[#allocation5] sm:$0xff] %vm1998, %v3337
  %3342 = vst.msk [vmem:[#allocation5 + $0x8] sm:$0xff] %vm1998, %v3338
  %3343 = vst.msk [vmem:[#allocation5 + $0x10] sm:$0xff] %vm1998, %v3339
  %3344 = vst.msk [vmem:[#allocation5 + $0x18] sm:$0xff] %vm1998, %v3340
  %v3345 = vld [vmem:[#allocation9] sm:$0xff]
  %v3346 = vld [vmem:[#allocation9 + $0x8] sm:$0xff]
  %v3347 = vld [vmem:[#allocation9 + $0x10] sm:$0xff]
  %v3348 = vld [vmem:[#allocation9 + $0x18] sm:$0xff]
  %3353 = vrot.lane.b32.xlu0 %v3345, 127
  %v3354 = vpop.permute.xlu0 %3353
  %3355 = vrot.lane.b32.xlu0 %v3346, 127
  %v3356 = vpop.permute.xlu0 %3355
  %3357 = vrot.lane.b32.xlu0 %v3347, 127
  %v3358 = vpop.permute.xlu0 %3357
  %3359 = vrot.lane.b32.xlu0 %v3348, 127
  %v3360 = vpop.permute.xlu0 %3359
  %3365 = vst.msk [vmem:[#allocation5 + $0x20] sm:$0xff] %vm1998, %v3354
  %3366 = vst.msk [vmem:[#allocation5 + $0x28] sm:$0xff] %vm1998, %v3356
  %3367 = vst.msk [vmem:[#allocation5 + $0x30] sm:$0xff] %vm1998, %v3358
  %3368 = vst.msk [vmem:[#allocation5 + $0x38] sm:$0xff] %vm1998, %v3360
  %v3369 = vld [vmem:[#allocation9] sm:$0xff]
  %v3370 = vld [vmem:[#allocation9 + $0x8] sm:$0xff]
  %v3371 = vld [vmem:[#allocation9 + $0x10] sm:$0xff]
  %v3372 = vld [vmem:[#allocation9 + $0x18] sm:$0xff]
  %3377 = vrot.lane.b32.xlu0 %v3369, 126
  %v3378 = vpop.permute.xlu0 %3377
  %3379 = vrot.lane.b32.xlu0 %v3370, 126
  %v3380 = vpop.permute.xlu0 %3379
  %3381 = vrot.lane.b32.xlu0 %v3371, 126
  %v3382 = vpop.permute.xlu0 %3381
  %3383 = vrot.lane.b32.xlu0 %v3372, 126
  %v3384 = vpop.permute.xlu0 %3383
  %3389 = vst.msk [vmem:[#allocation5 + $0x40] sm:$0xff] %vm1998, %v3378
  %3390 = vst.msk [vmem:[#allocation5 + $0x48] sm:$0xff] %vm1998, %v3380
  %3391 = vst.msk [vmem:[#allocation5 + $0x50] sm:$0xff] %vm1998, %v3382
  %3392 = vst.msk [vmem:[#allocation5 + $0x58] sm:$0xff] %vm1998, %v3384
  %v3393 = vld [vmem:[#allocation9] sm:$0xff]
  %v3394 = vld [vmem:[#allocation9 + $0x8] sm:$0xff]
  %v3395 = vld [vmem:[#allocation9 + $0x10] sm:$0xff]
  %v3396 = vld [vmem:[#allocation9 + $0x18] sm:$0xff]
  %3401 = vrot.lane.b32.xlu0 %v3393, 122
  %v3402 = vpop.permute.xlu0 %3401
  %3403 = vrot.lane.b32.xlu0 %v3394, 122
  %v3404 = vpop.permute.xlu0 %3403
  %3405 = vrot.lane.b32.xlu0 %v3395, 122
  %v3406 = vpop.permute.xlu0 %3405
  %3407 = vrot.lane.b32.xlu0 %v3396, 122
  %v3408 = vpop.permute.xlu0 %3407
  %3413 = vst.msk [vmem:[#allocation5 + $0x60] sm:$0xff] %vm1998, %v3402
  %3414 = vst.msk [vmem:[#allocation5 + $0x68] sm:$0xff] %vm1998, %v3404
  %3415 = vst.msk [vmem:[#allocation5 + $0x70] sm:$0xff] %vm1998, %v3406
  %3416 = vst.msk [vmem:[#allocation5 + $0x78] sm:$0xff] %vm1998, %v3408
  %v3417 = vld [vmem:[#allocation9] sm:$0xff]
  %v3418 = vld [vmem:[#allocation9 + $0x8] sm:$0xff]
  %v3419 = vld [vmem:[#allocation9 + $0x10] sm:$0xff]
  %v3420 = vld [vmem:[#allocation9 + $0x18] sm:$0xff]
  %3425 = vrot.lane.b32.xlu0 %v3417, 121
  %v3426 = vpop.permute.xlu0 %3425
  %3427 = vrot.lane.b32.xlu0 %v3418, 121
  %v3428 = vpop.permute.xlu0 %3427
  %3429 = vrot.lane.b32.xlu0 %v3419, 121
  %v3430 = vpop.permute.xlu0 %3429
  %3431 = vrot.lane.b32.xlu0 %v3420, 121
  %v3432 = vpop.permute.xlu0 %3431
  %3437 = vst.msk [vmem:[#allocation5 + $0x80] sm:$0xff] %vm1998, %v3426
  %3438 = vst.msk [vmem:[#allocation5 + $0x88] sm:$0xff] %vm1998, %v3428
  %3439 = vst.msk [vmem:[#allocation5 + $0x90] sm:$0xff] %vm1998, %v3430
  %3440 = vst.msk [vmem:[#allocation5 + $0x98] sm:$0xff] %vm1998, %v3432
  %v3441 = vld [vmem:[#allocation9] sm:$0xff]
  %v3442 = vld [vmem:[#allocation9 + $0x8] sm:$0xff]
  %v3443 = vld [vmem:[#allocation9 + $0x10] sm:$0xff]
  %v3444 = vld [vmem:[#allocation9 + $0x18] sm:$0xff]
  %3449 = vrot.lane.b32.xlu0 %v3441, 120
  %v3450 = vpop.permute.xlu0 %3449
  %3451 = vrot.lane.b32.xlu0 %v3442, 120
  %v3452 = vpop.permute.xlu0 %3451
  %3453 = vrot.lane.b32.xlu0 %v3443, 120
  %v3454 = vpop.permute.xlu0 %3453
  %3455 = vrot.lane.b32.xlu0 %v3444, 120
  %v3456 = vpop.permute.xlu0 %3455
  %3461 = vst.msk [vmem:[#allocation5 + $0xa0] sm:$0xff] %vm1998, %v3450
  %3462 = vst.msk [vmem:[#allocation5 + $0xa8] sm:$0xff] %vm1998, %v3452
  %3463 = vst.msk [vmem:[#allocation5 + $0xb0] sm:$0xff] %vm1998, %v3454
  %3464 = vst.msk [vmem:[#allocation5 + $0xb8] sm:$0xff] %vm1998, %v3456
  %v3465 = vld [vmem:[#allocation9] sm:$0xff]
  %v3466 = vld [vmem:[#allocation9 + $0x8] sm:$0xff]
  %v3467 = vld [vmem:[#allocation9 + $0x10] sm:$0xff]
  %v3468 = vld [vmem:[#allocation9 + $0x18] sm:$0xff]
  %3473 = vrot.lane.b32.xlu0 %v3465, 116
  %v3474 = vpop.permute.xlu0 %3473
  %3475 = vrot.lane.b32.xlu0 %v3466, 116
  %v3476 = vpop.permute.xlu0 %3475
  %3477 = vrot.lane.b32.xlu0 %v3467, 116
  %v3478 = vpop.permute.xlu0 %3477
  %3479 = vrot.lane.b32.xlu0 %v3468, 116
  %v3480 = vpop.permute.xlu0 %3479
  %3485 = vst.msk [vmem:[#allocation5 + $0xc0] sm:$0xff] %vm1998, %v3474
  %3486 = vst.msk [vmem:[#allocation5 + $0xc8] sm:$0xff] %vm1998, %v3476
  %3487 = vst.msk [vmem:[#allocation5 + $0xd0] sm:$0xff] %vm1998, %v3478
  %3488 = vst.msk [vmem:[#allocation5 + $0xd8] sm:$0xff] %vm1998, %v3480
  %v3489 = vld [vmem:[#allocation9] sm:$0xff]
  %v3490 = vld [vmem:[#allocation9 + $0x8] sm:$0xff]
  %v3491 = vld [vmem:[#allocation9 + $0x10] sm:$0xff]
  %v3492 = vld [vmem:[#allocation9 + $0x18] sm:$0xff]
  %3497 = vrot.lane.b32.xlu0 %v3489, 115
  %v3498 = vpop.permute.xlu0 %3497
  %3499 = vrot.lane.b32.xlu0 %v3490, 115
  %v3500 = vpop.permute.xlu0 %3499
  %3501 = vrot.lane.b32.xlu0 %v3491, 115
  %v3502 = vpop.permute.xlu0 %3501
  %3503 = vrot.lane.b32.xlu0 %v3492, 115
  %v3504 = vpop.permute.xlu0 %3503
  %3509 = vst.msk [vmem:[#allocation5 + $0xe0] sm:$0xff] %vm1998, %v3498
  %3510 = vst.msk [vmem:[#allocation5 + $0xe8] sm:$0xff] %vm1998, %v3500
  %3511 = vst.msk [vmem:[#allocation5 + $0xf0] sm:$0xff] %vm1998, %v3502
  %3512 = vst.msk [vmem:[#allocation5 + $0xf8] sm:$0xff] %vm1998, %v3504
  %v3513 = vld [vmem:[#allocation9] sm:$0xff]
  %v3514 = vld [vmem:[#allocation9 + $0x8] sm:$0xff]
  %v3515 = vld [vmem:[#allocation9 + $0x10] sm:$0xff]
  %v3516 = vld [vmem:[#allocation9 + $0x18] sm:$0xff]
  %3521 = vrot.lane.b32.xlu0 %v3513, 114
  %v3522 = vpop.permute.xlu0 %3521
  %3523 = vrot.lane.b32.xlu0 %v3514, 114
  %v3524 = vpop.permute.xlu0 %3523
  %3525 = vrot.lane.b32.xlu0 %v3515, 114
  %v3526 = vpop.permute.xlu0 %3525
  %3527 = vrot.lane.b32.xlu0 %v3516, 114
  %v3528 = vpop.permute.xlu0 %3527
  %3533 = vst.msk [vmem:[#allocation5 + $0x100] sm:$0xff] %vm1998, %v3522
  %3534 = vst.msk [vmem:[#allocation5 + $0x108] sm:$0xff] %vm1998, %v3524
  %3535 = vst.msk [vmem:[#allocation5 + $0x110] sm:$0xff] %vm1998, %v3526
  %3536 = vst.msk [vmem:[#allocation5 + $0x118] sm:$0xff] %vm1998, %v3528
  %v3537 = vld [vmem:[%s1 + $0x8] sm:$0xff]
  %v3538 = vld [vmem:[%s1 + $0x10] sm:$0xf]
  %v3539 = vld [vmem:[%s1 + $0x20] sm:$0xff]
  %v3540 = vld [vmem:[%s1 + $0x28] sm:$0xf]
  %v3541 = vld [vmem:[%s1 + $0x38] sm:$0xff]
  %v3542 = vld [vmem:[%s1 + $0x40] sm:$0xf]
  %v3543 = vld [vmem:[%s1 + $0x50] sm:$0xff]
  %v3544 = vld [vmem:[%s1 + $0x58] sm:$0xf]
  %v3545 = vld [vmem:[#allocation5] sm:$0xff]
  %v3546 = vld [vmem:[#allocation5 + $0x8] sm:$0xff]
  %v3547 = vld [vmem:[#allocation5 + $0x10] sm:$0xff]
  %v3548 = vld [vmem:[#allocation5 + $0x18] sm:$0xff]
  %v3549 = vld [vmem:[#allocation5 + $0x20] sm:$0xff]
  %v3550 = vld [vmem:[#allocation5 + $0x28] sm:$0xff]
  %v3551 = vld [vmem:[#allocation5 + $0x30] sm:$0xff]
  %v3552 = vld [vmem:[#allocation5 + $0x38] sm:$0xff]
  %v3553 = vld [vmem:[#allocation5 + $0x40] sm:$0xff]
  %v3554 = vld [vmem:[#allocation5 + $0x48] sm:$0xff]
  %v3555 = vld [vmem:[#allocation5 + $0x50] sm:$0xff]
  %v3556 = vld [vmem:[#allocation5 + $0x58] sm:$0xff]
  %v3557 = vld [vmem:[#allocation5 + $0x60] sm:$0xff]
  %v3558 = vld [vmem:[#allocation5 + $0x68] sm:$0xff]
  %v3559 = vld [vmem:[#allocation5 + $0x70] sm:$0xff]
  %v3560 = vld [vmem:[#allocation5 + $0x78] sm:$0xff]
  %v3561 = vld [vmem:[#allocation5 + $0x80] sm:$0xff]
  %v3562 = vld [vmem:[#allocation5 + $0x88] sm:$0xff]
  %v3563 = vld [vmem:[#allocation5 + $0x90] sm:$0xff]
  %v3564 = vld [vmem:[#allocation5 + $0x98] sm:$0xff]
  %v3565 = vld [vmem:[#allocation5 + $0xa0] sm:$0xff]
  %v3566 = vld [vmem:[#allocation5 + $0xa8] sm:$0xff]
  %v3567 = vld [vmem:[#allocation5 + $0xb0] sm:$0xff]
  %v3568 = vld [vmem:[#allocation5 + $0xb8] sm:$0xff]
  %v3569 = vld [vmem:[#allocation5 + $0xc0] sm:$0xff]
  %v3570 = vld [vmem:[#allocation5 + $0xc8] sm:$0xff]
  %v3571 = vld [vmem:[#allocation5 + $0xd0] sm:$0xff]
  %v3572 = vld [vmem:[#allocation5 + $0xd8] sm:$0xff]
  %v3573 = vld [vmem:[#allocation5 + $0xe0] sm:$0xff]
  %v3574 = vld [vmem:[#allocation5 + $0xe8] sm:$0xff]
  %v3575 = vld [vmem:[#allocation5 + $0xf0] sm:$0xff]
  %v3576 = vld [vmem:[#allocation5 + $0xf8] sm:$0xff]
  %v3577 = vld [vmem:[#allocation5 + $0x100] sm:$0xff]
  %v3578 = vld [vmem:[#allocation5 + $0x108] sm:$0xff]
  %v3579 = vld [vmem:[#allocation5 + $0x110] sm:$0xff]
  %v3580 = vld [vmem:[#allocation5 + $0x118] sm:$0xff]
  %v3581 = vpack.c.bf16 %v3546, %v3545
  %v3582 = vpack.c.bf16 %v3548, %v3547
  %v3583 = vpack.c.bf16 %v3550, %v3549
  %v3584 = vpack.c.bf16 %v3552, %v3551
  %v3585 = vpack.c.bf16 %v3554, %v3553
  %v3586 = vpack.c.bf16 %v3556, %v3555
  %v3587 = vpack.c.bf16 %v3558, %v3557
  %v3588 = vpack.c.bf16 %v3560, %v3559
  %v3589 = vpack.c.bf16 %v3562, %v3561
  %v3590 = vpack.c.bf16 %v3564, %v3563
  %v3591 = vpack.c.bf16 %v3566, %v3565
  %v3592 = vpack.c.bf16 %v3568, %v3567
  %v3593 = vpack.c.bf16 %v3570, %v3569
  %v3594 = vpack.c.bf16 %v3572, %v3571
  %v3595 = vpack.c.bf16 %v3574, %v3573
  %v3596 = vpack.c.bf16 %v3576, %v3575
  %v3597 = vpack.c.bf16 %v3578, %v3577
  %v3598 = vpack.c.bf16 %v3580, %v3579
  %v3599 = vld [vmem:[%s2] sm:$0xff]
  %v3600 = vld [vmem:[%s2 + $0x8] sm:$0xff]
  %v3601 = vld [vmem:[%s2 + $0x10] sm:$0xff]
  %v3602 = vld [vmem:[%s2 + $0x18] sm:$0xff]
  %3604 = vset.pattern.permute.xlu0 3
  %3605 = vperm.xlu0 %3604, %v3599
  %v3606 = vpop.permute.xlu0 %3605
  %3609 = vset.pattern.permute.xlu0 3
  %3610 = vperm.xlu0 %3609, %v3600
  %v3611 = vpop.permute.xlu0 %3610
  %3614 = vset.pattern.permute.xlu0 3
  %3615 = vperm.xlu0 %3614, %v3601
  %v3616 = vpop.permute.xlu0 %3615
  %3619 = vset.pattern.permute.xlu0 3
  %3620 = vperm.xlu0 %3619, %v3602
  %v3621 = vpop.permute.xlu0 %3620
  %v3631 = vunpack.c.l.b16 %v3537
  %v3632 = vunpack.c.h.b16 %v3537
  %v3633 = vunpack.c.l.b16 %v3538
  %v3634 = vunpack.c.l.b16 %v3539
  %v3635 = vunpack.c.h.b16 %v3539
  %v3636 = vunpack.c.l.b16 %v3540
  %v3637 = vunpack.c.l.b16 %v3541
  %v3638 = vunpack.c.h.b16 %v3541
  %v3639 = vunpack.c.l.b16 %v3542
  %v3640 = vunpack.c.l.b16 %v3543
  %v3641 = vunpack.c.h.b16 %v3543
  %v3642 = vunpack.c.l.b16 %v3544
  %v3643 = vpack.c.b16 %v3634, %v3631
  %v3644 = vpack.c.b16 %v3635, %v3632
  %v3645 = vpack.c.b16 %v3636, %v3633
  %v3646 = vpack.c.b16 %v3640, %v3637
  %v3647 = vpack.c.b16 %v3641, %v3638
  %v3648 = vpack.c.b16 %v3642, %v3639
  %vm3653 = vcmask 261120
  %v3655 = vsel %vm3653, %v3645, 0
  %v3658 = vsel %vm3653, %v3648, 0
  %3660 = vmatprep.subr.bf16.mxu0 0
  %3661 = vmatpush1.bf16.msra.mxu0 %v3588
  %3662 = vmatprep.subr.bf16.mxu0 0
  %3663 = vmatpush1.bf16.msra.mxu0 %v3587
  %3664 = vmatprep.subr.bf16.mxu0 0
  %3665 = vmatpush1.bf16.msra.mxu0 %v3586
  %3666 = vmatprep.subr.bf16.mxu0 0
  %3667 = vmatpush1.bf16.msra.mxu0 %v3585
  %3668 = vmatprep.subr.bf16.mxu0 0
  %3669 = vmatpush1.bf16.msra.mxu0 %v3584
  %3670 = vmatprep.subr.bf16.mxu0 0
  %3671 = vmatpush1.bf16.msra.mxu0 %v3583
  %3672 = vmatprep.subr.bf16.mxu0 0
  %3673 = vmatpush1.bf16.msra.mxu0 %v3582
  %3674 = vmatprep.subr.bf16.mxu0 0
  %3675 = vmatpush1.bf16.msra.mxu0 %v3581
  %3676 = vmatprep.subr.bf16.mxu0 0
  %3677 = vmatpush2.bf16.msra.mxu0 %v3596
  %3678 = vmatprep.subr.bf16.mxu0 0
  %3679 = vmatpush2.bf16.msra.mxu0 %v3595
  %3680 = vmatprep.subr.bf16.mxu0 0
  %3681 = vmatpush2.bf16.msra.mxu0 %v3594
  %3682 = vmatprep.subr.bf16.mxu0 0
  %3683 = vmatpush2.bf16.msra.mxu0 %v3593
  %3684 = vmatprep.subr.bf16.mxu0 0
  %3685 = vmatpush2.bf16.msra.mxu0 %v3592
  %3686 = vmatprep.subr.bf16.mxu0 0
  %3687 = vmatpush2.bf16.msra.mxu0 %v3591
  %3688 = vmatprep.subr.bf16.mxu0 0
  %3689 = vmatpush2.bf16.msra.mxu0 %v3590
  %3690 = vmatprep.subr.bf16.mxu0 0
  %3691 = vmatpush2.bf16.msra.mxu0 %v3589
  %3692 = vmatprep.mubr.bf16.mxu0 %v3644
  %3693 = vmatmul.mubr.bf16.gmra.mxu0 %v3643
  %v3694 = vpop.f32.mrf.mxu0
  %v3695 = vadd.f32 %v3606, %v3694
  %v3696 = vpop.f32.mrf.mxu0
  %v3697 = vpop.f32.mrf.mxu0
  %v3698 = vadd.f32 %v3611, %v3697
  %v3699 = vpop.f32.mrf.mxu0
  %3700 = vmatprep.mubr.bf16.mxu0 %v3647
  %3701 = vmatmul.mubr.bf16.gmra.mxu0 %v3646
  %v3702 = vpop.f32.mrf.mxu0
  %v3703 = vadd.f32 %v3616, %v3702
  %v3704 = vpop.f32.mrf.mxu0
  %v3705 = vpop.f32.mrf.mxu0
  %v3706 = vadd.f32 %v3621, %v3705
  %v3707 = vpop.f32.mrf.mxu0
  %3708 = vdwg.mxu0
  %3709 = vmatprep.subr.bf16.mxu0 0
  %3710 = vmatpush1.bf16.msra.mxu0 0
  %3711 = vmatprep.subr.bf16.mxu0 0
  %3712 = vmatpush1.bf16.msra.mxu0 0
  %3713 = vmatprep.subr.bf16.mxu0 0
  %3714 = vmatpush1.bf16.msra.mxu0 0
  %3715 = vmatprep.subr.bf16.mxu0 0
  %3716 = vmatpush1.bf16.msra.mxu0 0
  %3717 = vmatprep.subr.bf16.mxu0 0
  %3718 = vmatpush1.bf16.msra.mxu0 0
  %3719 = vmatprep.subr.bf16.mxu0 0
  %3720 = vmatpush1.bf16.msra.mxu0 0
  %3721 = vmatprep.subr.bf16.mxu0 0
  %3722 = vmatpush1.bf16.msra.mxu0 %v3598
  %3723 = vmatprep.subr.bf16.mxu0 0
  %3724 = vmatpush1.bf16.msra.mxu0 %v3597
  %3725 = vmatprep.subr.bf16.mxu0 0
  %3726 = vmatpush2.bf16.msra.mxu0 0
  %3727 = vmatprep.subr.bf16.mxu0 0
  %3728 = vmatpush2.bf16.msra.mxu0 0
  %3729 = vmatprep.subr.bf16.mxu0 0
  %3730 = vmatpush2.bf16.msra.mxu0 0
  %3731 = vmatprep.subr.bf16.mxu0 0
  %3732 = vmatpush2.bf16.msra.mxu0 0
  %3733 = vmatprep.subr.bf16.mxu0 0
  %3734 = vmatpush2.bf16.msra.mxu0 0
  %3735 = vmatprep.subr.bf16.mxu0 0
  %3736 = vmatpush2.bf16.msra.mxu0 0
  %3737 = vmatprep.subr.bf16.mxu0 0
  %3738 = vmatpush2.bf16.msra.mxu0 0
  %3739 = vmatprep.subr.bf16.mxu0 0
  %3740 = vmatpush2.bf16.msra.mxu0 0
  %3741 = vmatprep.mubr.bf16.mxu0 0
  %3742 = vmatmul.mubr.bf16.gmra.mxu0 %v3655
  %v3743 = vpop.f32.mrf.mxu0
  %v3744 = vadd.f32 %v3695, %v3743
  %v3745 = vpop.f32.mrf.mxu0
  %v3746 = vpop.f32.mrf.mxu0
  %v3747 = vadd.f32 %v3698, %v3746
  %v3748 = vpop.f32.mrf.mxu0
  %3749 = vmatprep.mubr.bf16.mxu0 0
  %3750 = vmatmul.mubr.bf16.gmra.mxu0 %v3658
  %v3751 = vpop.f32.mrf.mxu0
  %v3752 = vadd.f32 %v3703, %v3751
  %v3753 = vpop.f32.mrf.mxu0
  %v3754 = vpop.f32.mrf.mxu0
  %v3755 = vadd.f32 %v3706, %v3754
  %v3756 = vpop.f32.mrf.mxu0
  %3757 = vdwg.mxu0
  %v3758 = vmax.f32 %v3744, 0.0
  %v3759 = vmax.f32 %v3747, 0.0
  %v3760 = vmax.f32 %v3752, 0.0
  %v3761 = vmax.f32 %v3755, 0.0
  %3762 = vst.msk [vmem:[#allocation6] sm:$0xff] %vm1998, %v3758
  %3763 = vst.msk [vmem:[#allocation6 + $0x30] sm:$0xff] %vm1998, %v3759
  %3764 = vst.msk [vmem:[#allocation6 + $0x60] sm:$0xff] %vm1998, %v3760
  %3765 = vst.msk [vmem:[#allocation6 + $0x90] sm:$0xff] %vm1998, %v3761
  %v3766 = vld [vmem:[#allocation6] sm:$0xff]
  %v3767 = vld [vmem:[#allocation6 + $0x30] sm:$0xff]
  %v3768 = vld [vmem:[#allocation6 + $0x60] sm:$0xff]
  %v3769 = vld [vmem:[#allocation6 + $0x90] sm:$0xff]
  %3774 = vrot.lane.b32.xlu0 %v3766, 127
  %v3775 = vpop.permute.xlu0 %3774
  %3776 = vrot.lane.b32.xlu0 %v3767, 127
  %v3777 = vpop.permute.xlu0 %3776
  %3778 = vrot.lane.b32.xlu0 %v3768, 127
  %v3779 = vpop.permute.xlu0 %3778
  %3780 = vrot.lane.b32.xlu0 %v3769, 127
  %v3781 = vpop.permute.xlu0 %3780
  %v3786 = vmax.f32 %v3766, %v3775
  %v3787 = vmax.f32 %v3767, %v3777
  %v3788 = vmax.f32 %v3768, %v3779
  %v3789 = vmax.f32 %v3769, %v3781
  %3794 = vrot.lane.b32.xlu0 %v3786, 122
  %v3795 = vpop.permute.xlu0 %3794
  %3796 = vrot.lane.b32.xlu0 %v3787, 122
  %v3797 = vpop.permute.xlu0 %3796
  %3798 = vrot.lane.b32.xlu0 %v3788, 122
  %v3799 = vpop.permute.xlu0 %3798
  %3800 = vrot.lane.b32.xlu0 %v3789, 122
  %v3801 = vpop.permute.xlu0 %3800
  %v3806 = vmax.f32 %v3786, %v3795
  %v3807 = vmax.f32 %v3787, %v3797
  %v3808 = vmax.f32 %v3788, %v3799
  %v3809 = vmax.f32 %v3789, %v3801
  %3810 = vst.msk [vmem:[#allocation6] sm:$0xff] %vm1998, %v3806
  %3811 = vst.msk [vmem:[#allocation6 + $0x30] sm:$0xff] %vm1998, %v3807
  %3812 = vst.msk [vmem:[#allocation6 + $0x60] sm:$0xff] %vm1998, %v3808
  %3813 = vst.msk [vmem:[#allocation6 + $0x90] sm:$0xff] %vm1998, %v3809
  %v3814 = vld [vmem:[%s2] sm:$0xf]
  %v3815 = vld [vmem:[#allocation6] sm:$0xff]
  %v3816 = vld [vmem:[#allocation6 + $0x30] sm:$0xff]
  %v3817 = vld [vmem:[#allocation6 + $0x60] sm:$0xff]
  %v3818 = vld [vmem:[#allocation6 + $0x90] sm:$0xff]
  %3823 = vrot.lane.b32.xlu0 %v3815, 121
  %v3824 = vpop.permute.xlu0 %3823
  %3825 = vrot.lane.b32.xlu0 %v3816, 121
  %v3826 = vpop.permute.xlu0 %3825
  %3827 = vrot.lane.b32.xlu0 %v3817, 121
  %v3828 = vpop.permute.xlu0 %3827
  %3829 = vrot.lane.b32.xlu0 %v3818, 121
  %v3830 = vpop.permute.xlu0 %3829
  %3832 = vrot.lane.b32.xlu0 %v3814, 120
  %v3833 = vpop.permute.xlu0 %3832
  %vm3834 = vcmask 31744
  %v3835 = vsel %vm3834, %v3824, 0
  %v3837 = vsel %vm3834, %v3826, 0
  %v3839 = vsel %vm3834, %v3828, 0
  %v3841 = vsel %vm3834, %v3830, 0
  %v3843 = vsel %vm2161, %v3833, 0
  %3845 = vmatprep.subr.mxu0 0.0
  %3846 = vmatpush1.msra.mxu0 0.0
  %3847 = vmatprep.subr.mxu0 0.0
  %3848 = vmatpush1.msra.mxu0 0.0
  %3849 = vmatprep.subr.mxu0 0.0
  %3850 = vmatpush1.msra.mxu0 0.0
  %3851 = vmatprep.subr.mxu0 0.0
  %3852 = vmatpush1.msra.mxu0 0.0
  %3853 = vmatprep.subr.mxu0 0.0
  %3854 = vmatpush1.msra.mxu0 0.0
  %3855 = vmatprep.subr.mxu0 0.0
  %3856 = vmatpush1.msra.mxu0 0.0
  %3857 = vmatprep.subr.mxu0 0.0
  %3858 = vmatpush1.msra.mxu0 0.0
  %3859 = vmatprep.subr.mxu0 0.0
  %3860 = vmatpush1.msra.mxu0 0.0
  %3861 = vmatprep.subr.mxu0 0.0
  %3862 = vmatpush1.msra.mxu0 0.0
  %3863 = vmatprep.subr.mxu0 0.0
  %3864 = vmatpush1.msra.mxu0 0.0
  %3865 = vmatprep.subr.mxu0 0.0
  %3866 = vmatpush1.msra.mxu0 0.0
  %3867 = vmatprep.subr.mxu0 0.0
  %3868 = vmatpush1.msra.mxu0 0.0
  %3869 = vmatprep.subr.mxu0 0.0
  %3870 = vmatpush1.msra.mxu0 0.0
  %3871 = vmatprep.subr.mxu0 0.0
  %3872 = vmatpush1.msra.mxu0 0.0
  %3873 = vmatprep.subr.mxu0 0.0
  %3874 = vmatpush1.msra.mxu0 0.0
  %3875 = vmatprep.subr.mxu0 0.0
  %3876 = vmatpush1.msra.mxu0 %v3843
  %3877 = vmatprep.subr.mxu0 0.0
  %3878 = vmatpush2.msra.mxu0 0.0
  %3879 = vmatprep.subr.mxu0 0.0
  %3880 = vmatpush2.msra.mxu0 0.0
  %3881 = vmatprep.subr.mxu0 0.0
  %3882 = vmatpush2.msra.mxu0 0.0
  %3883 = vmatprep.subr.mxu0 0.0
  %3884 = vmatpush2.msra.mxu0 0.0
  %3885 = vmatprep.subr.mxu0 0.0
  %3886 = vmatpush2.msra.mxu0 0.0
  %3887 = vmatprep.subr.mxu0 0.0
  %3888 = vmatpush2.msra.mxu0 0.0
  %3889 = vmatprep.subr.mxu0 0.0
  %3890 = vmatpush2.msra.mxu0 0.0
  %3891 = vmatprep.subr.mxu0 0.0
  %3892 = vmatpush2.msra.mxu0 0.0
  %3893 = vmatprep.subr.mxu0 0.0
  %3894 = vmatpush2.msra.mxu0 0.0
  %3895 = vmatprep.subr.mxu0 0.0
  %3896 = vmatpush2.msra.mxu0 0.0
  %3897 = vmatprep.subr.mxu0 0.0
  %3898 = vmatpush2.msra.mxu0 0.0
  %3899 = vmatprep.subr.mxu0 0.0
  %3900 = vmatpush2.msra.mxu0 0.0
  %3901 = vmatprep.subr.mxu0 0.0
  %3902 = vmatpush2.msra.mxu0 0.0
  %3903 = vmatprep.subr.mxu0 0.0
  %3904 = vmatpush2.msra.mxu0 0.0
  %3905 = vmatprep.subr.mxu0 0.0
  %3906 = vmatpush2.msra.mxu0 0.0
  %3907 = vmatprep.subr.mxu0 0.0
  %3908 = vmatpush2.msra.mxu0 0.0
  %3909 = vmatprep.mubr.f32.mxu0 0.0
  %3910 = vmatmul.mubr.f32.gmra.mxu0 %v3835
  %v3911 = vpop.f32.mrf.mxu0
  %v3912 = vadd.f32 0.0, %v3911
  %v3913 = vpop.f32.mrf.mxu0
  %3914 = vmatprep.mubr.f32.mxu0 0.0
  %3915 = vmatmul.mubr.f32.gmra.mxu0 %v3837
  %v3916 = vpop.f32.mrf.mxu0
  %v3917 = vadd.f32 0.0, %v3916
  %v3918 = vpop.f32.mrf.mxu0
  %3919 = vmatprep.mubr.f32.mxu0 0.0
  %3920 = vmatmul.mubr.f32.gmra.mxu0 %v3839
  %v3921 = vpop.f32.mrf.mxu0
  %v3922 = vadd.f32 0.0, %v3921
  %v3923 = vpop.f32.mrf.mxu0
  %3924 = vmatprep.mubr.f32.mxu0 0.0
  %3925 = vmatmul.mubr.f32.gmra.mxu0 %v3841
  %v3926 = vpop.f32.mrf.mxu0
  %v3927 = vadd.f32 0.0, %v3926
  %v3928 = vpop.f32.mrf.mxu0
  %3929 = vdwg.mxu0
  %3930 = vst.msk [vmem:[#allocation10] sm:$0xff] %vm1413, %v3912
  %3931 = vst.msk [vmem:[#allocation10 + $0x8] sm:$0xff] %vm1413, %v3917
  %3932 = vst.msk [vmem:[#allocation10 + $0x10] sm:$0xff] %vm1413, %v3922
  %3933 = vst.msk [vmem:[#allocation10 + $0x18] sm:$0xff] %vm1413, %v3927
  %v3934 = vld [vmem:[#allocation6] sm:$0xff]
  %v3935 = vld [vmem:[#allocation6 + $0x30] sm:$0xff]
  %v3936 = vld [vmem:[#allocation6 + $0x60] sm:$0xff]
  %v3937 = vld [vmem:[#allocation6 + $0x90] sm:$0xff]
  %3942 = vrot.lane.b32.xlu0 %v3934, 109
  %v3943 = vpop.permute.xlu0 %3942
  %3944 = vrot.lane.b32.xlu0 %v3935, 109
  %v3945 = vpop.permute.xlu0 %3944
  %3946 = vrot.lane.b32.xlu0 %v3936, 109
  %v3947 = vpop.permute.xlu0 %3946
  %3948 = vrot.lane.b32.xlu0 %v3937, 109
  %v3949 = vpop.permute.xlu0 %3948
  %v3950 = vsel %vm3834, %v3943, 0
  %v3952 = vsel %vm3834, %v3945, 0
  %v3954 = vsel %vm3834, %v3947, 0
  %v3956 = vsel %vm3834, %v3949, 0
  %3958 = vmatprep.subr.mxu0 0.0
  %3959 = vmatpush1.msra.mxu0 0.0
  %3960 = vmatprep.subr.mxu0 0.0
  %3961 = vmatpush1.msra.mxu0 0.0
  %3962 = vmatprep.subr.mxu0 0.0
  %3963 = vmatpush1.msra.mxu0 0.0
  %3964 = vmatprep.subr.mxu0 0.0
  %3965 = vmatpush1.msra.mxu0 0.0
  %3966 = vmatprep.subr.mxu0 0.0
  %3967 = vmatpush1.msra.mxu0 0.0
  %3968 = vmatprep.subr.mxu0 0.0
  %3969 = vmatpush1.msra.mxu0 0.0
  %3970 = vmatprep.subr.mxu0 0.0
  %3971 = vmatpush1.msra.mxu0 0.0
  %3972 = vmatprep.subr.mxu0 0.0
  %3973 = vmatpush1.msra.mxu0 0.0
  %3974 = vmatprep.subr.mxu0 0.0
  %3975 = vmatpush1.msra.mxu0 0.0
  %3976 = vmatprep.subr.mxu0 0.0
  %3977 = vmatpush1.msra.mxu0 0.0
  %3978 = vmatprep.subr.mxu0 0.0
  %3979 = vmatpush1.msra.mxu0 0.0
  %3980 = vmatprep.subr.mxu0 0.0
  %3981 = vmatpush1.msra.mxu0 0.0
  %3982 = vmatprep.subr.mxu0 0.0
  %3983 = vmatpush1.msra.mxu0 0.0
  %3984 = vmatprep.subr.mxu0 0.0
  %3985 = vmatpush1.msra.mxu0 0.0
  %3986 = vmatprep.subr.mxu0 0.0
  %3987 = vmatpush1.msra.mxu0 0.0
  %3988 = vmatprep.subr.mxu0 0.0
  %3989 = vmatpush1.msra.mxu0 %v3843
  %3990 = vmatprep.subr.mxu0 0.0
  %3991 = vmatpush2.msra.mxu0 0.0
  %3992 = vmatprep.subr.mxu0 0.0
  %3993 = vmatpush2.msra.mxu0 0.0
  %3994 = vmatprep.subr.mxu0 0.0
  %3995 = vmatpush2.msra.mxu0 0.0
  %3996 = vmatprep.subr.mxu0 0.0
  %3997 = vmatpush2.msra.mxu0 0.0
  %3998 = vmatprep.subr.mxu0 0.0
  %3999 = vmatpush2.msra.mxu0 0.0
  %4000 = vmatprep.subr.mxu0 0.0
  %4001 = vmatpush2.msra.mxu0 0.0
  %4002 = vmatprep.subr.mxu0 0.0
  %4003 = vmatpush2.msra.mxu0 0.0
  %4004 = vmatprep.subr.mxu0 0.0
  %4005 = vmatpush2.msra.mxu0 0.0
  %4006 = vmatprep.subr.mxu0 0.0
  %4007 = vmatpush2.msra.mxu0 0.0
  %4008 = vmatprep.subr.mxu0 0.0
  %4009 = vmatpush2.msra.mxu0 0.0
  %4010 = vmatprep.subr.mxu0 0.0
  %4011 = vmatpush2.msra.mxu0 0.0
  %4012 = vmatprep.subr.mxu0 0.0
  %4013 = vmatpush2.msra.mxu0 0.0
  %4014 = vmatprep.subr.mxu0 0.0
  %4015 = vmatpush2.msra.mxu0 0.0
  %4016 = vmatprep.subr.mxu0 0.0
  %4017 = vmatpush2.msra.mxu0 0.0
  %4018 = vmatprep.subr.mxu0 0.0
  %4019 = vmatpush2.msra.mxu0 0.0
  %4020 = vmatprep.subr.mxu0 0.0
  %4021 = vmatpush2.msra.mxu0 0.0
  %4022 = vmatprep.mubr.f32.mxu0 0.0
  %4023 = vmatmul.mubr.f32.gmra.mxu0 %v3950
  %v4024 = vpop.f32.mrf.mxu0
  %v4025 = vadd.f32 0.0, %v4024
  %v4026 = vpop.f32.mrf.mxu0
  %4027 = vmatprep.mubr.f32.mxu0 0.0
  %4028 = vmatmul.mubr.f32.gmra.mxu0 %v3952
  %v4029 = vpop.f32.mrf.mxu0
  %v4030 = vadd.f32 0.0, %v4029
  %v4031 = vpop.f32.mrf.mxu0
  %4032 = vmatprep.mubr.f32.mxu0 0.0
  %4033 = vmatmul.mubr.f32.gmra.mxu0 %v3954
  %v4034 = vpop.f32.mrf.mxu0
  %v4035 = vadd.f32 0.0, %v4034
  %v4036 = vpop.f32.mrf.mxu0
  %4037 = vmatprep.mubr.f32.mxu0 0.0
  %4038 = vmatmul.mubr.f32.gmra.mxu0 %v3956
  %v4039 = vpop.f32.mrf.mxu0
  %v4040 = vadd.f32 0.0, %v4039
  %v4041 = vpop.f32.mrf.mxu0
  %4042 = vdwg.mxu0
  %4047 = vrot.lane.b32.xlu0 %v4025, 2
  %v4048 = vpop.permute.xlu0 %4047
  %4049 = vrot.lane.b32.xlu0 %v4030, 2
  %v4050 = vpop.permute.xlu0 %4049
  %4051 = vrot.lane.b32.xlu0 %v4035, 2
  %v4052 = vpop.permute.xlu0 %4051
  %4053 = vrot.lane.b32.xlu0 %v4040, 2
  %v4054 = vpop.permute.xlu0 %4053
  %vm4059 = vcmask 31760
  %4060 = vst.msk [vmem:[#allocation10] sm:$0xff] %vm4059, %v4048
  %4061 = vst.msk [vmem:[#allocation10 + $0x8] sm:$0xff] %vm4059, %v4050
  %4062 = vst.msk [vmem:[#allocation10 + $0x10] sm:$0xff] %vm4059, %v4052
  %4063 = vst.msk [vmem:[#allocation10 + $0x18] sm:$0xff] %vm4059, %v4054
  %v4064 = vld [vmem:[#allocation6] sm:$0xff]
  %v4065 = vld [vmem:[#allocation6 + $0x30] sm:$0xff]
  %v4066 = vld [vmem:[#allocation6 + $0x60] sm:$0xff]
  %v4067 = vld [vmem:[#allocation6 + $0x90] sm:$0xff]
  %4072 = vrot.lane.b32.xlu0 %v4064, 85
  %v4073 = vpop.permute.xlu0 %4072
  %4074 = vrot.lane.b32.xlu0 %v4065, 85
  %v4075 = vpop.permute.xlu0 %4074
  %4076 = vrot.lane.b32.xlu0 %v4066, 85
  %v4077 = vpop.permute.xlu0 %4076
  %4078 = vrot.lane.b32.xlu0 %v4067, 85
  %v4079 = vpop.permute.xlu0 %4078
  %v4080 = vsel %vm3834, %v4073, 0
  %v4082 = vsel %vm3834, %v4075, 0
  %v4084 = vsel %vm3834, %v4077, 0
  %v4086 = vsel %vm3834, %v4079, 0
  %4088 = vmatprep.subr.mxu0 0.0
  %4089 = vmatpush1.msra.mxu0 0.0
  %4090 = vmatprep.subr.mxu0 0.0
  %4091 = vmatpush1.msra.mxu0 0.0
  %4092 = vmatprep.subr.mxu0 0.0
  %4093 = vmatpush1.msra.mxu0 0.0
  %4094 = vmatprep.subr.mxu0 0.0
  %4095 = vmatpush1.msra.mxu0 0.0
  %4096 = vmatprep.subr.mxu0 0.0
  %4097 = vmatpush1.msra.mxu0 0.0
  %4098 = vmatprep.subr.mxu0 0.0
  %4099 = vmatpush1.msra.mxu0 0.0
  %4100 = vmatprep.subr.mxu0 0.0
  %4101 = vmatpush1.msra.mxu0 0.0
  %4102 = vmatprep.subr.mxu0 0.0
  %4103 = vmatpush1.msra.mxu0 0.0
  %4104 = vmatprep.subr.mxu0 0.0
  %4105 = vmatpush1.msra.mxu0 0.0
  %4106 = vmatprep.subr.mxu0 0.0
  %4107 = vmatpush1.msra.mxu0 0.0
  %4108 = vmatprep.subr.mxu0 0.0
  %4109 = vmatpush1.msra.mxu0 0.0
  %4110 = vmatprep.subr.mxu0 0.0
  %4111 = vmatpush1.msra.mxu0 0.0
  %4112 = vmatprep.subr.mxu0 0.0
  %4113 = vmatpush1.msra.mxu0 0.0
  %4114 = vmatprep.subr.mxu0 0.0
  %4115 = vmatpush1.msra.mxu0 0.0
  %4116 = vmatprep.subr.mxu0 0.0
  %4117 = vmatpush1.msra.mxu0 0.0
  %4118 = vmatprep.subr.mxu0 0.0
  %4119 = vmatpush1.msra.mxu0 %v3843
  %4120 = vmatprep.subr.mxu0 0.0
  %4121 = vmatpush2.msra.mxu0 0.0
  %4122 = vmatprep.subr.mxu0 0.0
  %4123 = vmatpush2.msra.mxu0 0.0
  %4124 = vmatprep.subr.mxu0 0.0
  %4125 = vmatpush2.msra.mxu0 0.0
  %4126 = vmatprep.subr.mxu0 0.0
  %4127 = vmatpush2.msra.mxu0 0.0
  %4128 = vmatprep.subr.mxu0 0.0
  %4129 = vmatpush2.msra.mxu0 0.0
  %4130 = vmatprep.subr.mxu0 0.0
  %4131 = vmatpush2.msra.mxu0 0.0
  %4132 = vmatprep.subr.mxu0 0.0
  %4133 = vmatpush2.msra.mxu0 0.0
  %4134 = vmatprep.subr.mxu0 0.0
  %4135 = vmatpush2.msra.mxu0 0.0
  %4136 = vmatprep.subr.mxu0 0.0
  %4137 = vmatpush2.msra.mxu0 0.0
  %4138 = vmatprep.subr.mxu0 0.0
  %4139 = vmatpush2.msra.mxu0 0.0
  %4140 = vmatprep.subr.mxu0 0.0
  %4141 = vmatpush2.msra.mxu0 0.0
  %4142 = vmatprep.subr.mxu0 0.0
  %4143 = vmatpush2.msra.mxu0 0.0
  %4144 = vmatprep.subr.mxu0 0.0
  %4145 = vmatpush2.msra.mxu0 0.0
  %4146 = vmatprep.subr.mxu0 0.0
  %4147 = vmatpush2.msra.mxu0 0.0
  %4148 = vmatprep.subr.mxu0 0.0
  %4149 = vmatpush2.msra.mxu0 0.0
  %4150 = vmatprep.subr.mxu0 0.0
  %4151 = vmatpush2.msra.mxu0 0.0
  %4152 = vmatprep.mubr.f32.mxu0 0.0
  %4153 = vmatmul.mubr.f32.gmra.mxu0 %v4080
  %v4154 = vpop.f32.mrf.mxu0
  %v4155 = vadd.f32 0.0, %v4154
  %v4156 = vpop.f32.mrf.mxu0
  %4157 = vmatprep.mubr.f32.mxu0 0.0
  %4158 = vmatmul.mubr.f32.gmra.mxu0 %v4082
  %v4159 = vpop.f32.mrf.mxu0
  %v4160 = vadd.f32 0.0, %v4159
  %v4161 = vpop.f32.mrf.mxu0
  %4162 = vmatprep.mubr.f32.mxu0 0.0
  %4163 = vmatmul.mubr.f32.gmra.mxu0 %v4084
  %v4164 = vpop.f32.mrf.mxu0
  %v4165 = vadd.f32 0.0, %v4164
  %v4166 = vpop.f32.mrf.mxu0
  %4167 = vmatprep.mubr.f32.mxu0 0.0
  %4168 = vmatmul.mubr.f32.gmra.mxu0 %v4086
  %v4169 = vpop.f32.mrf.mxu0
  %v4170 = vadd.f32 0.0, %v4169
  %v4171 = vpop.f32.mrf.mxu0
  %4172 = vdwg.mxu0
  %4177 = vrot.lane.b32.xlu0 %v4155, 4
  %v4178 = vpop.permute.xlu0 %4177
  %4179 = vrot.lane.b32.xlu0 %v4160, 4
  %v4180 = vpop.permute.xlu0 %4179
  %4181 = vrot.lane.b32.xlu0 %v4165, 4
  %v4182 = vpop.permute.xlu0 %4181
  %4183 = vrot.lane.b32.xlu0 %v4170, 4
  %v4184 = vpop.permute.xlu0 %4183
  %vm4189 = vcmask 48160
  %4190 = vst.msk [vmem:[#allocation10] sm:$0xff] %vm4189, %v4178
  %4191 = vst.msk [vmem:[#allocation10 + $0x8] sm:$0xff] %vm4189, %v4180
  %4192 = vst.msk [vmem:[#allocation10 + $0x10] sm:$0xff] %vm4189, %v4182
  %4193 = vst.msk [vmem:[#allocation10 + $0x18] sm:$0xff] %vm4189, %v4184
  %v4194 = vld [vmem:[#allocation6] sm:$0xff]
  %v4195 = vld [vmem:[#allocation6 + $0x30] sm:$0xff]
  %v4196 = vld [vmem:[#allocation6 + $0x60] sm:$0xff]
  %v4197 = vld [vmem:[#allocation6 + $0x90] sm:$0xff]
  %4202 = vrot.lane.b32.xlu0 %v4194, 73
  %v4203 = vpop.permute.xlu0 %4202
  %4204 = vrot.lane.b32.xlu0 %v4195, 73
  %v4205 = vpop.permute.xlu0 %4204
  %4206 = vrot.lane.b32.xlu0 %v4196, 73
  %v4207 = vpop.permute.xlu0 %4206
  %4208 = vrot.lane.b32.xlu0 %v4197, 73
  %v4209 = vpop.permute.xlu0 %4208
  %v4210 = vsel %vm3834, %v4203, 0
  %v4212 = vsel %vm3834, %v4205, 0
  %v4214 = vsel %vm3834, %v4207, 0
  %v4216 = vsel %vm3834, %v4209, 0
  %4218 = vmatprep.subr.mxu0 0.0
  %4219 = vmatpush1.msra.mxu0 0.0
  %4220 = vmatprep.subr.mxu0 0.0
  %4221 = vmatpush1.msra.mxu0 0.0
  %4222 = vmatprep.subr.mxu0 0.0
  %4223 = vmatpush1.msra.mxu0 0.0
  %4224 = vmatprep.subr.mxu0 0.0
  %4225 = vmatpush1.msra.mxu0 0.0
  %4226 = vmatprep.subr.mxu0 0.0
  %4227 = vmatpush1.msra.mxu0 0.0
  %4228 = vmatprep.subr.mxu0 0.0
  %4229 = vmatpush1.msra.mxu0 0.0
  %4230 = vmatprep.subr.mxu0 0.0
  %4231 = vmatpush1.msra.mxu0 0.0
  %4232 = vmatprep.subr.mxu0 0.0
  %4233 = vmatpush1.msra.mxu0 0.0
  %4234 = vmatprep.subr.mxu0 0.0
  %4235 = vmatpush1.msra.mxu0 0.0
  %4236 = vmatprep.subr.mxu0 0.0
  %4237 = vmatpush1.msra.mxu0 0.0
  %4238 = vmatprep.subr.mxu0 0.0
  %4239 = vmatpush1.msra.mxu0 0.0
  %4240 = vmatprep.subr.mxu0 0.0
  %4241 = vmatpush1.msra.mxu0 0.0
  %4242 = vmatprep.subr.mxu0 0.0
  %4243 = vmatpush1.msra.mxu0 0.0
  %4244 = vmatprep.subr.mxu0 0.0
  %4245 = vmatpush1.msra.mxu0 0.0
  %4246 = vmatprep.subr.mxu0 0.0
  %4247 = vmatpush1.msra.mxu0 0.0
  %4248 = vmatprep.subr.mxu0 0.0
  %4249 = vmatpush1.msra.mxu0 %v3843
  %4250 = vmatprep.subr.mxu0 0.0
  %4251 = vmatpush2.msra.mxu0 0.0
  %4252 = vmatprep.subr.mxu0 0.0
  %4253 = vmatpush2.msra.mxu0 0.0
  %4254 = vmatprep.subr.mxu0 0.0
  %4255 = vmatpush2.msra.mxu0 0.0
  %4256 = vmatprep.subr.mxu0 0.0
  %4257 = vmatpush2.msra.mxu0 0.0
  %4258 = vmatprep.subr.mxu0 0.0
  %4259 = vmatpush2.msra.mxu0 0.0
  %4260 = vmatprep.subr.mxu0 0.0
  %4261 = vmatpush2.msra.mxu0 0.0
  %4262 = vmatprep.subr.mxu0 0.0
  %4263 = vmatpush2.msra.mxu0 0.0
  %4264 = vmatprep.subr.mxu0 0.0
  %4265 = vmatpush2.msra.mxu0 0.0
  %4266 = vmatprep.subr.mxu0 0.0
  %4267 = vmatpush2.msra.mxu0 0.0
  %4268 = vmatprep.subr.mxu0 0.0
  %4269 = vmatpush2.msra.mxu0 0.0
  %4270 = vmatprep.subr.mxu0 0.0
  %4271 = vmatpush2.msra.mxu0 0.0
  %4272 = vmatprep.subr.mxu0 0.0
  %4273 = vmatpush2.msra.mxu0 0.0
  %4274 = vmatprep.subr.mxu0 0.0
  %4275 = vmatpush2.msra.mxu0 0.0
  %4276 = vmatprep.subr.mxu0 0.0
  %4277 = vmatpush2.msra.mxu0 0.0
  %4278 = vmatprep.subr.mxu0 0.0
  %4279 = vmatpush2.msra.mxu0 0.0
  %4280 = vmatprep.subr.mxu0 0.0
  %4281 = vmatpush2.msra.mxu0 0.0
  %4282 = vmatprep.mubr.f32.mxu0 0.0
  %4283 = vmatmul.mubr.f32.gmra.mxu0 %v4210
  %v4284 = vpop.f32.mrf.mxu0
  %v4285 = vadd.f32 0.0, %v4284
  %v4286 = vpop.f32.mrf.mxu0
  %4287 = vmatprep.mubr.f32.mxu0 0.0
  %4288 = vmatmul.mubr.f32.gmra.mxu0 %v4212
  %v4289 = vpop.f32.mrf.mxu0
  %v4290 = vadd.f32 0.0, %v4289
  %v4291 = vpop.f32.mrf.mxu0
  %4292 = vmatprep.mubr.f32.mxu0 0.0
  %4293 = vmatmul.mubr.f32.gmra.mxu0 %v4214
  %v4294 = vpop.f32.mrf.mxu0
  %v4295 = vadd.f32 0.0, %v4294
  %v4296 = vpop.f32.mrf.mxu0
  %4297 = vmatprep.mubr.f32.mxu0 0.0
  %4298 = vmatmul.mubr.f32.gmra.mxu0 %v4216
  %v4299 = vpop.f32.mrf.mxu0
  %v4300 = vadd.f32 0.0, %v4299
  %v4301 = vpop.f32.mrf.mxu0
  %4302 = vdwg.mxu0
  %4307 = vrot.lane.b32.xlu0 %v4285, 6
  %v4308 = vpop.permute.xlu0 %4307
  %4309 = vrot.lane.b32.xlu0 %v4290, 6
  %v4310 = vpop.permute.xlu0 %4309
  %4311 = vrot.lane.b32.xlu0 %v4295, 6
  %v4312 = vpop.permute.xlu0 %4311
  %4313 = vrot.lane.b32.xlu0 %v4300, 6
  %v4314 = vpop.permute.xlu0 %4313
  %vm4319 = vcmask 64560
  %4320 = vst.msk [vmem:[#allocation10] sm:$0xff] %vm4319, %v4308
  %4321 = vst.msk [vmem:[#allocation10 + $0x8] sm:$0xff] %vm4319, %v4310
  %4322 = vst.msk [vmem:[#allocation10 + $0x10] sm:$0xff] %vm4319, %v4312
  %4323 = vst.msk [vmem:[#allocation10 + $0x18] sm:$0xff] %vm4319, %v4314
  %v4324 = vld [vmem:[#allocation10] sm:$0xff]
  %v4325 = vld [vmem:[#allocation10 + $0x8] sm:$0xff]
  %v4326 = vld [vmem:[#allocation10 + $0x10] sm:$0xff]
  %v4327 = vld [vmem:[#allocation10 + $0x18] sm:$0xff]
  %v4328 = vld [vmem:[%s2] sm:$0xff]
  %4330 = vrot.lane.b32.xlu0 %v4328, 40
  %v4331 = vpop.permute.xlu0 %4330
  %v4334 = vsel %vm574, %v4324, 0
  %v4337 = vsel %vm574, %v4325, 0
  %v4340 = vsel %vm574, %v4326, 0
  %v4343 = vsel %vm574, %v4327, 0
  %4345 = vmatprep.subr.mxu0 0.0
  %4346 = vmatpush1.msra.mxu0 0.0
  %4347 = vmatprep.subr.mxu0 0.0
  %4348 = vmatpush1.msra.mxu0 0.0
  %4349 = vmatprep.subr.mxu0 0.0
  %4350 = vmatpush1.msra.mxu0 0.0
  %4351 = vmatprep.subr.mxu0 0.0
  %4352 = vmatpush1.msra.mxu0 0.0
  %4353 = vmatprep.subr.mxu0 0.0
  %4354 = vmatpush1.msra.mxu0 0.0
  %4355 = vmatprep.subr.mxu0 0.0
  %4356 = vmatpush1.msra.mxu0 0.0
  %4357 = vmatprep.subr.mxu0 0.0
  %4358 = vmatpush1.msra.mxu0 0.0
  %4359 = vmatprep.subr.mxu0 0.0
  %4360 = vmatpush1.msra.mxu0 0.0
  %4361 = vmatprep.subr.mxu0 0.0
  %4362 = vmatpush1.msra.mxu0 0.0
  %4363 = vmatprep.subr.mxu0 0.0
  %4364 = vmatpush1.msra.mxu0 0.0
  %4365 = vmatprep.subr.mxu0 0.0
  %4366 = vmatpush1.msra.mxu0 0.0
  %4367 = vmatprep.subr.mxu0 0.0
  %4368 = vmatpush1.msra.mxu0 0.0
  %4369 = vmatprep.subr.mxu0 0.0
  %4370 = vmatpush1.msra.mxu0 0.0
  %4371 = vmatprep.subr.mxu0 0.0
  %4372 = vmatpush1.msra.mxu0 0.0
  %4373 = vmatprep.subr.mxu0 0.0
  %4374 = vmatpush1.msra.mxu0 0.0
  %4375 = vmatprep.subr.mxu0 0.0
  %4376 = vmatpush1.msra.mxu0 %v4331
  %4377 = vmatprep.subr.mxu0 0.0
  %4378 = vmatpush2.msra.mxu0 0.0
  %4379 = vmatprep.subr.mxu0 0.0
  %4380 = vmatpush2.msra.mxu0 0.0
  %4381 = vmatprep.subr.mxu0 0.0
  %4382 = vmatpush2.msra.mxu0 0.0
  %4383 = vmatprep.subr.mxu0 0.0
  %4384 = vmatpush2.msra.mxu0 0.0
  %4385 = vmatprep.subr.mxu0 0.0
  %4386 = vmatpush2.msra.mxu0 0.0
  %4387 = vmatprep.subr.mxu0 0.0
  %4388 = vmatpush2.msra.mxu0 0.0
  %4389 = vmatprep.subr.mxu0 0.0
  %4390 = vmatpush2.msra.mxu0 0.0
  %4391 = vmatprep.subr.mxu0 0.0
  %4392 = vmatpush2.msra.mxu0 0.0
  %4393 = vmatprep.subr.mxu0 0.0
  %4394 = vmatpush2.msra.mxu0 0.0
  %4395 = vmatprep.subr.mxu0 0.0
  %4396 = vmatpush2.msra.mxu0 0.0
  %4397 = vmatprep.subr.mxu0 0.0
  %4398 = vmatpush2.msra.mxu0 0.0
  %4399 = vmatprep.subr.mxu0 0.0
  %4400 = vmatpush2.msra.mxu0 0.0
  %4401 = vmatprep.subr.mxu0 0.0
  %4402 = vmatpush2.msra.mxu0 0.0
  %4403 = vmatprep.subr.mxu0 0.0
  %4404 = vmatpush2.msra.mxu0 0.0
  %4405 = vmatprep.subr.mxu0 0.0
  %4406 = vmatpush2.msra.mxu0 0.0
  %4407 = vmatprep.subr.mxu0 0.0
  %4408 = vmatpush2.msra.mxu0 0.0
  %4409 = vmatprep.mubr.f32.mxu0 0.0
  %4410 = vmatmul.mubr.f32.gmra.mxu0 %v4334
  %v4411 = vpop.f32.mrf.mxu0
  %v4412 = vadd.f32 0.0, %v4411
  %v4413 = vpop.f32.mrf.mxu0
  %4414 = vmatprep.mubr.f32.mxu0 0.0
  %4415 = vmatmul.mubr.f32.gmra.mxu0 %v4337
  %v4416 = vpop.f32.mrf.mxu0
  %v4417 = vadd.f32 0.0, %v4416
  %v4418 = vpop.f32.mrf.mxu0
  %4419 = vmatprep.mubr.f32.mxu0 0.0
  %4420 = vmatmul.mubr.f32.gmra.mxu0 %v4340
  %v4421 = vpop.f32.mrf.mxu0
  %v4422 = vadd.f32 0.0, %v4421
  %v4423 = vpop.f32.mrf.mxu0
  %4424 = vmatprep.mubr.f32.mxu0 0.0
  %4425 = vmatmul.mubr.f32.gmra.mxu0 %v4343
  %v4426 = vpop.f32.mrf.mxu0
  %v4427 = vadd.f32 0.0, %v4426
  %v4428 = vpop.f32.mrf.mxu0
  %4429 = vdwg.mxu0
  %v4430 = vld [vmem:[%s1 + $0x10] sm:$0xf]
  %v4431 = vld [vmem:[%s1 + $0x28] sm:$0xf]
  %v4432 = vld [vmem:[%s1 + $0x40] sm:$0xf]
  %v4433 = vld [vmem:[%s1 + $0x58] sm:$0xf]
  %v4434 = vpack.c.bf16 %v4417, %v4412
  %v4435 = vpack.c.bf16 %v4427, %v4422
  %4436 = vrot.lane.b32.xlu0 %v4328, 38
  %v4437 = vpop.permute.xlu0 %4436
  %4439 = vmatprep.subr.mxu0 0.0
  %4440 = vmatpush1.msra.mxu0 0.0
  %4441 = vmatprep.subr.mxu0 0.0
  %4442 = vmatpush1.msra.mxu0 0.0
  %4443 = vmatprep.subr.mxu0 0.0
  %4444 = vmatpush1.msra.mxu0 0.0
  %4445 = vmatprep.subr.mxu0 0.0
  %4446 = vmatpush1.msra.mxu0 0.0
  %4447 = vmatprep.subr.mxu0 0.0
  %4448 = vmatpush1.msra.mxu0 0.0
  %4449 = vmatprep.subr.mxu0 0.0
  %4450 = vmatpush1.msra.mxu0 0.0
  %4451 = vmatprep.subr.mxu0 0.0
  %4452 = vmatpush1.msra.mxu0 0.0
  %4453 = vmatprep.subr.mxu0 0.0
  %4454 = vmatpush1.msra.mxu0 0.0
  %4455 = vmatprep.subr.mxu0 0.0
  %4456 = vmatpush1.msra.mxu0 0.0
  %4457 = vmatprep.subr.mxu0 0.0
  %4458 = vmatpush1.msra.mxu0 0.0
  %4459 = vmatprep.subr.mxu0 0.0
  %4460 = vmatpush1.msra.mxu0 0.0
  %4461 = vmatprep.subr.mxu0 0.0
  %4462 = vmatpush1.msra.mxu0 0.0
  %4463 = vmatprep.subr.mxu0 0.0
  %4464 = vmatpush1.msra.mxu0 0.0
  %4465 = vmatprep.subr.mxu0 0.0
  %4466 = vmatpush1.msra.mxu0 0.0
  %4467 = vmatprep.subr.mxu0 0.0
  %4468 = vmatpush1.msra.mxu0 0.0
  %4469 = vmatprep.subr.mxu0 0.0
  %4470 = vmatpush1.msra.mxu0 %v4437
  %4471 = vmatprep.subr.mxu0 0.0
  %4472 = vmatpush2.msra.mxu0 0.0
  %4473 = vmatprep.subr.mxu0 0.0
  %4474 = vmatpush2.msra.mxu0 0.0
  %4475 = vmatprep.subr.mxu0 0.0
  %4476 = vmatpush2.msra.mxu0 0.0
  %4477 = vmatprep.subr.mxu0 0.0
  %4478 = vmatpush2.msra.mxu0 0.0
  %4479 = vmatprep.subr.mxu0 0.0
  %4480 = vmatpush2.msra.mxu0 0.0
  %4481 = vmatprep.subr.mxu0 0.0
  %4482 = vmatpush2.msra.mxu0 0.0
  %4483 = vmatprep.subr.mxu0 0.0
  %4484 = vmatpush2.msra.mxu0 0.0
  %4485 = vmatprep.subr.mxu0 0.0
  %4486 = vmatpush2.msra.mxu0 0.0
  %4487 = vmatprep.subr.mxu0 0.0
  %4488 = vmatpush2.msra.mxu0 0.0
  %4489 = vmatprep.subr.mxu0 0.0
  %4490 = vmatpush2.msra.mxu0 0.0
  %4491 = vmatprep.subr.mxu0 0.0
  %4492 = vmatpush2.msra.mxu0 0.0
  %4493 = vmatprep.subr.mxu0 0.0
  %4494 = vmatpush2.msra.mxu0 0.0
  %4495 = vmatprep.subr.mxu0 0.0
  %4496 = vmatpush2.msra.mxu0 0.0
  %4497 = vmatprep.subr.mxu0 0.0
  %4498 = vmatpush2.msra.mxu0 0.0
  %4499 = vmatprep.subr.mxu0 0.0
  %4500 = vmatpush2.msra.mxu0 0.0
  %4501 = vmatprep.subr.mxu0 0.0
  %4502 = vmatpush2.msra.mxu0 0.0
  %4503 = vmatprep.mubr.f32.mxu0 0.0
  %4504 = vmatmul.mubr.f32.gmra.mxu0 %v4334
  %v4505 = vpop.f32.mrf.mxu0
  %v4506 = vadd.f32 0.0, %v4505
  %v4507 = vpop.f32.mrf.mxu0
  %4508 = vmatprep.mubr.f32.mxu0 0.0
  %4509 = vmatmul.mubr.f32.gmra.mxu0 %v4337
  %v4510 = vpop.f32.mrf.mxu0
  %v4511 = vadd.f32 0.0, %v4510
  %v4512 = vpop.f32.mrf.mxu0
  %4513 = vmatprep.mubr.f32.mxu0 0.0
  %4514 = vmatmul.mubr.f32.gmra.mxu0 %v4340
  %v4515 = vpop.f32.mrf.mxu0
  %v4516 = vadd.f32 0.0, %v4515
  %v4517 = vpop.f32.mrf.mxu0
  %4518 = vmatprep.mubr.f32.mxu0 0.0
  %4519 = vmatmul.mubr.f32.gmra.mxu0 %v4343
  %v4520 = vpop.f32.mrf.mxu0
  %v4521 = vadd.f32 0.0, %v4520
  %v4522 = vpop.f32.mrf.mxu0
  %4523 = vdwg.mxu0
  %v4524 = vpack.c.bf16 %v4511, %v4506
  %v4525 = vpack.c.bf16 %v4521, %v4516
  %v4530 = vunpack.c.l.b16 %v4430
  %v4531 = vunpack.c.l.b16 %v4431
  %v4532 = vunpack.c.l.b16 %v4432
  %v4533 = vunpack.c.l.b16 %v4433
  %v4534 = vpack.c.b16 %v4531, %v4530
  %v4535 = vpack.c.b16 %v4533, %v4532
  %4536 = vrot.lane.b32.xlu0 %v4534, 64
  %v4537 = vpop.permute.xlu0 %4536
  %4538 = vrot.lane.b32.xlu0 %v4535, 64
  %v4539 = vpop.permute.xlu0 %4538
  %v4541 = vsel %vm3653, %v4537, 0
  %v4544 = vsel %vm3653, %v4539, 0
  %4546 = vmatprep.subr.bf16.mxu0 0
  %4547 = vmatpush1.bf16.msra.mxu0 0
  %4548 = vmatprep.subr.bf16.mxu0 0
  %4549 = vmatpush1.bf16.msra.mxu0 0
  %4550 = vmatprep.subr.bf16.mxu0 0
  %4551 = vmatpush1.bf16.msra.mxu0 0
  %4552 = vmatprep.subr.bf16.mxu0 0
  %4553 = vmatpush1.bf16.msra.mxu0 0
  %4554 = vmatprep.subr.bf16.mxu0 0
  %4555 = vmatpush1.bf16.msra.mxu0 0
  %4556 = vmatprep.subr.bf16.mxu0 0
  %4557 = vmatpush1.bf16.msra.mxu0 0
  %4558 = vmatprep.subr.bf16.mxu0 0
  %4559 = vmatpush1.bf16.msra.mxu0 %v4525
  %4560 = vmatprep.subr.bf16.mxu0 0
  %4561 = vmatpush1.bf16.msra.mxu0 %v4524
  %4562 = vmatprep.subr.bf16.mxu0 0
  %4563 = vmatpush2.bf16.msra.mxu0 0
  %4564 = vmatprep.subr.bf16.mxu0 0
  %4565 = vmatpush2.bf16.msra.mxu0 0
  %4566 = vmatprep.subr.bf16.mxu0 0
  %4567 = vmatpush2.bf16.msra.mxu0 0
  %4568 = vmatprep.subr.bf16.mxu0 0
  %4569 = vmatpush2.bf16.msra.mxu0 0
  %4570 = vmatprep.subr.bf16.mxu0 0
  %4571 = vmatpush2.bf16.msra.mxu0 0
  %4572 = vmatprep.subr.bf16.mxu0 0
  %4573 = vmatpush2.bf16.msra.mxu0 0
  %4574 = vmatprep.subr.bf16.mxu0 0
  %4575 = vmatpush2.bf16.msra.mxu0 0
  %4576 = vmatprep.subr.bf16.mxu0 0
  %4577 = vmatpush2.bf16.msra.mxu0 0
  %4578 = vmatprep.mubr.bf16.mxu0 0
  %4579 = vmatmul.mubr.bf16.gmra.mxu0 %v4541
  %v4580 = vpop.f32.mrf.mxu0
  %v4581 = vadd.f32 0.0, %v4580
  %v4582 = vpop.f32.mrf.mxu0
  %v4583 = vpop.f32.mrf.mxu0
  %v4584 = vadd.f32 0.0, %v4583
  %v4585 = vpop.f32.mrf.mxu0
  %4586 = vmatprep.mubr.bf16.mxu0 0
  %4587 = vmatmul.mubr.bf16.gmra.mxu0 %v4544
  %v4588 = vpop.f32.mrf.mxu0
  %v4589 = vadd.f32 0.0, %v4588
  %v4590 = vpop.f32.mrf.mxu0
  %v4591 = vpop.f32.mrf.mxu0
  %v4592 = vadd.f32 0.0, %v4591
  %v4593 = vpop.f32.mrf.mxu0
  %4594 = vdwg.mxu0
  %4595 = vrot.lane.b32.xlu0 %v4534, 96
  %v4596 = vpop.permute.xlu0 %4595
  %4597 = vrot.lane.b32.xlu0 %v4535, 96
  %v4598 = vpop.permute.xlu0 %4597
  %v4600 = vsel %vm3653, %v4596, 0
  %v4603 = vsel %vm3653, %v4598, 0
  %4605 = vmatprep.subr.bf16.mxu0 0
  %4606 = vmatpush1.bf16.msra.mxu0 0
  %4607 = vmatprep.subr.bf16.mxu0 0
  %4608 = vmatpush1.bf16.msra.mxu0 0
  %4609 = vmatprep.subr.bf16.mxu0 0
  %4610 = vmatpush1.bf16.msra.mxu0 0
  %4611 = vmatprep.subr.bf16.mxu0 0
  %4612 = vmatpush1.bf16.msra.mxu0 0
  %4613 = vmatprep.subr.bf16.mxu0 0
  %4614 = vmatpush1.bf16.msra.mxu0 0
  %4615 = vmatprep.subr.bf16.mxu0 0
  %4616 = vmatpush1.bf16.msra.mxu0 0
  %4617 = vmatprep.subr.bf16.mxu0 0
  %4618 = vmatpush1.bf16.msra.mxu0 %v4435
  %4619 = vmatprep.subr.bf16.mxu0 0
  %4620 = vmatpush1.bf16.msra.mxu0 %v4434
  %4621 = vmatprep.subr.bf16.mxu0 0
  %4622 = vmatpush2.bf16.msra.mxu0 0
  %4623 = vmatprep.subr.bf16.mxu0 0
  %4624 = vmatpush2.bf16.msra.mxu0 0
  %4625 = vmatprep.subr.bf16.mxu0 0
  %4626 = vmatpush2.bf16.msra.mxu0 0
  %4627 = vmatprep.subr.bf16.mxu0 0
  %4628 = vmatpush2.bf16.msra.mxu0 0
  %4629 = vmatprep.subr.bf16.mxu0 0
  %4630 = vmatpush2.bf16.msra.mxu0 0
  %4631 = vmatprep.subr.bf16.mxu0 0
  %4632 = vmatpush2.bf16.msra.mxu0 0
  %4633 = vmatprep.subr.bf16.mxu0 0
  %4634 = vmatpush2.bf16.msra.mxu0 0
  %4635 = vmatprep.subr.bf16.mxu0 0
  %4636 = vmatpush2.bf16.msra.mxu0 0
  %4637 = vmatprep.mubr.bf16.mxu0 0
  %4638 = vmatmul.mubr.bf16.gmra.mxu0 %v4600
  %v4639 = vpop.f32.mrf.mxu0
  %v4640 = vadd.f32 %v4581, %v4639
  %v4641 = vpop.f32.mrf.mxu0
  %v4642 = vpop.f32.mrf.mxu0
  %v4643 = vadd.f32 %v4584, %v4642
  %v4644 = vpop.f32.mrf.mxu0
  %4645 = vmatprep.mubr.bf16.mxu0 0
  %4646 = vmatmul.mubr.bf16.gmra.mxu0 %v4603
  %v4647 = vpop.f32.mrf.mxu0
  %v4648 = vadd.f32 %v4589, %v4647
  %v4649 = vpop.f32.mrf.mxu0
  %v4650 = vpop.f32.mrf.mxu0
  %v4651 = vadd.f32 %v4592, %v4650
  %v4652 = vpop.f32.mrf.mxu0
  %4653 = vdwg.mxu0
  %4654 = vrot.lane.b32.xlu0 %v4328, 36
  %v4655 = vpop.permute.xlu0 %4654
  %4657 = vmatprep.subr.mxu0 0.0
  %4658 = vmatpush1.msra.mxu0 0.0
  %4659 = vmatprep.subr.mxu0 0.0
  %4660 = vmatpush1.msra.mxu0 0.0
  %4661 = vmatprep.subr.mxu0 0.0
  %4662 = vmatpush1.msra.mxu0 0.0
  %4663 = vmatprep.subr.mxu0 0.0
  %4664 = vmatpush1.msra.mxu0 0.0
  %4665 = vmatprep.subr.mxu0 0.0
  %4666 = vmatpush1.msra.mxu0 0.0
  %4667 = vmatprep.subr.mxu0 0.0
  %4668 = vmatpush1.msra.mxu0 0.0
  %4669 = vmatprep.subr.mxu0 0.0
  %4670 = vmatpush1.msra.mxu0 0.0
  %4671 = vmatprep.subr.mxu0 0.0
  %4672 = vmatpush1.msra.mxu0 0.0
  %4673 = vmatprep.subr.mxu0 0.0
  %4674 = vmatpush1.msra.mxu0 0.0
  %4675 = vmatprep.subr.mxu0 0.0
  %4676 = vmatpush1.msra.mxu0 0.0
  %4677 = vmatprep.subr.mxu0 0.0
  %4678 = vmatpush1.msra.mxu0 0.0
  %4679 = vmatprep.subr.mxu0 0.0
  %4680 = vmatpush1.msra.mxu0 0.0
  %4681 = vmatprep.subr.mxu0 0.0
  %4682 = vmatpush1.msra.mxu0 0.0
  %4683 = vmatprep.subr.mxu0 0.0
  %4684 = vmatpush1.msra.mxu0 0.0
  %4685 = vmatprep.subr.mxu0 0.0
  %4686 = vmatpush1.msra.mxu0 0.0
  %4687 = vmatprep.subr.mxu0 0.0
  %4688 = vmatpush1.msra.mxu0 %v4655
  %4689 = vmatprep.subr.mxu0 0.0
  %4690 = vmatpush2.msra.mxu0 0.0
  %4691 = vmatprep.subr.mxu0 0.0
  %4692 = vmatpush2.msra.mxu0 0.0
  %4693 = vmatprep.subr.mxu0 0.0
  %4694 = vmatpush2.msra.mxu0 0.0
  %4695 = vmatprep.subr.mxu0 0.0
  %4696 = vmatpush2.msra.mxu0 0.0
  %4697 = vmatprep.subr.mxu0 0.0
  %4698 = vmatpush2.msra.mxu0 0.0
  %4699 = vmatprep.subr.mxu0 0.0
  %4700 = vmatpush2.msra.mxu0 0.0
  %4701 = vmatprep.subr.mxu0 0.0
  %4702 = vmatpush2.msra.mxu0 0.0
  %4703 = vmatprep.subr.mxu0 0.0
  %4704 = vmatpush2.msra.mxu0 0.0
  %4705 = vmatprep.subr.mxu0 0.0
  %4706 = vmatpush2.msra.mxu0 0.0
  %4707 = vmatprep.subr.mxu0 0.0
  %4708 = vmatpush2.msra.mxu0 0.0
  %4709 = vmatprep.subr.mxu0 0.0
  %4710 = vmatpush2.msra.mxu0 0.0
  %4711 = vmatprep.subr.mxu0 0.0
  %4712 = vmatpush2.msra.mxu0 0.0
  %4713 = vmatprep.subr.mxu0 0.0
  %4714 = vmatpush2.msra.mxu0 0.0
  %4715 = vmatprep.subr.mxu0 0.0
  %4716 = vmatpush2.msra.mxu0 0.0
  %4717 = vmatprep.subr.mxu0 0.0
  %4718 = vmatpush2.msra.mxu0 0.0
  %4719 = vmatprep.subr.mxu0 0.0
  %4720 = vmatpush2.msra.mxu0 0.0
  %4721 = vmatprep.mubr.f32.mxu0 0.0
  %4722 = vmatmul.mubr.f32.gmra.mxu0 %v4334
  %v4723 = vpop.f32.mrf.mxu0
  %v4724 = vadd.f32 0.0, %v4723
  %v4725 = vpop.f32.mrf.mxu0
  %4726 = vmatprep.mubr.f32.mxu0 0.0
  %4727 = vmatmul.mubr.f32.gmra.mxu0 %v4337
  %v4728 = vpop.f32.mrf.mxu0
  %v4729 = vadd.f32 0.0, %v4728
  %v4730 = vpop.f32.mrf.mxu0
  %4731 = vmatprep.mubr.f32.mxu0 0.0
  %4732 = vmatmul.mubr.f32.gmra.mxu0 %v4340
  %v4733 = vpop.f32.mrf.mxu0
  %v4734 = vadd.f32 0.0, %v4733
  %v4735 = vpop.f32.mrf.mxu0
  %4736 = vmatprep.mubr.f32.mxu0 0.0
  %4737 = vmatmul.mubr.f32.gmra.mxu0 %v4343
  %v4738 = vpop.f32.mrf.mxu0
  %v4739 = vadd.f32 0.0, %v4738
  %v4740 = vpop.f32.mrf.mxu0
  %4741 = vdwg.mxu0
  %v4742 = vpack.c.bf16 %v4729, %v4724
  %v4743 = vpack.c.bf16 %v4739, %v4734
  %4744 = vrot.lane.b32.xlu0 %v4534, 32
  %v4745 = vpop.permute.xlu0 %4744
  %4746 = vrot.lane.b32.xlu0 %v4535, 32
  %v4747 = vpop.permute.xlu0 %4746
  %v4749 = vsel %vm3653, %v4745, 0
  %v4752 = vsel %vm3653, %v4747, 0
  %4754 = vmatprep.subr.bf16.mxu0 0
  %4755 = vmatpush1.bf16.msra.mxu0 0
  %4756 = vmatprep.subr.bf16.mxu0 0
  %4757 = vmatpush1.bf16.msra.mxu0 0
  %4758 = vmatprep.subr.bf16.mxu0 0
  %4759 = vmatpush1.bf16.msra.mxu0 0
  %4760 = vmatprep.subr.bf16.mxu0 0
  %4761 = vmatpush1.bf16.msra.mxu0 0
  %4762 = vmatprep.subr.bf16.mxu0 0
  %4763 = vmatpush1.bf16.msra.mxu0 0
  %4764 = vmatprep.subr.bf16.mxu0 0
  %4765 = vmatpush1.bf16.msra.mxu0 0
  %4766 = vmatprep.subr.bf16.mxu0 0
  %4767 = vmatpush1.bf16.msra.mxu0 %v4743
  %4768 = vmatprep.subr.bf16.mxu0 0
  %4769 = vmatpush1.bf16.msra.mxu0 %v4742
  %4770 = vmatprep.subr.bf16.mxu0 0
  %4771 = vmatpush2.bf16.msra.mxu0 0
  %4772 = vmatprep.subr.bf16.mxu0 0
  %4773 = vmatpush2.bf16.msra.mxu0 0
  %4774 = vmatprep.subr.bf16.mxu0 0
  %4775 = vmatpush2.bf16.msra.mxu0 0
  %4776 = vmatprep.subr.bf16.mxu0 0
  %4777 = vmatpush2.bf16.msra.mxu0 0
  %4778 = vmatprep.subr.bf16.mxu0 0
  %4779 = vmatpush2.bf16.msra.mxu0 0
  %4780 = vmatprep.subr.bf16.mxu0 0
  %4781 = vmatpush2.bf16.msra.mxu0 0
  %4782 = vmatprep.subr.bf16.mxu0 0
  %4783 = vmatpush2.bf16.msra.mxu0 0
  %4784 = vmatprep.subr.bf16.mxu0 0
  %4785 = vmatpush2.bf16.msra.mxu0 0
  %4786 = vmatprep.mubr.bf16.mxu0 0
  %4787 = vmatmul.mubr.bf16.gmra.mxu0 %v4749
  %v4788 = vpop.f32.mrf.mxu0
  %v4789 = vadd.f32 0.0, %v4788
  %v4790 = vpop.f32.mrf.mxu0
  %v4791 = vpop.f32.mrf.mxu0
  %v4792 = vadd.f32 0.0, %v4791
  %v4793 = vpop.f32.mrf.mxu0
  %4794 = vmatprep.mubr.bf16.mxu0 0
  %4795 = vmatmul.mubr.bf16.gmra.mxu0 %v4752
  %v4796 = vpop.f32.mrf.mxu0
  %v4797 = vadd.f32 0.0, %v4796
  %v4798 = vpop.f32.mrf.mxu0
  %v4799 = vpop.f32.mrf.mxu0
  %v4800 = vadd.f32 0.0, %v4799
  %v4801 = vpop.f32.mrf.mxu0
  %4802 = vdwg.mxu0
  %v4803 = vadd.f32 %v4640, %v4789
  %v4804 = vadd.f32 %v4643, %v4792
  %v4805 = vadd.f32 %v4648, %v4797
  %v4806 = vadd.f32 %v4651, %v4800
  %4807 = vrot.lane.b32.xlu0 %v4328, 34
  %v4808 = vpop.permute.xlu0 %4807
  %4810 = vmatprep.subr.mxu0 0.0
  %4811 = vmatpush1.msra.mxu0 0.0
  %4812 = vmatprep.subr.mxu0 0.0
  %4813 = vmatpush1.msra.mxu0 0.0
  %4814 = vmatprep.subr.mxu0 0.0
  %4815 = vmatpush1.msra.mxu0 0.0
  %4816 = vmatprep.subr.mxu0 0.0
  %4817 = vmatpush1.msra.mxu0 0.0
  %4818 = vmatprep.subr.mxu0 0.0
  %4819 = vmatpush1.msra.mxu0 0.0
  %4820 = vmatprep.subr.mxu0 0.0
  %4821 = vmatpush1.msra.mxu0 0.0
  %4822 = vmatprep.subr.mxu0 0.0
  %4823 = vmatpush1.msra.mxu0 0.0
  %4824 = vmatprep.subr.mxu0 0.0
  %4825 = vmatpush1.msra.mxu0 0.0
  %4826 = vmatprep.subr.mxu0 0.0
  %4827 = vmatpush1.msra.mxu0 0.0
  %4828 = vmatprep.subr.mxu0 0.0
  %4829 = vmatpush1.msra.mxu0 0.0
  %4830 = vmatprep.subr.mxu0 0.0
  %4831 = vmatpush1.msra.mxu0 0.0
  %4832 = vmatprep.subr.mxu0 0.0
  %4833 = vmatpush1.msra.mxu0 0.0
  %4834 = vmatprep.subr.mxu0 0.0
  %4835 = vmatpush1.msra.mxu0 0.0
  %4836 = vmatprep.subr.mxu0 0.0
  %4837 = vmatpush1.msra.mxu0 0.0
  %4838 = vmatprep.subr.mxu0 0.0
  %4839 = vmatpush1.msra.mxu0 0.0
  %4840 = vmatprep.subr.mxu0 0.0
  %4841 = vmatpush1.msra.mxu0 %v4808
  %4842 = vmatprep.subr.mxu0 0.0
  %4843 = vmatpush2.msra.mxu0 0.0
  %4844 = vmatprep.subr.mxu0 0.0
  %4845 = vmatpush2.msra.mxu0 0.0
  %4846 = vmatprep.subr.mxu0 0.0
  %4847 = vmatpush2.msra.mxu0 0.0
  %4848 = vmatprep.subr.mxu0 0.0
  %4849 = vmatpush2.msra.mxu0 0.0
  %4850 = vmatprep.subr.mxu0 0.0
  %4851 = vmatpush2.msra.mxu0 0.0
  %4852 = vmatprep.subr.mxu0 0.0
  %4853 = vmatpush2.msra.mxu0 0.0
  %4854 = vmatprep.subr.mxu0 0.0
  %4855 = vmatpush2.msra.mxu0 0.0
  %4856 = vmatprep.subr.mxu0 0.0
  %4857 = vmatpush2.msra.mxu0 0.0
  %4858 = vmatprep.subr.mxu0 0.0
  %4859 = vmatpush2.msra.mxu0 0.0
  %4860 = vmatprep.subr.mxu0 0.0
  %4861 = vmatpush2.msra.mxu0 0.0
  %4862 = vmatprep.subr.mxu0 0.0
  %4863 = vmatpush2.msra.mxu0 0.0
  %4864 = vmatprep.subr.mxu0 0.0
  %4865 = vmatpush2.msra.mxu0 0.0
  %4866 = vmatprep.subr.mxu0 0.0
  %4867 = vmatpush2.msra.mxu0 0.0
  %4868 = vmatprep.subr.mxu0 0.0
  %4869 = vmatpush2.msra.mxu0 0.0
  %4870 = vmatprep.subr.mxu0 0.0
  %4871 = vmatpush2.msra.mxu0 0.0
  %4872 = vmatprep.subr.mxu0 0.0
  %4873 = vmatpush2.msra.mxu0 0.0
  %4874 = vmatprep.mubr.f32.mxu0 0.0
  %4875 = vmatmul.mubr.f32.gmra.mxu0 %v4334
  %v4876 = vpop.f32.mrf.mxu0
  %v4877 = vadd.f32 0.0, %v4876
  %v4878 = vpop.f32.mrf.mxu0
  %4879 = vmatprep.mubr.f32.mxu0 0.0
  %4880 = vmatmul.mubr.f32.gmra.mxu0 %v4337
  %v4881 = vpop.f32.mrf.mxu0
  %v4882 = vadd.f32 0.0, %v4881
  %v4883 = vpop.f32.mrf.mxu0
  %4884 = vmatprep.mubr.f32.mxu0 0.0
  %4885 = vmatmul.mubr.f32.gmra.mxu0 %v4340
  %v4886 = vpop.f32.mrf.mxu0
  %v4887 = vadd.f32 0.0, %v4886
  %v4888 = vpop.f32.mrf.mxu0
  %4889 = vmatprep.mubr.f32.mxu0 0.0
  %4890 = vmatmul.mubr.f32.gmra.mxu0 %v4343
  %v4891 = vpop.f32.mrf.mxu0
  %v4892 = vadd.f32 0.0, %v4891
  %v4893 = vpop.f32.mrf.mxu0
  %4894 = vdwg.mxu0
  %v4895 = vld [vmem:[%s1 + $0x14] sm:$0xf]
  %v4896 = vld [vmem:[%s1 + $0x2c] sm:$0xf]
  %v4897 = vld [vmem:[%s1 + $0x44] sm:$0xf]
  %v4898 = vld [vmem:[%s1 + $0x5c] sm:$0xf]
  %v4899 = vpack.c.bf16 %v4882, %v4877
  %v4900 = vpack.c.bf16 %v4892, %v4887
  %v4905 = vunpack.c.l.b16 %v4895
  %v4906 = vunpack.c.l.b16 %v4896
  %v4907 = vunpack.c.l.b16 %v4897
  %v4908 = vunpack.c.l.b16 %v4898
  %v4909 = vpack.c.b16 %v4906, %v4905
  %v4910 = vpack.c.b16 %v4908, %v4907
  %v4912 = vsel %vm3653, %v4909, 0
  %v4915 = vsel %vm3653, %v4910, 0
  %4917 = vmatprep.subr.bf16.mxu0 0
  %4918 = vmatpush1.bf16.msra.mxu0 0
  %4919 = vmatprep.subr.bf16.mxu0 0
  %4920 = vmatpush1.bf16.msra.mxu0 0
  %4921 = vmatprep.subr.bf16.mxu0 0
  %4922 = vmatpush1.bf16.msra.mxu0 0
  %4923 = vmatprep.subr.bf16.mxu0 0
  %4924 = vmatpush1.bf16.msra.mxu0 0
  %4925 = vmatprep.subr.bf16.mxu0 0
  %4926 = vmatpush1.bf16.msra.mxu0 0
  %4927 = vmatprep.subr.bf16.mxu0 0
  %4928 = vmatpush1.bf16.msra.mxu0 0
  %4929 = vmatprep.subr.bf16.mxu0 0
  %4930 = vmatpush1.bf16.msra.mxu0 %v4900
  %4931 = vmatprep.subr.bf16.mxu0 0
  %4932 = vmatpush1.bf16.msra.mxu0 %v4899
  %4933 = vmatprep.subr.bf16.mxu0 0
  %4934 = vmatpush2.bf16.msra.mxu0 0
  %4935 = vmatprep.subr.bf16.mxu0 0
  %4936 = vmatpush2.bf16.msra.mxu0 0
  %4937 = vmatprep.subr.bf16.mxu0 0
  %4938 = vmatpush2.bf16.msra.mxu0 0
  %4939 = vmatprep.subr.bf16.mxu0 0
  %4940 = vmatpush2.bf16.msra.mxu0 0
  %4941 = vmatprep.subr.bf16.mxu0 0
  %4942 = vmatpush2.bf16.msra.mxu0 0
  %4943 = vmatprep.subr.bf16.mxu0 0
  %4944 = vmatpush2.bf16.msra.mxu0 0
  %4945 = vmatprep.subr.bf16.mxu0 0
  %4946 = vmatpush2.bf16.msra.mxu0 0
  %4947 = vmatprep.subr.bf16.mxu0 0
  %4948 = vmatpush2.bf16.msra.mxu0 0
  %4949 = vmatprep.mubr.bf16.mxu0 0
  %4950 = vmatmul.mubr.bf16.gmra.mxu0 %v4912
  %v4951 = vpop.f32.mrf.mxu0
  %v4952 = vadd.f32 0.0, %v4951
  %v4953 = vpop.f32.mrf.mxu0
  %v4954 = vpop.f32.mrf.mxu0
  %v4955 = vadd.f32 0.0, %v4954
  %v4956 = vpop.f32.mrf.mxu0
  %4957 = vmatprep.mubr.bf16.mxu0 0
  %4958 = vmatmul.mubr.bf16.gmra.mxu0 %v4915
  %v4959 = vpop.f32.mrf.mxu0
  %v4960 = vadd.f32 0.0, %v4959
  %v4961 = vpop.f32.mrf.mxu0
  %v4962 = vpop.f32.mrf.mxu0
  %v4963 = vadd.f32 0.0, %v4962
  %v4964 = vpop.f32.mrf.mxu0
  %4965 = vdwg.mxu0
  %v4966 = vadd.f32 %v4803, %v4952
  %v4967 = vadd.f32 %v4804, %v4955
  %v4968 = vadd.f32 %v4805, %v4960
  %v4969 = vadd.f32 %v4806, %v4963
  %v4970 = vld [vmem:[%s2] sm:$0xff]
  %v4971 = vld [vmem:[%s2 + $0x8] sm:$0xff]
  %v4972 = vld [vmem:[%s2 + $0x10] sm:$0xff]
  %v4973 = vld [vmem:[%s2 + $0x18] sm:$0xff]
  %4975 = vset.pattern.permute.xlu0 4
  %4976 = vperm.xlu0 %4975, %v4970
  %v4977 = vpop.permute.xlu0 %4976
  %4980 = vset.pattern.permute.xlu0 4
  %4981 = vperm.xlu0 %4980, %v4971
  %v4982 = vpop.permute.xlu0 %4981
  %4985 = vset.pattern.permute.xlu0 4
  %4986 = vperm.xlu0 %4985, %v4972
  %v4987 = vpop.permute.xlu0 %4986
  %4990 = vset.pattern.permute.xlu0 4
  %4991 = vperm.xlu0 %4990, %v4973
  %v4992 = vpop.permute.xlu0 %4991
  %v4994 = vadd.f32 %v4966, %v4977
  %v4995 = vadd.f32 %v4967, %v4982
  %v4996 = vadd.f32 %v4968, %v4987
  %v4997 = vadd.f32 %v4969, %v4992
  %v4998 = vmax.f32 %v4994, 0.0
  %v4999 = vmax.f32 %v4995, 0.0
  %v5000 = vmax.f32 %v4996, 0.0
  %v5001 = vmax.f32 %v4997, 0.0
  %v5002 = vpack.c.bf16 %v4999, %v4998
  %v5003 = vpack.c.bf16 %v5001, %v5000
  %5004 = vset.pattern.permute.xlu0 5
  %5005 = vperm.xlu0 %5004, %v4970
  %v5006 = vpop.permute.xlu0 %5005
  %5008 = vset.pattern.permute.xlu0 5
  %5009 = vperm.xlu0 %5008, %v4971
  %v5010 = vpop.permute.xlu0 %5009
  %5012 = vset.pattern.permute.xlu0 5
  %5013 = vperm.xlu0 %5012, %v4972
  %v5014 = vpop.permute.xlu0 %5013
  %5016 = vset.pattern.permute.xlu0 5
  %5017 = vperm.xlu0 %5016, %v4973
  %v5018 = vpop.permute.xlu0 %5017
  %5020 = vrot.lane.b32.xlu0 %v4909, 96
  %v5021 = vpop.permute.xlu0 %5020
  %5022 = vrot.lane.b32.xlu0 %v4910, 96
  %v5023 = vpop.permute.xlu0 %5022
  %v5025 = vsel %vm3653, %v5021, 0
  %v5028 = vsel %vm3653, %v5023, 0
  %5030 = vmatprep.subr.bf16.mxu0 0
  %5031 = vmatpush1.bf16.msra.mxu0 0
  %5032 = vmatprep.subr.bf16.mxu0 0
  %5033 = vmatpush1.bf16.msra.mxu0 0
  %5034 = vmatprep.subr.bf16.mxu0 0
  %5035 = vmatpush1.bf16.msra.mxu0 0
  %5036 = vmatprep.subr.bf16.mxu0 0
  %5037 = vmatpush1.bf16.msra.mxu0 0
  %5038 = vmatprep.subr.bf16.mxu0 0
  %5039 = vmatpush1.bf16.msra.mxu0 0
  %5040 = vmatprep.subr.bf16.mxu0 0
  %5041 = vmatpush1.bf16.msra.mxu0 0
  %5042 = vmatprep.subr.bf16.mxu0 0
  %5043 = vmatpush1.bf16.msra.mxu0 %v5003
  %5044 = vmatprep.subr.bf16.mxu0 0
  %5045 = vmatpush1.bf16.msra.mxu0 %v5002
  %5046 = vmatprep.subr.bf16.mxu0 0
  %5047 = vmatpush2.bf16.msra.mxu0 0
  %5048 = vmatprep.subr.bf16.mxu0 0
  %5049 = vmatpush2.bf16.msra.mxu0 0
  %5050 = vmatprep.subr.bf16.mxu0 0
  %5051 = vmatpush2.bf16.msra.mxu0 0
  %5052 = vmatprep.subr.bf16.mxu0 0
  %5053 = vmatpush2.bf16.msra.mxu0 0
  %5054 = vmatprep.subr.bf16.mxu0 0
  %5055 = vmatpush2.bf16.msra.mxu0 0
  %5056 = vmatprep.subr.bf16.mxu0 0
  %5057 = vmatpush2.bf16.msra.mxu0 0
  %5058 = vmatprep.subr.bf16.mxu0 0
  %5059 = vmatpush2.bf16.msra.mxu0 0
  %5060 = vmatprep.subr.bf16.mxu0 0
  %5061 = vmatpush2.bf16.msra.mxu0 0
  %5062 = vmatprep.mubr.bf16.mxu0 0
  %5063 = vmatmul.mubr.bf16.gmra.mxu0 %v5025
  %v5064 = vpop.f32.mrf.mxu0
  %v5065 = vadd.f32 %v5006, %v5064
  %v5066 = vpop.f32.mrf.mxu0
  %v5067 = vpop.f32.mrf.mxu0
  %v5068 = vadd.f32 %v5010, %v5067
  %v5069 = vpop.f32.mrf.mxu0
  %5070 = vmatprep.mubr.bf16.mxu0 0
  %5071 = vmatmul.mubr.bf16.gmra.mxu0 %v5028
  %v5072 = vpop.f32.mrf.mxu0
  %v5073 = vadd.f32 %v5014, %v5072
  %v5074 = vpop.f32.mrf.mxu0
  %v5075 = vpop.f32.mrf.mxu0
  %v5076 = vadd.f32 %v5018, %v5075
  %v5077 = vpop.f32.mrf.mxu0
  %5078 = vdwg.mxu0
  %v5079 = vmax.f32 %v5065, 0.0
  %v5080 = vmax.f32 %v5068, 0.0
  %v5081 = vmax.f32 %v5073, 0.0
  %v5082 = vmax.f32 %v5076, 0.0
  %v5083 = vld [vmem:[%s1 + $0x14] sm:$0xf]
  %v5084 = vld [vmem:[%s1 + $0x2c] sm:$0x1]
  %v5085 = vpack.c.bf16 %v5080, %v5079
  %v5086 = vpack.c.bf16 %v5082, %v5081
  %v5087 = vld [vmem:[%s2] sm:$0xff]
  %v5088 = vld [vmem:[%s2 + $0x8] sm:$0x3]
  %5090 = vset.pattern.permute.xlu0 6
  %5091 = vperm.xlu0 %5090, %v5087
  %v5092 = vpop.permute.xlu0 %5091
  %5095 = vset.pattern.permute.xlu0 6
  %5096 = vperm.xlu0 %5095, %v5088
  %v5097 = vpop.permute.xlu0 %5096
  %v5101 = vunpack.c.l.b16 %v5083
  %v5102 = vunpack.c.l.b16 %v5084
  %v5103 = vpack.c.b16 %v5102, %v5101
  %5104 = vrot.lane.b32.xlu0 %v5103, 64
  %v5105 = vpop.permute.xlu0 %5104
  %v5107 = vsel %vm3653, %v5105, 0
  %5109 = vmatprep.subr.bf16.mxu0 0
  %5110 = vmatpush1.bf16.msra.mxu0 0
  %5111 = vmatprep.subr.bf16.mxu0 0
  %5112 = vmatpush1.bf16.msra.mxu0 0
  %5113 = vmatprep.subr.bf16.mxu0 0
  %5114 = vmatpush1.bf16.msra.mxu0 0
  %5115 = vmatprep.subr.bf16.mxu0 0
  %5116 = vmatpush1.bf16.msra.mxu0 0
  %5117 = vmatprep.subr.bf16.mxu0 0
  %5118 = vmatpush1.bf16.msra.mxu0 0
  %5119 = vmatprep.subr.bf16.mxu0 0
  %5120 = vmatpush1.bf16.msra.mxu0 0
  %5121 = vmatprep.subr.bf16.mxu0 0
  %5122 = vmatpush1.bf16.msra.mxu0 %v5086
  %5123 = vmatprep.subr.bf16.mxu0 0
  %5124 = vmatpush1.bf16.msra.mxu0 %v5085
  %5125 = vmatprep.subr.bf16.mxu0 0
  %5126 = vmatpush2.bf16.msra.mxu0 0
  %5127 = vmatprep.subr.bf16.mxu0 0
  %5128 = vmatpush2.bf16.msra.mxu0 0
  %5129 = vmatprep.subr.bf16.mxu0 0
  %5130 = vmatpush2.bf16.msra.mxu0 0
  %5131 = vmatprep.subr.bf16.mxu0 0
  %5132 = vmatpush2.bf16.msra.mxu0 0
  %5133 = vmatprep.subr.bf16.mxu0 0
  %5134 = vmatpush2.bf16.msra.mxu0 0
  %5135 = vmatprep.subr.bf16.mxu0 0
  %5136 = vmatpush2.bf16.msra.mxu0 0
  %5137 = vmatprep.subr.bf16.mxu0 0
  %5138 = vmatpush2.bf16.msra.mxu0 0
  %5139 = vmatprep.subr.bf16.mxu0 0
  %5140 = vmatpush2.bf16.msra.mxu0 0
  %5141 = vmatprep.mubr.bf16.mxu0 0
  %5142 = vmatmul.mubr.bf16.gmra.mxu0 %v5107
  %v5143 = vpop.f32.mrf.mxu0
  %v5144 = vadd.f32 %v5092, %v5143
  %v5145 = vpop.f32.mrf.mxu0
  %v5146 = vpop.f32.mrf.mxu0
  %v5147 = vadd.f32 %v5097, %v5146
  %v5148 = vpop.f32.mrf.mxu0
  %5149 = vdwg.mxu0
  %5150 = vst.msk [vmem:[%s3] sm:$0xff] %vm1413, %v5144
  %vm5151 = vcmask 9216
  %5152 = vst.msk [vmem:[%s3 + $0x8] sm:$0x3] %vm5151, %v5147
  // Predicated region
  $region14: #{vggfc_forward.1} parent=0 // pred_check
    _
  $region15: #{vggfc_forward.1} parent=0 // pred_check_branch
    %5154 = sbr.rel (0) target = $region17
  $region16: #{vggfc_forward.1} parent=0 // pred_region
    _
  $region17: #{vggfc_forward.1} parent=0 // pred_fallthru
    _
  // Predicated region
  $region18: #{vggfc_forward.1} parent=0 // pred_check
    _
  $region19: #{vggfc_forward.1} parent=0 // pred_check_branch
    %5156 = sbr.rel (0) target = $region21
  $region20: #{vggfc_forward.1} parent=0 // pred_region
    _
  $region21: #{vggfc_forward.1} parent=0 // pred_fallthru
    _

</llo_original>
